<compile_context>
chip_gen: v7x
topology: tpu7x:2x2x1
jax: 0.10.0
libtpu: 0.0.40
codegen_flags: <defaults>
</compile_context>

<pallas_src>
import functools

import jax
import jax.numpy as jnp
from jax import lax
from jax.experimental import pallas as pl
from jax.experimental.pallas import tpu as pltpu

COMPUTE_DTYPE = jnp.bfloat16                     # MXU-native matmul input dtype
_VMEM = pl.BlockSpec(memory_space=pltpu.MemorySpace.VMEM)


def _round_up(x, m):
    return -(-x // m) * m


# ----------------------------------------------------------------------------
# Fused model kernel (built per static shape configuration)
# ----------------------------------------------------------------------------
def _make_model_kernel(n_layers, T, Bp, E, H, Opad, TB):
    GH = 4 * H                                   # gates per direction
    G2 = 8 * H                                   # gates, both directions

    def kernel(*refs):
        refs = list(refs)
        x_ref = refs.pop(0)                      # [T*Bp, E]    bf16 (time-major, batch-padded)
        layer_refs = [tuple(refs.pop(0) for _ in range(3)) for _ in range(n_layers)]
        fc_w_ref = refs.pop(0)                   # [2H, Opad]   bf16
        fc_b_ref = refs.pop(0)                   # [1, Opad]    f32
        out_ref = refs.pop(0)                    # [Bp, Opad]   f32
        pre_scr = refs.pop(0)                    # [T*Bp, 8H]   bf16 pre-gates (fwd | bwd, bwd time-reversed)
        a_scr = refs.pop(0)                      # [T*Bp, 2H]   bf16 per-step outputs [h_f | h_b]

        def cell(g, c):
            # g: [Bp, 4H] pre-activations in packed order (i, f, o, g), f32 math
            s = jax.nn.sigmoid(g[:, 0:3 * H])    # single EUP slab for i / f / o
            i_g = s[:, 0:H]
            f_g = s[:, H:2 * H]
            o_g = s[:, 2 * H:3 * H]
            g_g = jnp.tanh(g[:, 3 * H:4 * H])
            c_new = f_g * c + i_g * g_g
            h_new = o_g * jnp.tanh(c_new)
            return h_new, c_new

        def run_layer(l, wrefs, is_last):
            w_in_ref, w_blk_ref, b_ref = wrefs
            in_ref = x_ref if l == 0 else a_scr
            w_in = w_in_ref[...]
            bias = b_ref[...]

            # ---- hoisted input projection, chunked over time blocks.
            #      Row-block t of pre_scr receives [fwd pregates(t) | bwd pregates(T-1-t)]
            #      so the recurrence reads ONE contiguous [Bp, 8H] slab per step.
            t0 = 0
            while t0 < T:
                tb = min(TB, T - t0)
                rows = in_ref[pl.ds(t0 * Bp, tb * Bp), :]
                pre = (jnp.dot(rows, w_in, preferred_element_type=jnp.float32)
                       + bias).astype(pre_scr.dtype)                     # [tb*Bp, 8H] bf16
                pre_scr[pl.ds(t0 * Bp, tb * Bp), 0:GH] = pre[:, 0:GH]     # fwd half, in order
                for j in range(tb):                                       # bwd half, time-reversed
                    t = t0 + j
                    pre_scr[pl.ds((T - 1 - t) * Bp, Bp), GH:G2] = \
                        pre[j * Bp:(j + 1) * Bp, GH:G2]
                t0 += tb

            w_blk = w_blk_ref[...]               # [2H, 8H] block-diag (whh_f ⊕ whh_b), bf16

            def step(t, carry):
                h_f, c_f, h_b, c_b = carry
                off_f = t * Bp                   # fwd consumes time t; bwd consumes T-1-t
                off_b = (T - 1 - t) * Bp
                if not isinstance(t, int):
                    off_f = pl.multiple_of(off_f, Bp)
                    off_b = pl.multiple_of(off_b, Bp)
                h_cat = jnp.concatenate([h_f, h_b], axis=-1).astype(w_blk.dtype)
                gates = (pre_scr[pl.ds(off_f, Bp), :].astype(jnp.float32)
                         + jnp.dot(h_cat, w_blk,
                                   preferred_element_type=jnp.float32))   # [Bp, 8H] f32
                h_f, c_f = cell(gates[:, 0:GH], c_f)
                h_b, c_b = cell(gates[:, GH:G2], c_b)
                if not is_last:                   # last layer's per-step outputs are unused
                    a_scr[pl.ds(off_f, Bp), 0:H] = h_f.astype(a_scr.dtype)
                    a_scr[pl.ds(off_b, Bp), H:2 * H] = h_b.astype(a_scr.dtype)
                return h_f, c_f, h_b, c_b

            z = jnp.zeros((Bp, H), jnp.float32)
            init = (z, z, z, z)
            if T <= 32:                           # statically unrolled recurrence (short T)
                carry = init
                for t in range(T):
                    carry = step(t, carry)
            else:
                carry = lax.fori_loop(0, T, step, init, unroll=8)
            return carry[0], carry[2]             # final forward / backward hidden state

        h_f = h_b = None
        for l in range(n_layers):
            h_f, h_b = run_layer(l, layer_refs[l], is_last=(l == n_layers - 1))

        # ---- fused classifier head: logits = [h_fwd | h_bwd] @ W_fc + b (single MXU issue) ----
        h_cat = jnp.concatenate([h_f, h_b], axis=-1).astype(fc_w_ref.dtype)
        out_ref[...] = (jnp.dot(h_cat, fc_w_ref[...],
                                preferred_element_type=jnp.float32)
                        + fc_b_ref[...])          # lane/sublane-dense [Bp, Opad] store

    return kernel


# ----------------------------------------------------------------------------
# One-time parameter packing (gate reorder, transpose, block-diag W_hh, bf16 cast)
# ----------------------------------------------------------------------------
def _reorder_gates(w):
    """Reorder PyTorch gate blocks (i, f, g, o) -> (i, f, o, g) along axis 0."""
    H = w.shape[0] // 4
    return jnp.concatenate([w[0:2 * H], w[3 * H:4 * H], w[2 * H:3 * H]], axis=0)


def pack_params(params):
    H = params["lstm"][0]["fwd"]["w_hh"].shape[1]
    O = params["fc_w"].shape[0]
    Opad = _round_up(max(O, 1), 128)
    cd = COMPUTE_DTYPE
    packed = {"embedding": params["embedding"].astype(cd), "layers": []}
    for layer in params["lstm"]:
        f, b = layer["fwd"], layer["bwd"]
        # input projection: columns = [fwd (i,f,o,g) | bwd (i,f,o,g)]   -> [in_dim, 8H]
        w_in = jnp.concatenate(
            [jnp.transpose(_reorder_gates(f["w_ih"])),
             jnp.transpose(_reorder_gates(b["w_ih"]))], axis=1).astype(cd)
        # block-diagonal recurrent weight: [2H, 8H] = [[whh_f^T, 0], [0, whh_b^T]]
        zero = jnp.zeros((H, 4 * H), jnp.float32)
        w_blk = jnp.concatenate(
            [jnp.concatenate([jnp.transpose(_reorder_gates(f["w_hh"])), zero], axis=1),
             jnp.concatenate([zero, jnp.transpose(_reorder_gates(b["w_hh"]))], axis=1)],
            axis=0).astype(cd)
        bias = jnp.concatenate(
            [_reorder_gates(f["b_ih"] + f["b_hh"]),
             _reorder_gates(b["b_ih"] + b["b_hh"])]
        ).reshape(1, 8 * H).astype(jnp.float32)
        packed["layers"].append({"w_in": w_in, "w_blk": w_blk, "bias": bias})
    pad_o = Opad - O
    packed["fc_w"] = jnp.pad(jnp.transpose(params["fc_w"]).astype(cd),
                             ((0, 0), (0, pad_o)))                        # [2H, Opad]
    packed["fc_b"] = jnp.pad(params["fc_b"].astype(jnp.float32),
                             (0, pad_o)).reshape(1, Opad)                 # [1, Opad]
    return packed


# ----------------------------------------------------------------------------
# Forward pass
# ----------------------------------------------------------------------------
@functools.partial(jax.jit, static_argnames=("out_dim",))
def lstm_model_forward(text, packed, *, out_dim):
    """text: int32 [B, T] token ids. Returns logits [B, out_dim] (eval mode)."""
    B, T = text.shape
    emb = jnp.take(packed["embedding"], text, axis=0)        # [B, T, E] bf16 gather (glue)
    E = emb.shape[-1]
    H = packed["layers"][0]["w_blk"].shape[0] // 2
    Opad = packed["fc_b"].shape[-1]
    n_layers = len(packed["layers"])

    Bp = _round_up(max(B, 8), 8)                             # sublane-pad the batch
    x = jnp.transpose(emb, (1, 0, 2))                        # [T, B, E] time-major
    x = jnp.pad(x, ((0, 0), (0, Bp - B), (0, 0)))
    x = x.reshape(T * Bp, E).astype(COMPUTE_DTYPE)           # 2-D lane-dense slab

    inputs = [x]
    for entry in packed["layers"]:
        inputs += [entry["w_in"], entry["w_blk"], entry["bias"]]
    inputs += [packed["fc_w"], packed["fc_b"]]

    # time-block size for the hoisted input-projection GEMM (~>=128 MXU rows per chunk)
    TB = max(1, min(T, 256 // Bp))

    # VMEM budget computed from the actual resident footprint (not a fixed 32 MiB cap).
    def nbytes(a):
        return int(a.size) * a.dtype.itemsize

    scratch_bytes = T * Bp * 8 * H * 2 + T * Bp * 2 * H * 2          # bf16 scratches
    needed = sum(nbytes(a) for a in inputs) + Bp * Opad * 4 + scratch_bytes
    vmem_limit = int(min(max(2 * needed + (8 << 20), 32 << 20), 100 << 20))

    kernel = _make_model_kernel(n_layers, T, Bp, E, H, Opad, TB)
    logits_padded = pl.pallas_call(
        kernel,
        out_shape=jax.ShapeDtypeStruct((Bp, Opad), jnp.float32),
        in_specs=[_VMEM] * len(inputs),
        out_specs=_VMEM,
        scratch_shapes=[
            pltpu.VMEM((T * Bp, 8 * H), COMPUTE_DTYPE),      # bf16 pre-gates (both directions)
            pltpu.VMEM((T * Bp, 2 * H), COMPUTE_DTYPE),      # bf16 per-step outputs [h_f | h_b]
        ],
        compiler_params=pltpu.CompilerParams(vmem_limit_bytes=vmem_limit),
    )(*inputs)
    return logits_padded[:B, :out_dim]


# ----------------------------------------------------------------------------
# Deterministic parameter construction (PyTorch layout)
# ----------------------------------------------------------------------------
def make_params(key, vocab_size, embedding_dim, hidden_dim, output_dim, n_layers):
    keys = iter(jax.random.split(key, 4 + n_layers * 16))
    scale = 1.0 / jnp.sqrt(hidden_dim)

    def u(k, shape):
        return jax.random.uniform(k, shape, jnp.float32, -scale, scale)

    params = {
        "embedding": jax.random.normal(next(keys), (vocab_size, embedding_dim),
                                       jnp.float32),
        "lstm": [],
        "fc_w": u(next(keys), (output_dim, hidden_dim * 2)),
        "fc_b": u(next(keys), (output_dim,)),
    }
    for l in range(n_layers):
        in_dim = embedding_dim if l == 0 else 2 * hidden_dim
        layer = {}
        for d in ("fwd", "bwd"):
            layer[d] = {
                "w_ih": u(next(keys), (4 * hidden_dim, in_dim)),
                "w_hh": u(next(keys), (4 * hidden_dim, hidden_dim)),
                "b_ih": u(next(keys), (4 * hidden_dim,)),
                "b_hh": u(next(keys), (4 * hidden_dim,)),
            }
        params["lstm"].append(layer)
    return params


# ----------------------------------------------------------------------------
if __name__ == "__main__":
    VOCAB = 50
    EMB = 32
    HID = 32
    OUT = 4
    N_LAYERS = 2
    B, T = 2, 8

    key = jax.random.PRNGKey(0)
    k_param, k_text = jax.random.split(key)
    params = make_params(k_param, VOCAB, EMB, HID, OUT, N_LAYERS)
    packed = pack_params(params)
    text = jax.random.randint(k_text, (B, T), 0, VOCAB, dtype=jnp.int32)

    logits = lstm_model_forward(text, packed, out_dim=OUT)
    jax.block_until_ready(logits)
    assert logits.shape == (B, OUT), logits.shape
    assert bool(jnp.all(jnp.isfinite(logits)))
    print("KERNEL_OK")
</pallas_src>

<mosaic_0001>
module attributes {stable_mosaic.version = 11 : i64} {
  func.func @kernel(%arg0: memref<64x32xbf16, #tpu.memory_space<vmem>>, %arg1: memref<32x256xbf16, #tpu.memory_space<vmem>>, %arg2: memref<64x256xbf16, #tpu.memory_space<vmem>>, %arg3: memref<1x256xf32, #tpu.memory_space<vmem>>, %arg4: memref<64x256xbf16, #tpu.memory_space<vmem>>, %arg5: memref<64x256xbf16, #tpu.memory_space<vmem>>, %arg6: memref<1x256xf32, #tpu.memory_space<vmem>>, %arg7: memref<64x128xbf16, #tpu.memory_space<vmem>>, %arg8: memref<1x128xf32, #tpu.memory_space<vmem>>, %arg9: memref<8x128xf32, #tpu.memory_space<vmem>>, %arg10: memref<64x256xbf16, #tpu.memory_space<vmem>>, %arg11: memref<64x64xbf16, #tpu.memory_space<vmem>>) attributes {dimension_semantics = [], scalar_prefetch = 0 : i64, scratch_operands = 2 : i64, tpu.core_type = #tpu.core_type<tc>} {
    %c0 = arith.constant 0 : index
    %c0_0 = arith.constant 0 : index
    %0 = vector.load %arg1[%c0, %c0_0] : memref<32x256xbf16, #tpu.memory_space<vmem>>, vector<32x256xbf16>
    %c0_1 = arith.constant 0 : index
    %c0_2 = arith.constant 0 : index
    %1 = vector.load %arg3[%c0_1, %c0_2] : memref<1x256xf32, #tpu.memory_space<vmem>>, vector<1x256xf32>
    %c0_3 = arith.constant 0 : index
    %c0_4 = arith.constant 0 : index
    %2 = vector.load %arg0[%c0_3, %c0_4] : memref<64x32xbf16, #tpu.memory_space<vmem>>, vector<64x32xbf16>
    %cst = arith.constant dense<0.000000e+00> : vector<64x256xf32>
    %3 = tpu.matmul %2, %0, %cst {dimension_numbers = #tpu.dot_dimension_numbers<[1], [0], [0], [1], [0, 0, 1, 1], [], []>} : vector<64x32xbf16>, vector<32x256xbf16>, vector<64x256xf32> -> vector<64x256xf32>
    %4 = vector.broadcast %1 : vector<1x256xf32> to vector<64x256xf32>
    %5 = arith.addf %3, %4 : vector<64x256xf32>
    %6 = arith.truncf %5 : vector<64x256xf32> to vector<64x256xbf16>
    %7 = vector.extract_strided_slice %6 {offsets = [0, 0], sizes = [64, 128], strides = [1, 1]} : vector<64x256xbf16> to vector<64x128xbf16>
    %c0_5 = arith.constant 0 : index
    %c0_6 = arith.constant 0 : index
    %8 = vector.load %arg10[%c0_5, %c0_6] : memref<64x256xbf16, #tpu.memory_space<vmem>>, vector<64x128xbf16>
    tpu.vector_store %arg10[%c0_5, %c0_6], %7 {strides = array<i32>} : memref<64x256xbf16, #tpu.memory_space<vmem>>, vector<64x128xbf16>,
    %9 = vector.extract_strided_slice %6 {offsets = [0, 128], sizes = [8, 128], strides = [1, 1]} : vector<64x256xbf16> to vector<8x128xbf16>
    %c56 = arith.constant 56 : index
    %c128 = arith.constant 128 : index
    %10 = vector.load %arg10[%c56, %c128] : memref<64x256xbf16, #tpu.memory_space<vmem>>, vector<8x128xbf16>
    tpu.vector_store %arg10[%c56, %c128], %9 {strides = array<i32>} : memref<64x256xbf16, #tpu.memory_space<vmem>>, vector<8x128xbf16>,
    %11 = vector.extract_strided_slice %6 {offsets = [8, 128], sizes = [8, 128], strides = [1, 1]} : vector<64x256xbf16> to vector<8x128xbf16>
    %c48 = arith.constant 48 : index
    %c128_7 = arith.constant 128 : index
    %12 = vector.load %arg10[%c48, %c128_7] : memref<64x256xbf16, #tpu.memory_space<vmem>>, vector<8x128xbf16>
    tpu.vector_store %arg10[%c48, %c128_7], %11 {strides = array<i32>} : memref<64x256xbf16, #tpu.memory_space<vmem>>, vector<8x128xbf16>,
    %13 = vector.extract_strided_slice %6 {offsets = [16, 128], sizes = [8, 128], strides = [1, 1]} : vector<64x256xbf16> to vector<8x128xbf16>
    %c40 = arith.constant 40 : index
    %c128_8 = arith.constant 128 : index
    %14 = vector.load %arg10[%c40, %c128_8] : memref<64x256xbf16, #tpu.memory_space<vmem>>, vector<8x128xbf16>
    tpu.vector_store %arg10[%c40, %c128_8], %13 {strides = array<i32>} : memref<64x256xbf16, #tpu.memory_space<vmem>>, vector<8x128xbf16>,
    %15 = vector.extract_strided_slice %6 {offsets = [24, 128], sizes = [8, 128], strides = [1, 1]} : vector<64x256xbf16> to vector<8x128xbf16>
    %c32 = arith.constant 32 : index
    %c128_9 = arith.constant 128 : index
    %16 = vector.load %arg10[%c32, %c128_9] : memref<64x256xbf16, #tpu.memory_space<vmem>>, vector<8x128xbf16>
    tpu.vector_store %arg10[%c32, %c128_9], %15 {strides = array<i32>} : memref<64x256xbf16, #tpu.memory_space<vmem>>, vector<8x128xbf16>,
    %17 = vector.extract_strided_slice %6 {offsets = [32, 128], sizes = [8, 128], strides = [1, 1]} : vector<64x256xbf16> to vector<8x128xbf16>
    %c24 = arith.constant 24 : index
    %c128_10 = arith.constant 128 : index
    %18 = vector.load %arg10[%c24, %c128_10] : memref<64x256xbf16, #tpu.memory_space<vmem>>, vector<8x128xbf16>
    tpu.vector_store %arg10[%c24, %c128_10], %17 {strides = array<i32>} : memref<64x256xbf16, #tpu.memory_space<vmem>>, vector<8x128xbf16>,
    %19 = vector.extract_strided_slice %6 {offsets = [40, 128], sizes = [8, 128], strides = [1, 1]} : vector<64x256xbf16> to vector<8x128xbf16>
    %c16 = arith.constant 16 : index
    %c128_11 = arith.constant 128 : index
    %20 = vector.load %arg10[%c16, %c128_11] : memref<64x256xbf16, #tpu.memory_space<vmem>>, vector<8x128xbf16>
    tpu.vector_store %arg10[%c16, %c128_11], %19 {strides = array<i32>} : memref<64x256xbf16, #tpu.memory_space<vmem>>, vector<8x128xbf16>,
    %21 = vector.extract_strided_slice %6 {offsets = [48, 128], sizes = [8, 128], strides = [1, 1]} : vector<64x256xbf16> to vector<8x128xbf16>
    %c8 = arith.constant 8 : index
    %c128_12 = arith.constant 128 : index
    %22 = vector.load %arg10[%c8, %c128_12] : memref<64x256xbf16, #tpu.memory_space<vmem>>, vector<8x128xbf16>
    tpu.vector_store %arg10[%c8, %c128_12], %21 {strides = array<i32>} : memref<64x256xbf16, #tpu.memory_space<vmem>>, vector<8x128xbf16>,
    %23 = vector.extract_strided_slice %6 {offsets = [56, 128], sizes = [8, 128], strides = [1, 1]} : vector<64x256xbf16> to vector<8x128xbf16>
    %c0_13 = arith.constant 0 : index
    %c128_14 = arith.constant 128 : index
    %24 = vector.load %arg10[%c0_13, %c128_14] : memref<64x256xbf16, #tpu.memory_space<vmem>>, vector<8x128xbf16>
    tpu.vector_store %arg10[%c0_13, %c128_14], %23 {strides = array<i32>} : memref<64x256xbf16, #tpu.memory_space<vmem>>, vector<8x128xbf16>,
    %c0_15 = arith.constant 0 : index
    %c0_16 = arith.constant 0 : index
    %25 = vector.load %arg2[%c0_15, %c0_16] : memref<64x256xbf16, #tpu.memory_space<vmem>>, vector<64x256xbf16>
    %cst_17 = arith.constant 0.000000e+00 : f32
    %26 = vector.broadcast %cst_17 : f32 to vector<8x32xf32>
    %27 = tpu.concatenate %26, %26 in 1 : vector<8x32xf32>, vector<8x32xf32> -> vector<8x64xf32>
    %28 = arith.truncf %27 : vector<8x64xf32> to vector<8x64xbf16>
    %c0_18 = arith.constant 0 : index
    %c0_19 = arith.constant 0 : index
    %29 = vector.load %arg10[%c0_18, %c0_19] : memref<64x256xbf16, #tpu.memory_space<vmem>>, vector<8x256xbf16>
    %30 = arith.extf %29 : vector<8x256xbf16> to vector<8x256xf32>
    %cst_20 = arith.constant dense<0.000000e+00> : vector<8x256xf32>
    %31 = tpu.matmul %28, %25, %cst_20 {dimension_numbers = #tpu.dot_dimension_numbers<[1], [0], [0], [1], [0, 0, 1, 1], [], []>} : vector<8x64xbf16>, vector<64x256xbf16>, vector<8x256xf32> -> vector<8x256xf32>
    %32 = arith.addf %30, %31 : vector<8x256xf32>
    %33 = vector.extract_strided_slice %32 {offsets = [0, 0], sizes = [8, 128], strides = [1, 1]} : vector<8x256xf32> to vector<8x128xf32>
    %34 = vector.extract_strided_slice %33 {offsets = [0, 0], sizes = [8, 96], strides = [1, 1]} : vector<8x128xf32> to vector<8x96xf32>
    %35 = arith.negf %34 : vector<8x96xf32>
    %36 = math.exp %35 : vector<8x96xf32>
    %cst_21 = arith.constant 1.000000e+00 : f32
    %37 = vector.broadcast %cst_21 : f32 to vector<8x96xf32>
    %38 = arith.addf %37, %36 : vector<8x96xf32>
    %39 = arith.divf %37, %38 : vector<8x96xf32>
    %40 = vector.extract_strided_slice %39 {offsets = [0, 0], sizes = [8, 32], strides = [1, 1]} : vector<8x96xf32> to vector<8x32xf32>
    %41 = vector.extract_strided_slice %39 {offsets = [0, 32], sizes = [8, 32], strides = [1, 1]} : vector<8x96xf32> to vector<8x32xf32>
    %42 = vector.extract_strided_slice %39 {offsets = [0, 64], sizes = [8, 32], strides = [1, 1]} : vector<8x96xf32> to vector<8x32xf32>
    %43 = vector.extract_strided_slice %33 {offsets = [0, 96], sizes = [8, 32], strides = [1, 1]} : vector<8x128xf32> to vector<8x32xf32>
    %44 = math.tanh %43 : vector<8x32xf32>
    %45 = arith.mulf %41, %26 : vector<8x32xf32>
    %46 = arith.mulf %40, %44 : vector<8x32xf32>
    %47 = arith.addf %45, %46 : vector<8x32xf32>
    %48 = math.tanh %47 : vector<8x32xf32>
    %49 = arith.mulf %42, %48 : vector<8x32xf32>
    %50 = vector.extract_strided_slice %32 {offsets = [0, 128], sizes = [8, 128], strides = [1, 1]} : vector<8x256xf32> to vector<8x128xf32>
    %51 = vector.extract_strided_slice %50 {offsets = [0, 0], sizes = [8, 96], strides = [1, 1]} : vector<8x128xf32> to vector<8x96xf32>
    %52 = arith.negf %51 : vector<8x96xf32>
    %53 = math.exp %52 : vector<8x96xf32>
    %cst_22 = arith.constant 1.000000e+00 : f32
    %54 = vector.broadcast %cst_22 : f32 to vector<8x96xf32>
    %55 = arith.addf %54, %53 : vector<8x96xf32>
    %56 = arith.divf %54, %55 : vector<8x96xf32>
    %57 = vector.extract_strided_slice %56 {offsets = [0, 0], sizes = [8, 32], strides = [1, 1]} : vector<8x96xf32> to vector<8x32xf32>
    %58 = vector.extract_strided_slice %56 {offsets = [0, 32], sizes = [8, 32], strides = [1, 1]} : vector<8x96xf32> to vector<8x32xf32>
    %59 = vector.extract_strided_slice %56 {offsets = [0, 64], sizes = [8, 32], strides = [1, 1]} : vector<8x96xf32> to vector<8x32xf32>
    %60 = vector.extract_strided_slice %50 {offsets = [0, 96], sizes = [8, 32], strides = [1, 1]} : vector<8x128xf32> to vector<8x32xf32>
    %61 = math.tanh %60 : vector<8x32xf32>
    %62 = arith.mulf %58, %26 : vector<8x32xf32>
    %63 = arith.mulf %57, %61 : vector<8x32xf32>
    %64 = arith.addf %62, %63 : vector<8x32xf32>
    %65 = math.tanh %64 : vector<8x32xf32>
    %66 = arith.mulf %59, %65 : vector<8x32xf32>
    %67 = arith.truncf %49 : vector<8x32xf32> to vector<8x32xbf16>
    %c0_23 = arith.constant 0 : index
    %c0_24 = arith.constant 0 : index
    %68 = vector.load %arg11[%c0_23, %c0_24] : memref<64x64xbf16, #tpu.memory_space<vmem>>, vector<8x32xbf16>
    tpu.vector_store %arg11[%c0_23, %c0_24], %67 {strides = array<i32>} : memref<64x64xbf16, #tpu.memory_space<vmem>>, vector<8x32xbf16>,
    %69 = arith.truncf %66 : vector<8x32xf32> to vector<8x32xbf16>
    %c56_25 = arith.constant 56 : index
    %c32_26 = arith.constant 32 : index
    %70 = vector.load %arg11[%c56_25, %c32_26] : memref<64x64xbf16, #tpu.memory_space<vmem>>, vector<8x32xbf16>
    tpu.vector_store %arg11[%c56_25, %c32_26], %69 {strides = array<i32>} : memref<64x64xbf16, #tpu.memory_space<vmem>>, vector<8x32xbf16>,
    %71 = tpu.concatenate %49, %66 in 1 : vector<8x32xf32>, vector<8x32xf32> -> vector<8x64xf32>
    %72 = arith.truncf %71 : vector<8x64xf32> to vector<8x64xbf16>
    %c8_27 = arith.constant 8 : index
    %c0_28 = arith.constant 0 : index
    %73 = vector.load %arg10[%c8_27, %c0_28] : memref<64x256xbf16, #tpu.memory_space<vmem>>, vector<8x256xbf16>
    %74 = arith.extf %73 : vector<8x256xbf16> to vector<8x256xf32>
    %cst_29 = arith.constant dense<0.000000e+00> : vector<8x256xf32>
    %75 = tpu.matmul %72, %25, %cst_29 {dimension_numbers = #tpu.dot_dimension_numbers<[1], [0], [0], [1], [0, 0, 1, 1], [], []>} : vector<8x64xbf16>, vector<64x256xbf16>, vector<8x256xf32> -> vector<8x256xf32>
    %76 = arith.addf %74, %75 : vector<8x256xf32>
    %77 = vector.extract_strided_slice %76 {offsets = [0, 0], sizes = [8, 128], strides = [1, 1]} : vector<8x256xf32> to vector<8x128xf32>
    %78 = vector.extract_strided_slice %77 {offsets = [0, 0], sizes = [8, 96], strides = [1, 1]} : vector<8x128xf32> to vector<8x96xf32>
    %79 = arith.negf %78 : vector<8x96xf32>
    %80 = math.exp %79 : vector<8x96xf32>
    %cst_30 = arith.constant 1.000000e+00 : f32
    %81 = vector.broadcast %cst_30 : f32 to vector<8x96xf32>
    %82 = arith.addf %81, %80 : vector<8x96xf32>
    %83 = arith.divf %81, %82 : vector<8x96xf32>
    %84 = vector.extract_strided_slice %83 {offsets = [0, 0], sizes = [8, 32], strides = [1, 1]} : vector<8x96xf32> to vector<8x32xf32>
    %85 = vector.extract_strided_slice %83 {offsets = [0, 32], sizes = [8, 32], strides = [1, 1]} : vector<8x96xf32> to vector<8x32xf32>
    %86 = vector.extract_strided_slice %83 {offsets = [0, 64], sizes = [8, 32], strides = [1, 1]} : vector<8x96xf32> to vector<8x32xf32>
    %87 = vector.extract_strided_slice %77 {offsets = [0, 96], sizes = [8, 32], strides = [1, 1]} : vector<8x128xf32> to vector<8x32xf32>
    %88 = math.tanh %87 : vector<8x32xf32>
    %89 = arith.mulf %85, %47 : vector<8x32xf32>
    %90 = arith.mulf %84, %88 : vector<8x32xf32>
    %91 = arith.addf %89, %90 : vector<8x32xf32>
    %92 = math.tanh %91 : vector<8x32xf32>
    %93 = arith.mulf %86, %92 : vector<8x32xf32>
    %94 = vector.extract_strided_slice %76 {offsets = [0, 128], sizes = [8, 128], strides = [1, 1]} : vector<8x256xf32> to vector<8x128xf32>
    %95 = vector.extract_strided_slice %94 {offsets = [0, 0], sizes = [8, 96], strides = [1, 1]} : vector<8x128xf32> to vector<8x96xf32>
    %96 = arith.negf %95 : vector<8x96xf32>
    %97 = math.exp %96 : vector<8x96xf32>
    %cst_31 = arith.constant 1.000000e+00 : f32
    %98 = vector.broadcast %cst_31 : f32 to vector<8x96xf32>
    %99 = arith.addf %98, %97 : vector<8x96xf32>
    %100 = arith.divf %98, %99 : vector<8x96xf32>
    %101 = vector.extract_strided_slice %100 {offsets = [0, 0], sizes = [8, 32], strides = [1, 1]} : vector<8x96xf32> to vector<8x32xf32>
    %102 = vector.extract_strided_slice %100 {offsets = [0, 32], sizes = [8, 32], strides = [1, 1]} : vector<8x96xf32> to vector<8x32xf32>
    %103 = vector.extract_strided_slice %100 {offsets = [0, 64], sizes = [8, 32], strides = [1, 1]} : vector<8x96xf32> to vector<8x32xf32>
    %104 = vector.extract_strided_slice %94 {offsets = [0, 96], sizes = [8, 32], strides = [1, 1]} : vector<8x128xf32> to vector<8x32xf32>
    %105 = math.tanh %104 : vector<8x32xf32>
    %106 = arith.mulf %102, %64 : vector<8x32xf32>
    %107 = arith.mulf %101, %105 : vector<8x32xf32>
    %108 = arith.addf %106, %107 : vector<8x32xf32>
    %109 = math.tanh %108 : vector<8x32xf32>
    %110 = arith.mulf %103, %109 : vector<8x32xf32>
    %111 = arith.truncf %93 : vector<8x32xf32> to vector<8x32xbf16>
    %c8_32 = arith.constant 8 : index
    %c0_33 = arith.constant 0 : index
    %112 = vector.load %arg11[%c8_32, %c0_33] : memref<64x64xbf16, #tpu.memory_space<vmem>>, vector<8x32xbf16>
    tpu.vector_store %arg11[%c8_32, %c0_33], %111 {strides = array<i32>} : memref<64x64xbf16, #tpu.memory_space<vmem>>, vector<8x32xbf16>,
    %113 = arith.truncf %110 : vector<8x32xf32> to vector<8x32xbf16>
    %c48_34 = arith.constant 48 : index
    %c32_35 = arith.constant 32 : index
    %114 = vector.load %arg11[%c48_34, %c32_35] : memref<64x64xbf16, #tpu.memory_space<vmem>>, vector<8x32xbf16>
    tpu.vector_store %arg11[%c48_34, %c32_35], %113 {strides = array<i32>} : memref<64x64xbf16, #tpu.memory_space<vmem>>, vector<8x32xbf16>,
    %115 = tpu.concatenate %93, %110 in 1 : vector<8x32xf32>, vector<8x32xf32> -> vector<8x64xf32>
    %116 = arith.truncf %115 : vector<8x64xf32> to vector<8x64xbf16>
    %c16_36 = arith.constant 16 : index
    %c0_37 = arith.constant 0 : index
    %117 = vector.load %arg10[%c16_36, %c0_37] : memref<64x256xbf16, #tpu.memory_space<vmem>>, vector<8x256xbf16>
    %118 = arith.extf %117 : vector<8x256xbf16> to vector<8x256xf32>
    %cst_38 = arith.constant dense<0.000000e+00> : vector<8x256xf32>
    %119 = tpu.matmul %116, %25, %cst_38 {dimension_numbers = #tpu.dot_dimension_numbers<[1], [0], [0], [1], [0, 0, 1, 1], [], []>} : vector<8x64xbf16>, vector<64x256xbf16>, vector<8x256xf32> -> vector<8x256xf32>
    %120 = arith.addf %118, %119 : vector<8x256xf32>
    %121 = vector.extract_strided_slice %120 {offsets = [0, 0], sizes = [8, 128], strides = [1, 1]} : vector<8x256xf32> to vector<8x128xf32>
    %122 = vector.extract_strided_slice %121 {offsets = [0, 0], sizes = [8, 96], strides = [1, 1]} : vector<8x128xf32> to vector<8x96xf32>
    %123 = arith.negf %122 : vector<8x96xf32>
    %124 = math.exp %123 : vector<8x96xf32>
    %cst_39 = arith.constant 1.000000e+00 : f32
    %125 = vector.broadcast %cst_39 : f32 to vector<8x96xf32>
    %126 = arith.addf %125, %124 : vector<8x96xf32>
    %127 = arith.divf %125, %126 : vector<8x96xf32>
    %128 = vector.extract_strided_slice %127 {offsets = [0, 0], sizes = [8, 32], strides = [1, 1]} : vector<8x96xf32> to vector<8x32xf32>
    %129 = vector.extract_strided_slice %127 {offsets = [0, 32], sizes = [8, 32], strides = [1, 1]} : vector<8x96xf32> to vector<8x32xf32>
    %130 = vector.extract_strided_slice %127 {offsets = [0, 64], sizes = [8, 32], strides = [1, 1]} : vector<8x96xf32> to vector<8x32xf32>
    %131 = vector.extract_strided_slice %121 {offsets = [0, 96], sizes = [8, 32], strides = [1, 1]} : vector<8x128xf32> to vector<8x32xf32>
    %132 = math.tanh %131 : vector<8x32xf32>
    %133 = arith.mulf %129, %91 : vector<8x32xf32>
    %134 = arith.mulf %128, %132 : vector<8x32xf32>
    %135 = arith.addf %133, %134 : vector<8x32xf32>
    %136 = math.tanh %135 : vector<8x32xf32>
    %137 = arith.mulf %130, %136 : vector<8x32xf32>
    %138 = vector.extract_strided_slice %120 {offsets = [0, 128], sizes = [8, 128], strides = [1, 1]} : vector<8x256xf32> to vector<8x128xf32>
    %139 = vector.extract_strided_slice %138 {offsets = [0, 0], sizes = [8, 96], strides = [1, 1]} : vector<8x128xf32> to vector<8x96xf32>
    %140 = arith.negf %139 : vector<8x96xf32>
    %141 = math.exp %140 : vector<8x96xf32>
    %cst_40 = arith.constant 1.000000e+00 : f32
    %142 = vector.broadcast %cst_40 : f32 to vector<8x96xf32>
    %143 = arith.addf %142, %141 : vector<8x96xf32>
    %144 = arith.divf %142, %143 : vector<8x96xf32>
    %145 = vector.extract_strided_slice %144 {offsets = [0, 0], sizes = [8, 32], strides = [1, 1]} : vector<8x96xf32> to vector<8x32xf32>
    %146 = vector.extract_strided_slice %144 {offsets = [0, 32], sizes = [8, 32], strides = [1, 1]} : vector<8x96xf32> to vector<8x32xf32>
    %147 = vector.extract_strided_slice %144 {offsets = [0, 64], sizes = [8, 32], strides = [1, 1]} : vector<8x96xf32> to vector<8x32xf32>
    %148 = vector.extract_strided_slice %138 {offsets = [0, 96], sizes = [8, 32], strides = [1, 1]} : vector<8x128xf32> to vector<8x32xf32>
    %149 = math.tanh %148 : vector<8x32xf32>
    %150 = arith.mulf %146, %108 : vector<8x32xf32>
    %151 = arith.mulf %145, %149 : vector<8x32xf32>
    %152 = arith.addf %150, %151 : vector<8x32xf32>
    %153 = math.tanh %152 : vector<8x32xf32>
    %154 = arith.mulf %147, %153 : vector<8x32xf32>
    %155 = arith.truncf %137 : vector<8x32xf32> to vector<8x32xbf16>
    %c16_41 = arith.constant 16 : index
    %c0_42 = arith.constant 0 : index
    %156 = vector.load %arg11[%c16_41, %c0_42] : memref<64x64xbf16, #tpu.memory_space<vmem>>, vector<8x32xbf16>
    tpu.vector_store %arg11[%c16_41, %c0_42], %155 {strides = array<i32>} : memref<64x64xbf16, #tpu.memory_space<vmem>>, vector<8x32xbf16>,
    %157 = arith.truncf %154 : vector<8x32xf32> to vector<8x32xbf16>
    %c40_43 = arith.constant 40 : index
    %c32_44 = arith.constant 32 : index
    %158 = vector.load %arg11[%c40_43, %c32_44] : memref<64x64xbf16, #tpu.memory_space<vmem>>, vector<8x32xbf16>
    tpu.vector_store %arg11[%c40_43, %c32_44], %157 {strides = array<i32>} : memref<64x64xbf16, #tpu.memory_space<vmem>>, vector<8x32xbf16>,
    %159 = tpu.concatenate %137, %154 in 1 : vector<8x32xf32>, vector<8x32xf32> -> vector<8x64xf32>
    %160 = arith.truncf %159 : vector<8x64xf32> to vector<8x64xbf16>
    %c24_45 = arith.constant 24 : index
    %c0_46 = arith.constant 0 : index
    %161 = vector.load %arg10[%c24_45, %c0_46] : memref<64x256xbf16, #tpu.memory_space<vmem>>, vector<8x256xbf16>
    %162 = arith.extf %161 : vector<8x256xbf16> to vector<8x256xf32>
    %cst_47 = arith.constant dense<0.000000e+00> : vector<8x256xf32>
    %163 = tpu.matmul %160, %25, %cst_47 {dimension_numbers = #tpu.dot_dimension_numbers<[1], [0], [0], [1], [0, 0, 1, 1], [], []>} : vector<8x64xbf16>, vector<64x256xbf16>, vector<8x256xf32> -> vector<8x256xf32>
    %164 = arith.addf %162, %163 : vector<8x256xf32>
    %165 = vector.extract_strided_slice %164 {offsets = [0, 0], sizes = [8, 128], strides = [1, 1]} : vector<8x256xf32> to vector<8x128xf32>
    %166 = vector.extract_strided_slice %165 {offsets = [0, 0], sizes = [8, 96], strides = [1, 1]} : vector<8x128xf32> to vector<8x96xf32>
    %167 = arith.negf %166 : vector<8x96xf32>
    %168 = math.exp %167 : vector<8x96xf32>
    %cst_48 = arith.constant 1.000000e+00 : f32
    %169 = vector.broadcast %cst_48 : f32 to vector<8x96xf32>
    %170 = arith.addf %169, %168 : vector<8x96xf32>
    %171 = arith.divf %169, %170 : vector<8x96xf32>
    %172 = vector.extract_strided_slice %171 {offsets = [0, 0], sizes = [8, 32], strides = [1, 1]} : vector<8x96xf32> to vector<8x32xf32>
    %173 = vector.extract_strided_slice %171 {offsets = [0, 32], sizes = [8, 32], strides = [1, 1]} : vector<8x96xf32> to vector<8x32xf32>
    %174 = vector.extract_strided_slice %171 {offsets = [0, 64], sizes = [8, 32], strides = [1, 1]} : vector<8x96xf32> to vector<8x32xf32>
    %175 = vector.extract_strided_slice %165 {offsets = [0, 96], sizes = [8, 32], strides = [1, 1]} : vector<8x128xf32> to vector<8x32xf32>
    %176 = math.tanh %175 : vector<8x32xf32>
    %177 = arith.mulf %173, %135 : vector<8x32xf32>
    %178 = arith.mulf %172, %176 : vector<8x32xf32>
    %179 = arith.addf %177, %178 : vector<8x32xf32>
    %180 = math.tanh %179 : vector<8x32xf32>
    %181 = arith.mulf %174, %180 : vector<8x32xf32>
    %182 = vector.extract_strided_slice %164 {offsets = [0, 128], sizes = [8, 128], strides = [1, 1]} : vector<8x256xf32> to vector<8x128xf32>
    %183 = vector.extract_strided_slice %182 {offsets = [0, 0], sizes = [8, 96], strides = [1, 1]} : vector<8x128xf32> to vector<8x96xf32>
    %184 = arith.negf %183 : vector<8x96xf32>
    %185 = math.exp %184 : vector<8x96xf32>
    %cst_49 = arith.constant 1.000000e+00 : f32
    %186 = vector.broadcast %cst_49 : f32 to vector<8x96xf32>
    %187 = arith.addf %186, %185 : vector<8x96xf32>
    %188 = arith.divf %186, %187 : vector<8x96xf32>
    %189 = vector.extract_strided_slice %188 {offsets = [0, 0], sizes = [8, 32], strides = [1, 1]} : vector<8x96xf32> to vector<8x32xf32>
    %190 = vector.extract_strided_slice %188 {offsets = [0, 32], sizes = [8, 32], strides = [1, 1]} : vector<8x96xf32> to vector<8x32xf32>
    %191 = vector.extract_strided_slice %188 {offsets = [0, 64], sizes = [8, 32], strides = [1, 1]} : vector<8x96xf32> to vector<8x32xf32>
    %192 = vector.extract_strided_slice %182 {offsets = [0, 96], sizes = [8, 32], strides = [1, 1]} : vector<8x128xf32> to vector<8x32xf32>
    %193 = math.tanh %192 : vector<8x32xf32>
    %194 = arith.mulf %190, %152 : vector<8x32xf32>
    %195 = arith.mulf %189, %193 : vector<8x32xf32>
    %196 = arith.addf %194, %195 : vector<8x32xf32>
    %197 = math.tanh %196 : vector<8x32xf32>
    %198 = arith.mulf %191, %197 : vector<8x32xf32>
    %199 = arith.truncf %181 : vector<8x32xf32> to vector<8x32xbf16>
    %c24_50 = arith.constant 24 : index
    %c0_51 = arith.constant 0 : index
    %200 = vector.load %arg11[%c24_50, %c0_51] : memref<64x64xbf16, #tpu.memory_space<vmem>>, vector<8x32xbf16>
    tpu.vector_store %arg11[%c24_50, %c0_51], %199 {strides = array<i32>} : memref<64x64xbf16, #tpu.memory_space<vmem>>, vector<8x32xbf16>,
    %201 = arith.truncf %198 : vector<8x32xf32> to vector<8x32xbf16>
    %c32_52 = arith.constant 32 : index
    %c32_53 = arith.constant 32 : index
    %202 = vector.load %arg11[%c32_52, %c32_53] : memref<64x64xbf16, #tpu.memory_space<vmem>>, vector<8x32xbf16>
    tpu.vector_store %arg11[%c32_52, %c32_53], %201 {strides = array<i32>} : memref<64x64xbf16, #tpu.memory_space<vmem>>, vector<8x32xbf16>,
    %203 = tpu.concatenate %181, %198 in 1 : vector<8x32xf32>, vector<8x32xf32> -> vector<8x64xf32>
    %204 = arith.truncf %203 : vector<8x64xf32> to vector<8x64xbf16>
    %c32_54 = arith.constant 32 : index
    %c0_55 = arith.constant 0 : index
    %205 = vector.load %arg10[%c32_54, %c0_55] : memref<64x256xbf16, #tpu.memory_space<vmem>>, vector<8x256xbf16>
    %206 = arith.extf %205 : vector<8x256xbf16> to vector<8x256xf32>
    %cst_56 = arith.constant dense<0.000000e+00> : vector<8x256xf32>
    %207 = tpu.matmul %204, %25, %cst_56 {dimension_numbers = #tpu.dot_dimension_numbers<[1], [0], [0], [1], [0, 0, 1, 1], [], []>} : vector<8x64xbf16>, vector<64x256xbf16>, vector<8x256xf32> -> vector<8x256xf32>
    %208 = arith.addf %206, %207 : vector<8x256xf32>
    %209 = vector.extract_strided_slice %208 {offsets = [0, 0], sizes = [8, 128], strides = [1, 1]} : vector<8x256xf32> to vector<8x128xf32>
    %210 = vector.extract_strided_slice %209 {offsets = [0, 0], sizes = [8, 96], strides = [1, 1]} : vector<8x128xf32> to vector<8x96xf32>
    %211 = arith.negf %210 : vector<8x96xf32>
    %212 = math.exp %211 : vector<8x96xf32>
    %cst_57 = arith.constant 1.000000e+00 : f32
    %213 = vector.broadcast %cst_57 : f32 to vector<8x96xf32>
    %214 = arith.addf %213, %212 : vector<8x96xf32>
    %215 = arith.divf %213, %214 : vector<8x96xf32>
    %216 = vector.extract_strided_slice %215 {offsets = [0, 0], sizes = [8, 32], strides = [1, 1]} : vector<8x96xf32> to vector<8x32xf32>
    %217 = vector.extract_strided_slice %215 {offsets = [0, 32], sizes = [8, 32], strides = [1, 1]} : vector<8x96xf32> to vector<8x32xf32>
    %218 = vector.extract_strided_slice %215 {offsets = [0, 64], sizes = [8, 32], strides = [1, 1]} : vector<8x96xf32> to vector<8x32xf32>
    %219 = vector.extract_strided_slice %209 {offsets = [0, 96], sizes = [8, 32], strides = [1, 1]} : vector<8x128xf32> to vector<8x32xf32>
    %220 = math.tanh %219 : vector<8x32xf32>
    %221 = arith.mulf %217, %179 : vector<8x32xf32>
    %222 = arith.mulf %216, %220 : vector<8x32xf32>
    %223 = arith.addf %221, %222 : vector<8x32xf32>
    %224 = math.tanh %223 : vector<8x32xf32>
    %225 = arith.mulf %218, %224 : vector<8x32xf32>
    %226 = vector.extract_strided_slice %208 {offsets = [0, 128], sizes = [8, 128], strides = [1, 1]} : vector<8x256xf32> to vector<8x128xf32>
    %227 = vector.extract_strided_slice %226 {offsets = [0, 0], sizes = [8, 96], strides = [1, 1]} : vector<8x128xf32> to vector<8x96xf32>
    %228 = arith.negf %227 : vector<8x96xf32>
    %229 = math.exp %228 : vector<8x96xf32>
    %cst_58 = arith.constant 1.000000e+00 : f32
    %230 = vector.broadcast %cst_58 : f32 to vector<8x96xf32>
    %231 = arith.addf %230, %229 : vector<8x96xf32>
    %232 = arith.divf %230, %231 : vector<8x96xf32>
    %233 = vector.extract_strided_slice %232 {offsets = [0, 0], sizes = [8, 32], strides = [1, 1]} : vector<8x96xf32> to vector<8x32xf32>
    %234 = vector.extract_strided_slice %232 {offsets = [0, 32], sizes = [8, 32], strides = [1, 1]} : vector<8x96xf32> to vector<8x32xf32>
    %235 = vector.extract_strided_slice %232 {offsets = [0, 64], sizes = [8, 32], strides = [1, 1]} : vector<8x96xf32> to vector<8x32xf32>
    %236 = vector.extract_strided_slice %226 {offsets = [0, 96], sizes = [8, 32], strides = [1, 1]} : vector<8x128xf32> to vector<8x32xf32>
    %237 = math.tanh %236 : vector<8x32xf32>
    %238 = arith.mulf %234, %196 : vector<8x32xf32>
    %239 = arith.mulf %233, %237 : vector<8x32xf32>
    %240 = arith.addf %238, %239 : vector<8x32xf32>
    %241 = math.tanh %240 : vector<8x32xf32>
    %242 = arith.mulf %235, %241 : vector<8x32xf32>
    %243 = arith.truncf %225 : vector<8x32xf32> to vector<8x32xbf16>
    %c32_59 = arith.constant 32 : index
    %c0_60 = arith.constant 0 : index
    %244 = vector.load %arg11[%c32_59, %c0_60] : memref<64x64xbf16, #tpu.memory_space<vmem>>, vector<8x32xbf16>
    tpu.vector_store %arg11[%c32_59, %c0_60], %243 {strides = array<i32>} : memref<64x64xbf16, #tpu.memory_space<vmem>>, vector<8x32xbf16>,
    %245 = arith.truncf %242 : vector<8x32xf32> to vector<8x32xbf16>
    %c24_61 = arith.constant 24 : index
    %c32_62 = arith.constant 32 : index
    %246 = vector.load %arg11[%c24_61, %c32_62] : memref<64x64xbf16, #tpu.memory_space<vmem>>, vector<8x32xbf16>
    tpu.vector_store %arg11[%c24_61, %c32_62], %245 {strides = array<i32>} : memref<64x64xbf16, #tpu.memory_space<vmem>>, vector<8x32xbf16>,
    %247 = tpu.concatenate %225, %242 in 1 : vector<8x32xf32>, vector<8x32xf32> -> vector<8x64xf32>
    %248 = arith.truncf %247 : vector<8x64xf32> to vector<8x64xbf16>
    %c40_63 = arith.constant 40 : index
    %c0_64 = arith.constant 0 : index
    %249 = vector.load %arg10[%c40_63, %c0_64] : memref<64x256xbf16, #tpu.memory_space<vmem>>, vector<8x256xbf16>
    %250 = arith.extf %249 : vector<8x256xbf16> to vector<8x256xf32>
    %cst_65 = arith.constant dense<0.000000e+00> : vector<8x256xf32>
    %251 = tpu.matmul %248, %25, %cst_65 {dimension_numbers = #tpu.dot_dimension_numbers<[1], [0], [0], [1], [0, 0, 1, 1], [], []>} : vector<8x64xbf16>, vector<64x256xbf16>, vector<8x256xf32> -> vector<8x256xf32>
    %252 = arith.addf %250, %251 : vector<8x256xf32>
    %253 = vector.extract_strided_slice %252 {offsets = [0, 0], sizes = [8, 128], strides = [1, 1]} : vector<8x256xf32> to vector<8x128xf32>
    %254 = vector.extract_strided_slice %253 {offsets = [0, 0], sizes = [8, 96], strides = [1, 1]} : vector<8x128xf32> to vector<8x96xf32>
    %255 = arith.negf %254 : vector<8x96xf32>
    %256 = math.exp %255 : vector<8x96xf32>
    %cst_66 = arith.constant 1.000000e+00 : f32
    %257 = vector.broadcast %cst_66 : f32 to vector<8x96xf32>
    %258 = arith.addf %257, %256 : vector<8x96xf32>
    %259 = arith.divf %257, %258 : vector<8x96xf32>
    %260 = vector.extract_strided_slice %259 {offsets = [0, 0], sizes = [8, 32], strides = [1, 1]} : vector<8x96xf32> to vector<8x32xf32>
    %261 = vector.extract_strided_slice %259 {offsets = [0, 32], sizes = [8, 32], strides = [1, 1]} : vector<8x96xf32> to vector<8x32xf32>
    %262 = vector.extract_strided_slice %259 {offsets = [0, 64], sizes = [8, 32], strides = [1, 1]} : vector<8x96xf32> to vector<8x32xf32>
    %263 = vector.extract_strided_slice %253 {offsets = [0, 96], sizes = [8, 32], strides = [1, 1]} : vector<8x128xf32> to vector<8x32xf32>
    %264 = math.tanh %263 : vector<8x32xf32>
    %265 = arith.mulf %261, %223 : vector<8x32xf32>
    %266 = arith.mulf %260, %264 : vector<8x32xf32>
    %267 = arith.addf %265, %266 : vector<8x32xf32>
    %268 = math.tanh %267 : vector<8x32xf32>
    %269 = arith.mulf %262, %268 : vector<8x32xf32>
    %270 = vector.extract_strided_slice %252 {offsets = [0, 128], sizes = [8, 128], strides = [1, 1]} : vector<8x256xf32> to vector<8x128xf32>
    %271 = vector.extract_strided_slice %270 {offsets = [0, 0], sizes = [8, 96], strides = [1, 1]} : vector<8x128xf32> to vector<8x96xf32>
    %272 = arith.negf %271 : vector<8x96xf32>
    %273 = math.exp %272 : vector<8x96xf32>
    %cst_67 = arith.constant 1.000000e+00 : f32
    %274 = vector.broadcast %cst_67 : f32 to vector<8x96xf32>
    %275 = arith.addf %274, %273 : vector<8x96xf32>
    %276 = arith.divf %274, %275 : vector<8x96xf32>
    %277 = vector.extract_strided_slice %276 {offsets = [0, 0], sizes = [8, 32], strides = [1, 1]} : vector<8x96xf32> to vector<8x32xf32>
    %278 = vector.extract_strided_slice %276 {offsets = [0, 32], sizes = [8, 32], strides = [1, 1]} : vector<8x96xf32> to vector<8x32xf32>
    %279 = vector.extract_strided_slice %276 {offsets = [0, 64], sizes = [8, 32], strides = [1, 1]} : vector<8x96xf32> to vector<8x32xf32>
    %280 = vector.extract_strided_slice %270 {offsets = [0, 96], sizes = [8, 32], strides = [1, 1]} : vector<8x128xf32> to vector<8x32xf32>
    %281 = math.tanh %280 : vector<8x32xf32>
    %282 = arith.mulf %278, %240 : vector<8x32xf32>
    %283 = arith.mulf %277, %281 : vector<8x32xf32>
    %284 = arith.addf %282, %283 : vector<8x32xf32>
    %285 = math.tanh %284 : vector<8x32xf32>
    %286 = arith.mulf %279, %285 : vector<8x32xf32>
    %287 = arith.truncf %269 : vector<8x32xf32> to vector<8x32xbf16>
    %c40_68 = arith.constant 40 : index
    %c0_69 = arith.constant 0 : index
    %288 = vector.load %arg11[%c40_68, %c0_69] : memref<64x64xbf16, #tpu.memory_space<vmem>>, vector<8x32xbf16>
    tpu.vector_store %arg11[%c40_68, %c0_69], %287 {strides = array<i32>} : memref<64x64xbf16, #tpu.memory_space<vmem>>, vector<8x32xbf16>,
    %289 = arith.truncf %286 : vector<8x32xf32> to vector<8x32xbf16>
    %c16_70 = arith.constant 16 : index
    %c32_71 = arith.constant 32 : index
    %290 = vector.load %arg11[%c16_70, %c32_71] : memref<64x64xbf16, #tpu.memory_space<vmem>>, vector<8x32xbf16>
    tpu.vector_store %arg11[%c16_70, %c32_71], %289 {strides = array<i32>} : memref<64x64xbf16, #tpu.memory_space<vmem>>, vector<8x32xbf16>,
    %291 = tpu.concatenate %269, %286 in 1 : vector<8x32xf32>, vector<8x32xf32> -> vector<8x64xf32>
    %292 = arith.truncf %291 : vector<8x64xf32> to vector<8x64xbf16>
    %c48_72 = arith.constant 48 : index
    %c0_73 = arith.constant 0 : index
    %293 = vector.load %arg10[%c48_72, %c0_73] : memref<64x256xbf16, #tpu.memory_space<vmem>>, vector<8x256xbf16>
    %294 = arith.extf %293 : vector<8x256xbf16> to vector<8x256xf32>
    %cst_74 = arith.constant dense<0.000000e+00> : vector<8x256xf32>
    %295 = tpu.matmul %292, %25, %cst_74 {dimension_numbers = #tpu.dot_dimension_numbers<[1], [0], [0], [1], [0, 0, 1, 1], [], []>} : vector<8x64xbf16>, vector<64x256xbf16>, vector<8x256xf32> -> vector<8x256xf32>
    %296 = arith.addf %294, %295 : vector<8x256xf32>
    %297 = vector.extract_strided_slice %296 {offsets = [0, 0], sizes = [8, 128], strides = [1, 1]} : vector<8x256xf32> to vector<8x128xf32>
    %298 = vector.extract_strided_slice %297 {offsets = [0, 0], sizes = [8, 96], strides = [1, 1]} : vector<8x128xf32> to vector<8x96xf32>
    %299 = arith.negf %298 : vector<8x96xf32>
    %300 = math.exp %299 : vector<8x96xf32>
    %cst_75 = arith.constant 1.000000e+00 : f32
    %301 = vector.broadcast %cst_75 : f32 to vector<8x96xf32>
    %302 = arith.addf %301, %300 : vector<8x96xf32>
    %303 = arith.divf %301, %302 : vector<8x96xf32>
    %304 = vector.extract_strided_slice %303 {offsets = [0, 0], sizes = [8, 32], strides = [1, 1]} : vector<8x96xf32> to vector<8x32xf32>
    %305 = vector.extract_strided_slice %303 {offsets = [0, 32], sizes = [8, 32], strides = [1, 1]} : vector<8x96xf32> to vector<8x32xf32>
    %306 = vector.extract_strided_slice %303 {offsets = [0, 64], sizes = [8, 32], strides = [1, 1]} : vector<8x96xf32> to vector<8x32xf32>
    %307 = vector.extract_strided_slice %297 {offsets = [0, 96], sizes = [8, 32], strides = [1, 1]} : vector<8x128xf32> to vector<8x32xf32>
    %308 = math.tanh %307 : vector<8x32xf32>
    %309 = arith.mulf %305, %267 : vector<8x32xf32>
    %310 = arith.mulf %304, %308 : vector<8x32xf32>
    %311 = arith.addf %309, %310 : vector<8x32xf32>
    %312 = math.tanh %311 : vector<8x32xf32>
    %313 = arith.mulf %306, %312 : vector<8x32xf32>
    %314 = vector.extract_strided_slice %296 {offsets = [0, 128], sizes = [8, 128], strides = [1, 1]} : vector<8x256xf32> to vector<8x128xf32>
    %315 = vector.extract_strided_slice %314 {offsets = [0, 0], sizes = [8, 96], strides = [1, 1]} : vector<8x128xf32> to vector<8x96xf32>
    %316 = arith.negf %315 : vector<8x96xf32>
    %317 = math.exp %316 : vector<8x96xf32>
    %cst_76 = arith.constant 1.000000e+00 : f32
    %318 = vector.broadcast %cst_76 : f32 to vector<8x96xf32>
    %319 = arith.addf %318, %317 : vector<8x96xf32>
    %320 = arith.divf %318, %319 : vector<8x96xf32>
    %321 = vector.extract_strided_slice %320 {offsets = [0, 0], sizes = [8, 32], strides = [1, 1]} : vector<8x96xf32> to vector<8x32xf32>
    %322 = vector.extract_strided_slice %320 {offsets = [0, 32], sizes = [8, 32], strides = [1, 1]} : vector<8x96xf32> to vector<8x32xf32>
    %323 = vector.extract_strided_slice %320 {offsets = [0, 64], sizes = [8, 32], strides = [1, 1]} : vector<8x96xf32> to vector<8x32xf32>
    %324 = vector.extract_strided_slice %314 {offsets = [0, 96], sizes = [8, 32], strides = [1, 1]} : vector<8x128xf32> to vector<8x32xf32>
    %325 = math.tanh %324 : vector<8x32xf32>
    %326 = arith.mulf %322, %284 : vector<8x32xf32>
    %327 = arith.mulf %321, %325 : vector<8x32xf32>
    %328 = arith.addf %326, %327 : vector<8x32xf32>
    %329 = math.tanh %328 : vector<8x32xf32>
    %330 = arith.mulf %323, %329 : vector<8x32xf32>
    %331 = arith.truncf %313 : vector<8x32xf32> to vector<8x32xbf16>
    %c48_77 = arith.constant 48 : index
    %c0_78 = arith.constant 0 : index
    %332 = vector.load %arg11[%c48_77, %c0_78] : memref<64x64xbf16, #tpu.memory_space<vmem>>, vector<8x32xbf16>
    tpu.vector_store %arg11[%c48_77, %c0_78], %331 {strides = array<i32>} : memref<64x64xbf16, #tpu.memory_space<vmem>>, vector<8x32xbf16>,
    %333 = arith.truncf %330 : vector<8x32xf32> to vector<8x32xbf16>
    %c8_79 = arith.constant 8 : index
    %c32_80 = arith.constant 32 : index
    %334 = vector.load %arg11[%c8_79, %c32_80] : memref<64x64xbf16, #tpu.memory_space<vmem>>, vector<8x32xbf16>
    tpu.vector_store %arg11[%c8_79, %c32_80], %333 {strides = array<i32>} : memref<64x64xbf16, #tpu.memory_space<vmem>>, vector<8x32xbf16>,
    %335 = tpu.concatenate %313, %330 in 1 : vector<8x32xf32>, vector<8x32xf32> -> vector<8x64xf32>
    %336 = arith.truncf %335 : vector<8x64xf32> to vector<8x64xbf16>
    %c56_81 = arith.constant 56 : index
    %c0_82 = arith.constant 0 : index
    %337 = vector.load %arg10[%c56_81, %c0_82] : memref<64x256xbf16, #tpu.memory_space<vmem>>, vector<8x256xbf16>
    %338 = arith.extf %337 : vector<8x256xbf16> to vector<8x256xf32>
    %cst_83 = arith.constant dense<0.000000e+00> : vector<8x256xf32>
    %339 = tpu.matmul %336, %25, %cst_83 {dimension_numbers = #tpu.dot_dimension_numbers<[1], [0], [0], [1], [0, 0, 1, 1], [], []>} : vector<8x64xbf16>, vector<64x256xbf16>, vector<8x256xf32> -> vector<8x256xf32>
    %340 = arith.addf %338, %339 : vector<8x256xf32>
    %341 = vector.extract_strided_slice %340 {offsets = [0, 0], sizes = [8, 128], strides = [1, 1]} : vector<8x256xf32> to vector<8x128xf32>
    %342 = vector.extract_strided_slice %341 {offsets = [0, 0], sizes = [8, 96], strides = [1, 1]} : vector<8x128xf32> to vector<8x96xf32>
    %343 = arith.negf %342 : vector<8x96xf32>
    %344 = math.exp %343 : vector<8x96xf32>
    %cst_84 = arith.constant 1.000000e+00 : f32
    %345 = vector.broadcast %cst_84 : f32 to vector<8x96xf32>
    %346 = arith.addf %345, %344 : vector<8x96xf32>
    %347 = arith.divf %345, %346 : vector<8x96xf32>
    %348 = vector.extract_strided_slice %347 {offsets = [0, 0], sizes = [8, 32], strides = [1, 1]} : vector<8x96xf32> to vector<8x32xf32>
    %349 = vector.extract_strided_slice %347 {offsets = [0, 32], sizes = [8, 32], strides = [1, 1]} : vector<8x96xf32> to vector<8x32xf32>
    %350 = vector.extract_strided_slice %347 {offsets = [0, 64], sizes = [8, 32], strides = [1, 1]} : vector<8x96xf32> to vector<8x32xf32>
    %351 = vector.extract_strided_slice %341 {offsets = [0, 96], sizes = [8, 32], strides = [1, 1]} : vector<8x128xf32> to vector<8x32xf32>
    %352 = math.tanh %351 : vector<8x32xf32>
    %353 = arith.mulf %349, %311 : vector<8x32xf32>
    %354 = arith.mulf %348, %352 : vector<8x32xf32>
    %355 = arith.addf %353, %354 : vector<8x32xf32>
    %356 = math.tanh %355 : vector<8x32xf32>
    %357 = arith.mulf %350, %356 : vector<8x32xf32>
    %358 = vector.extract_strided_slice %340 {offsets = [0, 128], sizes = [8, 128], strides = [1, 1]} : vector<8x256xf32> to vector<8x128xf32>
    %359 = vector.extract_strided_slice %358 {offsets = [0, 0], sizes = [8, 96], strides = [1, 1]} : vector<8x128xf32> to vector<8x96xf32>
    %360 = arith.negf %359 : vector<8x96xf32>
    %361 = math.exp %360 : vector<8x96xf32>
    %cst_85 = arith.constant 1.000000e+00 : f32
    %362 = vector.broadcast %cst_85 : f32 to vector<8x96xf32>
    %363 = arith.addf %362, %361 : vector<8x96xf32>
    %364 = arith.divf %362, %363 : vector<8x96xf32>
    %365 = vector.extract_strided_slice %364 {offsets = [0, 0], sizes = [8, 32], strides = [1, 1]} : vector<8x96xf32> to vector<8x32xf32>
    %366 = vector.extract_strided_slice %364 {offsets = [0, 32], sizes = [8, 32], strides = [1, 1]} : vector<8x96xf32> to vector<8x32xf32>
    %367 = vector.extract_strided_slice %364 {offsets = [0, 64], sizes = [8, 32], strides = [1, 1]} : vector<8x96xf32> to vector<8x32xf32>
    %368 = vector.extract_strided_slice %358 {offsets = [0, 96], sizes = [8, 32], strides = [1, 1]} : vector<8x128xf32> to vector<8x32xf32>
    %369 = math.tanh %368 : vector<8x32xf32>
    %370 = arith.mulf %366, %328 : vector<8x32xf32>
    %371 = arith.mulf %365, %369 : vector<8x32xf32>
    %372 = arith.addf %370, %371 : vector<8x32xf32>
    %373 = math.tanh %372 : vector<8x32xf32>
    %374 = arith.mulf %367, %373 : vector<8x32xf32>
    %375 = arith.truncf %357 : vector<8x32xf32> to vector<8x32xbf16>
    %c56_86 = arith.constant 56 : index
    %c0_87 = arith.constant 0 : index
    %376 = vector.load %arg11[%c56_86, %c0_87] : memref<64x64xbf16, #tpu.memory_space<vmem>>, vector<8x32xbf16>
    tpu.vector_store %arg11[%c56_86, %c0_87], %375 {strides = array<i32>} : memref<64x64xbf16, #tpu.memory_space<vmem>>, vector<8x32xbf16>,
    %377 = arith.truncf %374 : vector<8x32xf32> to vector<8x32xbf16>
    %c0_88 = arith.constant 0 : index
    %c32_89 = arith.constant 32 : index
    %378 = vector.load %arg11[%c0_88, %c32_89] : memref<64x64xbf16, #tpu.memory_space<vmem>>, vector<8x32xbf16>
    tpu.vector_store %arg11[%c0_88, %c32_89], %377 {strides = array<i32>} : memref<64x64xbf16, #tpu.memory_space<vmem>>, vector<8x32xbf16>,
    %c0_90 = arith.constant 0 : index
    %c0_91 = arith.constant 0 : index
    %379 = vector.load %arg4[%c0_90, %c0_91] : memref<64x256xbf16, #tpu.memory_space<vmem>>, vector<64x256xbf16>
    %c0_92 = arith.constant 0 : index
    %c0_93 = arith.constant 0 : index
    %380 = vector.load %arg6[%c0_92, %c0_93] : memref<1x256xf32, #tpu.memory_space<vmem>>, vector<1x256xf32>
    %c0_94 = arith.constant 0 : index
    %c0_95 = arith.constant 0 : index
    %381 = vector.load %arg11[%c0_94, %c0_95] : memref<64x64xbf16, #tpu.memory_space<vmem>>, vector<64x64xbf16>
    %cst_96 = arith.constant dense<0.000000e+00> : vector<64x256xf32>
    %382 = tpu.matmul %381, %379, %cst_96 {dimension_numbers = #tpu.dot_dimension_numbers<[1], [0], [0], [1], [0, 0, 1, 1], [], []>} : vector<64x64xbf16>, vector<64x256xbf16>, vector<64x256xf32> -> vector<64x256xf32>
    %383 = vector.broadcast %380 : vector<1x256xf32> to vector<64x256xf32>
    %384 = arith.addf %382, %383 : vector<64x256xf32>
    %385 = arith.truncf %384 : vector<64x256xf32> to vector<64x256xbf16>
    %386 = vector.extract_strided_slice %385 {offsets = [0, 0], sizes = [64, 128], strides = [1, 1]} : vector<64x256xbf16> to vector<64x128xbf16>
    %c0_97 = arith.constant 0 : index
    %c0_98 = arith.constant 0 : index
    %387 = vector.load %arg10[%c0_97, %c0_98] : memref<64x256xbf16, #tpu.memory_space<vmem>>, vector<64x128xbf16>
    tpu.vector_store %arg10[%c0_97, %c0_98], %386 {strides = array<i32>} : memref<64x256xbf16, #tpu.memory_space<vmem>>, vector<64x128xbf16>,
    %388 = vector.extract_strided_slice %385 {offsets = [0, 128], sizes = [8, 128], strides = [1, 1]} : vector<64x256xbf16> to vector<8x128xbf16>
    %c56_99 = arith.constant 56 : index
    %c128_100 = arith.constant 128 : index
    %389 = vector.load %arg10[%c56_99, %c128_100] : memref<64x256xbf16, #tpu.memory_space<vmem>>, vector<8x128xbf16>
    tpu.vector_store %arg10[%c56_99, %c128_100], %388 {strides = array<i32>} : memref<64x256xbf16, #tpu.memory_space<vmem>>, vector<8x128xbf16>,
    %390 = vector.extract_strided_slice %385 {offsets = [8, 128], sizes = [8, 128], strides = [1, 1]} : vector<64x256xbf16> to vector<8x128xbf16>
    %c48_101 = arith.constant 48 : index
    %c128_102 = arith.constant 128 : index
    %391 = vector.load %arg10[%c48_101, %c128_102] : memref<64x256xbf16, #tpu.memory_space<vmem>>, vector<8x128xbf16>
    tpu.vector_store %arg10[%c48_101, %c128_102], %390 {strides = array<i32>} : memref<64x256xbf16, #tpu.memory_space<vmem>>, vector<8x128xbf16>,
    %392 = vector.extract_strided_slice %385 {offsets = [16, 128], sizes = [8, 128], strides = [1, 1]} : vector<64x256xbf16> to vector<8x128xbf16>
    %c40_103 = arith.constant 40 : index
    %c128_104 = arith.constant 128 : index
    %393 = vector.load %arg10[%c40_103, %c128_104] : memref<64x256xbf16, #tpu.memory_space<vmem>>, vector<8x128xbf16>
    tpu.vector_store %arg10[%c40_103, %c128_104], %392 {strides = array<i32>} : memref<64x256xbf16, #tpu.memory_space<vmem>>, vector<8x128xbf16>,
    %394 = vector.extract_strided_slice %385 {offsets = [24, 128], sizes = [8, 128], strides = [1, 1]} : vector<64x256xbf16> to vector<8x128xbf16>
    %c32_105 = arith.constant 32 : index
    %c128_106 = arith.constant 128 : index
    %395 = vector.load %arg10[%c32_105, %c128_106] : memref<64x256xbf16, #tpu.memory_space<vmem>>, vector<8x128xbf16>
    tpu.vector_store %arg10[%c32_105, %c128_106], %394 {strides = array<i32>} : memref<64x256xbf16, #tpu.memory_space<vmem>>, vector<8x128xbf16>,
    %396 = vector.extract_strided_slice %385 {offsets = [32, 128], sizes = [8, 128], strides = [1, 1]} : vector<64x256xbf16> to vector<8x128xbf16>
    %c24_107 = arith.constant 24 : index
    %c128_108 = arith.constant 128 : index
    %397 = vector.load %arg10[%c24_107, %c128_108] : memref<64x256xbf16, #tpu.memory_space<vmem>>, vector<8x128xbf16>
    tpu.vector_store %arg10[%c24_107, %c128_108], %396 {strides = array<i32>} : memref<64x256xbf16, #tpu.memory_space<vmem>>, vector<8x128xbf16>,
    %398 = vector.extract_strided_slice %385 {offsets = [40, 128], sizes = [8, 128], strides = [1, 1]} : vector<64x256xbf16> to vector<8x128xbf16>
    %c16_109 = arith.constant 16 : index
    %c128_110 = arith.constant 128 : index
    %399 = vector.load %arg10[%c16_109, %c128_110] : memref<64x256xbf16, #tpu.memory_space<vmem>>, vector<8x128xbf16>
    tpu.vector_store %arg10[%c16_109, %c128_110], %398 {strides = array<i32>} : memref<64x256xbf16, #tpu.memory_space<vmem>>, vector<8x128xbf16>,
    %400 = vector.extract_strided_slice %385 {offsets = [48, 128], sizes = [8, 128], strides = [1, 1]} : vector<64x256xbf16> to vector<8x128xbf16>
    %c8_111 = arith.constant 8 : index
    %c128_112 = arith.constant 128 : index
    %401 = vector.load %arg10[%c8_111, %c128_112] : memref<64x256xbf16, #tpu.memory_space<vmem>>, vector<8x128xbf16>
    tpu.vector_store %arg10[%c8_111, %c128_112], %400 {strides = array<i32>} : memref<64x256xbf16, #tpu.memory_space<vmem>>, vector<8x128xbf16>,
    %402 = vector.extract_strided_slice %385 {offsets = [56, 128], sizes = [8, 128], strides = [1, 1]} : vector<64x256xbf16> to vector<8x128xbf16>
    %c0_113 = arith.constant 0 : index
    %c128_114 = arith.constant 128 : index
    %403 = vector.load %arg10[%c0_113, %c128_114] : memref<64x256xbf16, #tpu.memory_space<vmem>>, vector<8x128xbf16>
    tpu.vector_store %arg10[%c0_113, %c128_114], %402 {strides = array<i32>} : memref<64x256xbf16, #tpu.memory_space<vmem>>, vector<8x128xbf16>,
    %c0_115 = arith.constant 0 : index
    %c0_116 = arith.constant 0 : index
    %404 = vector.load %arg5[%c0_115, %c0_116] : memref<64x256xbf16, #tpu.memory_space<vmem>>, vector<64x256xbf16>
    %cst_117 = arith.constant 0.000000e+00 : f32
    %405 = vector.broadcast %cst_117 : f32 to vector<8x32xf32>
    %406 = tpu.concatenate %405, %405 in 1 : vector<8x32xf32>, vector<8x32xf32> -> vector<8x64xf32>
    %407 = arith.truncf %406 : vector<8x64xf32> to vector<8x64xbf16>
    %c0_118 = arith.constant 0 : index
    %c0_119 = arith.constant 0 : index
    %408 = vector.load %arg10[%c0_118, %c0_119] : memref<64x256xbf16, #tpu.memory_space<vmem>>, vector<8x256xbf16>
    %409 = arith.extf %408 : vector<8x256xbf16> to vector<8x256xf32>
    %cst_120 = arith.constant dense<0.000000e+00> : vector<8x256xf32>
    %410 = tpu.matmul %407, %404, %cst_120 {dimension_numbers = #tpu.dot_dimension_numbers<[1], [0], [0], [1], [0, 0, 1, 1], [], []>} : vector<8x64xbf16>, vector<64x256xbf16>, vector<8x256xf32> -> vector<8x256xf32>
    %411 = arith.addf %409, %410 : vector<8x256xf32>
    %412 = vector.extract_strided_slice %411 {offsets = [0, 0], sizes = [8, 128], strides = [1, 1]} : vector<8x256xf32> to vector<8x128xf32>
    %413 = vector.extract_strided_slice %412 {offsets = [0, 0], sizes = [8, 96], strides = [1, 1]} : vector<8x128xf32> to vector<8x96xf32>
    %414 = arith.negf %413 : vector<8x96xf32>
    %415 = math.exp %414 : vector<8x96xf32>
    %cst_121 = arith.constant 1.000000e+00 : f32
    %416 = vector.broadcast %cst_121 : f32 to vector<8x96xf32>
    %417 = arith.addf %416, %415 : vector<8x96xf32>
    %418 = arith.divf %416, %417 : vector<8x96xf32>
    %419 = vector.extract_strided_slice %418 {offsets = [0, 0], sizes = [8, 32], strides = [1, 1]} : vector<8x96xf32> to vector<8x32xf32>
    %420 = vector.extract_strided_slice %418 {offsets = [0, 32], sizes = [8, 32], strides = [1, 1]} : vector<8x96xf32> to vector<8x32xf32>
    %421 = vector.extract_strided_slice %418 {offsets = [0, 64], sizes = [8, 32], strides = [1, 1]} : vector<8x96xf32> to vector<8x32xf32>
    %422 = vector.extract_strided_slice %412 {offsets = [0, 96], sizes = [8, 32], strides = [1, 1]} : vector<8x128xf32> to vector<8x32xf32>
    %423 = math.tanh %422 : vector<8x32xf32>
    %424 = arith.mulf %420, %405 : vector<8x32xf32>
    %425 = arith.mulf %419, %423 : vector<8x32xf32>
    %426 = arith.addf %424, %425 : vector<8x32xf32>
    %427 = math.tanh %426 : vector<8x32xf32>
    %428 = arith.mulf %421, %427 : vector<8x32xf32>
    %429 = vector.extract_strided_slice %411 {offsets = [0, 128], sizes = [8, 128], strides = [1, 1]} : vector<8x256xf32> to vector<8x128xf32>
    %430 = vector.extract_strided_slice %429 {offsets = [0, 0], sizes = [8, 96], strides = [1, 1]} : vector<8x128xf32> to vector<8x96xf32>
    %431 = arith.negf %430 : vector<8x96xf32>
    %432 = math.exp %431 : vector<8x96xf32>
    %cst_122 = arith.constant 1.000000e+00 : f32
    %433 = vector.broadcast %cst_122 : f32 to vector<8x96xf32>
    %434 = arith.addf %433, %432 : vector<8x96xf32>
    %435 = arith.divf %433, %434 : vector<8x96xf32>
    %436 = vector.extract_strided_slice %435 {offsets = [0, 0], sizes = [8, 32], strides = [1, 1]} : vector<8x96xf32> to vector<8x32xf32>
    %437 = vector.extract_strided_slice %435 {offsets = [0, 32], sizes = [8, 32], strides = [1, 1]} : vector<8x96xf32> to vector<8x32xf32>
    %438 = vector.extract_strided_slice %435 {offsets = [0, 64], sizes = [8, 32], strides = [1, 1]} : vector<8x96xf32> to vector<8x32xf32>
    %439 = vector.extract_strided_slice %429 {offsets = [0, 96], sizes = [8, 32], strides = [1, 1]} : vector<8x128xf32> to vector<8x32xf32>
    %440 = math.tanh %439 : vector<8x32xf32>
    %441 = arith.mulf %437, %405 : vector<8x32xf32>
    %442 = arith.mulf %436, %440 : vector<8x32xf32>
    %443 = arith.addf %441, %442 : vector<8x32xf32>
    %444 = math.tanh %443 : vector<8x32xf32>
    %445 = arith.mulf %438, %444 : vector<8x32xf32>
    %446 = tpu.concatenate %428, %445 in 1 : vector<8x32xf32>, vector<8x32xf32> -> vector<8x64xf32>
    %447 = arith.truncf %446 : vector<8x64xf32> to vector<8x64xbf16>
    %c8_123 = arith.constant 8 : index
    %c0_124 = arith.constant 0 : index
    %448 = vector.load %arg10[%c8_123, %c0_124] : memref<64x256xbf16, #tpu.memory_space<vmem>>, vector<8x256xbf16>
    %449 = arith.extf %448 : vector<8x256xbf16> to vector<8x256xf32>
    %cst_125 = arith.constant dense<0.000000e+00> : vector<8x256xf32>
    %450 = tpu.matmul %447, %404, %cst_125 {dimension_numbers = #tpu.dot_dimension_numbers<[1], [0], [0], [1], [0, 0, 1, 1], [], []>} : vector<8x64xbf16>, vector<64x256xbf16>, vector<8x256xf32> -> vector<8x256xf32>
    %451 = arith.addf %449, %450 : vector<8x256xf32>
    %452 = vector.extract_strided_slice %451 {offsets = [0, 0], sizes = [8, 128], strides = [1, 1]} : vector<8x256xf32> to vector<8x128xf32>
    %453 = vector.extract_strided_slice %452 {offsets = [0, 0], sizes = [8, 96], strides = [1, 1]} : vector<8x128xf32> to vector<8x96xf32>
    %454 = arith.negf %453 : vector<8x96xf32>
    %455 = math.exp %454 : vector<8x96xf32>
    %cst_126 = arith.constant 1.000000e+00 : f32
    %456 = vector.broadcast %cst_126 : f32 to vector<8x96xf32>
    %457 = arith.addf %456, %455 : vector<8x96xf32>
    %458 = arith.divf %456, %457 : vector<8x96xf32>
    %459 = vector.extract_strided_slice %458 {offsets = [0, 0], sizes = [8, 32], strides = [1, 1]} : vector<8x96xf32> to vector<8x32xf32>
    %460 = vector.extract_strided_slice %458 {offsets = [0, 32], sizes = [8, 32], strides = [1, 1]} : vector<8x96xf32> to vector<8x32xf32>
    %461 = vector.extract_strided_slice %458 {offsets = [0, 64], sizes = [8, 32], strides = [1, 1]} : vector<8x96xf32> to vector<8x32xf32>
    %462 = vector.extract_strided_slice %452 {offsets = [0, 96], sizes = [8, 32], strides = [1, 1]} : vector<8x128xf32> to vector<8x32xf32>
    %463 = math.tanh %462 : vector<8x32xf32>
    %464 = arith.mulf %460, %426 : vector<8x32xf32>
    %465 = arith.mulf %459, %463 : vector<8x32xf32>
    %466 = arith.addf %464, %465 : vector<8x32xf32>
    %467 = math.tanh %466 : vector<8x32xf32>
    %468 = arith.mulf %461, %467 : vector<8x32xf32>
    %469 = vector.extract_strided_slice %451 {offsets = [0, 128], sizes = [8, 128], strides = [1, 1]} : vector<8x256xf32> to vector<8x128xf32>
    %470 = vector.extract_strided_slice %469 {offsets = [0, 0], sizes = [8, 96], strides = [1, 1]} : vector<8x128xf32> to vector<8x96xf32>
    %471 = arith.negf %470 : vector<8x96xf32>
    %472 = math.exp %471 : vector<8x96xf32>
    %cst_127 = arith.constant 1.000000e+00 : f32
    %473 = vector.broadcast %cst_127 : f32 to vector<8x96xf32>
    %474 = arith.addf %473, %472 : vector<8x96xf32>
    %475 = arith.divf %473, %474 : vector<8x96xf32>
    %476 = vector.extract_strided_slice %475 {offsets = [0, 0], sizes = [8, 32], strides = [1, 1]} : vector<8x96xf32> to vector<8x32xf32>
    %477 = vector.extract_strided_slice %475 {offsets = [0, 32], sizes = [8, 32], strides = [1, 1]} : vector<8x96xf32> to vector<8x32xf32>
    %478 = vector.extract_strided_slice %475 {offsets = [0, 64], sizes = [8, 32], strides = [1, 1]} : vector<8x96xf32> to vector<8x32xf32>
    %479 = vector.extract_strided_slice %469 {offsets = [0, 96], sizes = [8, 32], strides = [1, 1]} : vector<8x128xf32> to vector<8x32xf32>
    %480 = math.tanh %479 : vector<8x32xf32>
    %481 = arith.mulf %477, %443 : vector<8x32xf32>
    %482 = arith.mulf %476, %480 : vector<8x32xf32>
    %483 = arith.addf %481, %482 : vector<8x32xf32>
    %484 = math.tanh %483 : vector<8x32xf32>
    %485 = arith.mulf %478, %484 : vector<8x32xf32>
    %486 = tpu.concatenate %468, %485 in 1 : vector<8x32xf32>, vector<8x32xf32> -> vector<8x64xf32>
    %487 = arith.truncf %486 : vector<8x64xf32> to vector<8x64xbf16>
    %c16_128 = arith.constant 16 : index
    %c0_129 = arith.constant 0 : index
    %488 = vector.load %arg10[%c16_128, %c0_129] : memref<64x256xbf16, #tpu.memory_space<vmem>>, vector<8x256xbf16>
    %489 = arith.extf %488 : vector<8x256xbf16> to vector<8x256xf32>
    %cst_130 = arith.constant dense<0.000000e+00> : vector<8x256xf32>
    %490 = tpu.matmul %487, %404, %cst_130 {dimension_numbers = #tpu.dot_dimension_numbers<[1], [0], [0], [1], [0, 0, 1, 1], [], []>} : vector<8x64xbf16>, vector<64x256xbf16>, vector<8x256xf32> -> vector<8x256xf32>
    %491 = arith.addf %489, %490 : vector<8x256xf32>
    %492 = vector.extract_strided_slice %491 {offsets = [0, 0], sizes = [8, 128], strides = [1, 1]} : vector<8x256xf32> to vector<8x128xf32>
    %493 = vector.extract_strided_slice %492 {offsets = [0, 0], sizes = [8, 96], strides = [1, 1]} : vector<8x128xf32> to vector<8x96xf32>
    %494 = arith.negf %493 : vector<8x96xf32>
    %495 = math.exp %494 : vector<8x96xf32>
    %cst_131 = arith.constant 1.000000e+00 : f32
    %496 = vector.broadcast %cst_131 : f32 to vector<8x96xf32>
    %497 = arith.addf %496, %495 : vector<8x96xf32>
    %498 = arith.divf %496, %497 : vector<8x96xf32>
    %499 = vector.extract_strided_slice %498 {offsets = [0, 0], sizes = [8, 32], strides = [1, 1]} : vector<8x96xf32> to vector<8x32xf32>
    %500 = vector.extract_strided_slice %498 {offsets = [0, 32], sizes = [8, 32], strides = [1, 1]} : vector<8x96xf32> to vector<8x32xf32>
    %501 = vector.extract_strided_slice %498 {offsets = [0, 64], sizes = [8, 32], strides = [1, 1]} : vector<8x96xf32> to vector<8x32xf32>
    %502 = vector.extract_strided_slice %492 {offsets = [0, 96], sizes = [8, 32], strides = [1, 1]} : vector<8x128xf32> to vector<8x32xf32>
    %503 = math.tanh %502 : vector<8x32xf32>
    %504 = arith.mulf %500, %466 : vector<8x32xf32>
    %505 = arith.mulf %499, %503 : vector<8x32xf32>
    %506 = arith.addf %504, %505 : vector<8x32xf32>
    %507 = math.tanh %506 : vector<8x32xf32>
    %508 = arith.mulf %501, %507 : vector<8x32xf32>
    %509 = vector.extract_strided_slice %491 {offsets = [0, 128], sizes = [8, 128], strides = [1, 1]} : vector<8x256xf32> to vector<8x128xf32>
    %510 = vector.extract_strided_slice %509 {offsets = [0, 0], sizes = [8, 96], strides = [1, 1]} : vector<8x128xf32> to vector<8x96xf32>
    %511 = arith.negf %510 : vector<8x96xf32>
    %512 = math.exp %511 : vector<8x96xf32>
    %cst_132 = arith.constant 1.000000e+00 : f32
    %513 = vector.broadcast %cst_132 : f32 to vector<8x96xf32>
    %514 = arith.addf %513, %512 : vector<8x96xf32>
    %515 = arith.divf %513, %514 : vector<8x96xf32>
    %516 = vector.extract_strided_slice %515 {offsets = [0, 0], sizes = [8, 32], strides = [1, 1]} : vector<8x96xf32> to vector<8x32xf32>
    %517 = vector.extract_strided_slice %515 {offsets = [0, 32], sizes = [8, 32], strides = [1, 1]} : vector<8x96xf32> to vector<8x32xf32>
    %518 = vector.extract_strided_slice %515 {offsets = [0, 64], sizes = [8, 32], strides = [1, 1]} : vector<8x96xf32> to vector<8x32xf32>
    %519 = vector.extract_strided_slice %509 {offsets = [0, 96], sizes = [8, 32], strides = [1, 1]} : vector<8x128xf32> to vector<8x32xf32>
    %520 = math.tanh %519 : vector<8x32xf32>
    %521 = arith.mulf %517, %483 : vector<8x32xf32>
    %522 = arith.mulf %516, %520 : vector<8x32xf32>
    %523 = arith.addf %521, %522 : vector<8x32xf32>
    %524 = math.tanh %523 : vector<8x32xf32>
    %525 = arith.mulf %518, %524 : vector<8x32xf32>
    %526 = tpu.concatenate %508, %525 in 1 : vector<8x32xf32>, vector<8x32xf32> -> vector<8x64xf32>
    %527 = arith.truncf %526 : vector<8x64xf32> to vector<8x64xbf16>
    %c24_133 = arith.constant 24 : index
    %c0_134 = arith.constant 0 : index
    %528 = vector.load %arg10[%c24_133, %c0_134] : memref<64x256xbf16, #tpu.memory_space<vmem>>, vector<8x256xbf16>
    %529 = arith.extf %528 : vector<8x256xbf16> to vector<8x256xf32>
    %cst_135 = arith.constant dense<0.000000e+00> : vector<8x256xf32>
    %530 = tpu.matmul %527, %404, %cst_135 {dimension_numbers = #tpu.dot_dimension_numbers<[1], [0], [0], [1], [0, 0, 1, 1], [], []>} : vector<8x64xbf16>, vector<64x256xbf16>, vector<8x256xf32> -> vector<8x256xf32>
    %531 = arith.addf %529, %530 : vector<8x256xf32>
    %532 = vector.extract_strided_slice %531 {offsets = [0, 0], sizes = [8, 128], strides = [1, 1]} : vector<8x256xf32> to vector<8x128xf32>
    %533 = vector.extract_strided_slice %532 {offsets = [0, 0], sizes = [8, 96], strides = [1, 1]} : vector<8x128xf32> to vector<8x96xf32>
    %534 = arith.negf %533 : vector<8x96xf32>
    %535 = math.exp %534 : vector<8x96xf32>
    %cst_136 = arith.constant 1.000000e+00 : f32
    %536 = vector.broadcast %cst_136 : f32 to vector<8x96xf32>
    %537 = arith.addf %536, %535 : vector<8x96xf32>
    %538 = arith.divf %536, %537 : vector<8x96xf32>
    %539 = vector.extract_strided_slice %538 {offsets = [0, 0], sizes = [8, 32], strides = [1, 1]} : vector<8x96xf32> to vector<8x32xf32>
    %540 = vector.extract_strided_slice %538 {offsets = [0, 32], sizes = [8, 32], strides = [1, 1]} : vector<8x96xf32> to vector<8x32xf32>
    %541 = vector.extract_strided_slice %538 {offsets = [0, 64], sizes = [8, 32], strides = [1, 1]} : vector<8x96xf32> to vector<8x32xf32>
    %542 = vector.extract_strided_slice %532 {offsets = [0, 96], sizes = [8, 32], strides = [1, 1]} : vector<8x128xf32> to vector<8x32xf32>
    %543 = math.tanh %542 : vector<8x32xf32>
    %544 = arith.mulf %540, %506 : vector<8x32xf32>
    %545 = arith.mulf %539, %543 : vector<8x32xf32>
    %546 = arith.addf %544, %545 : vector<8x32xf32>
    %547 = math.tanh %546 : vector<8x32xf32>
    %548 = arith.mulf %541, %547 : vector<8x32xf32>
    %549 = vector.extract_strided_slice %531 {offsets = [0, 128], sizes = [8, 128], strides = [1, 1]} : vector<8x256xf32> to vector<8x128xf32>
    %550 = vector.extract_strided_slice %549 {offsets = [0, 0], sizes = [8, 96], strides = [1, 1]} : vector<8x128xf32> to vector<8x96xf32>
    %551 = arith.negf %550 : vector<8x96xf32>
    %552 = math.exp %551 : vector<8x96xf32>
    %cst_137 = arith.constant 1.000000e+00 : f32
    %553 = vector.broadcast %cst_137 : f32 to vector<8x96xf32>
    %554 = arith.addf %553, %552 : vector<8x96xf32>
    %555 = arith.divf %553, %554 : vector<8x96xf32>
    %556 = vector.extract_strided_slice %555 {offsets = [0, 0], sizes = [8, 32], strides = [1, 1]} : vector<8x96xf32> to vector<8x32xf32>
    %557 = vector.extract_strided_slice %555 {offsets = [0, 32], sizes = [8, 32], strides = [1, 1]} : vector<8x96xf32> to vector<8x32xf32>
    %558 = vector.extract_strided_slice %555 {offsets = [0, 64], sizes = [8, 32], strides = [1, 1]} : vector<8x96xf32> to vector<8x32xf32>
    %559 = vector.extract_strided_slice %549 {offsets = [0, 96], sizes = [8, 32], strides = [1, 1]} : vector<8x128xf32> to vector<8x32xf32>
    %560 = math.tanh %559 : vector<8x32xf32>
    %561 = arith.mulf %557, %523 : vector<8x32xf32>
    %562 = arith.mulf %556, %560 : vector<8x32xf32>
    %563 = arith.addf %561, %562 : vector<8x32xf32>
    %564 = math.tanh %563 : vector<8x32xf32>
    %565 = arith.mulf %558, %564 : vector<8x32xf32>
    %566 = tpu.concatenate %548, %565 in 1 : vector<8x32xf32>, vector<8x32xf32> -> vector<8x64xf32>
    %567 = arith.truncf %566 : vector<8x64xf32> to vector<8x64xbf16>
    %c32_138 = arith.constant 32 : index
    %c0_139 = arith.constant 0 : index
    %568 = vector.load %arg10[%c32_138, %c0_139] : memref<64x256xbf16, #tpu.memory_space<vmem>>, vector<8x256xbf16>
    %569 = arith.extf %568 : vector<8x256xbf16> to vector<8x256xf32>
    %cst_140 = arith.constant dense<0.000000e+00> : vector<8x256xf32>
    %570 = tpu.matmul %567, %404, %cst_140 {dimension_numbers = #tpu.dot_dimension_numbers<[1], [0], [0], [1], [0, 0, 1, 1], [], []>} : vector<8x64xbf16>, vector<64x256xbf16>, vector<8x256xf32> -> vector<8x256xf32>
    %571 = arith.addf %569, %570 : vector<8x256xf32>
    %572 = vector.extract_strided_slice %571 {offsets = [0, 0], sizes = [8, 128], strides = [1, 1]} : vector<8x256xf32> to vector<8x128xf32>
    %573 = vector.extract_strided_slice %572 {offsets = [0, 0], sizes = [8, 96], strides = [1, 1]} : vector<8x128xf32> to vector<8x96xf32>
    %574 = arith.negf %573 : vector<8x96xf32>
    %575 = math.exp %574 : vector<8x96xf32>
    %cst_141 = arith.constant 1.000000e+00 : f32
    %576 = vector.broadcast %cst_141 : f32 to vector<8x96xf32>
    %577 = arith.addf %576, %575 : vector<8x96xf32>
    %578 = arith.divf %576, %577 : vector<8x96xf32>
    %579 = vector.extract_strided_slice %578 {offsets = [0, 0], sizes = [8, 32], strides = [1, 1]} : vector<8x96xf32> to vector<8x32xf32>
    %580 = vector.extract_strided_slice %578 {offsets = [0, 32], sizes = [8, 32], strides = [1, 1]} : vector<8x96xf32> to vector<8x32xf32>
    %581 = vector.extract_strided_slice %578 {offsets = [0, 64], sizes = [8, 32], strides = [1, 1]} : vector<8x96xf32> to vector<8x32xf32>
    %582 = vector.extract_strided_slice %572 {offsets = [0, 96], sizes = [8, 32], strides = [1, 1]} : vector<8x128xf32> to vector<8x32xf32>
    %583 = math.tanh %582 : vector<8x32xf32>
    %584 = arith.mulf %580, %546 : vector<8x32xf32>
    %585 = arith.mulf %579, %583 : vector<8x32xf32>
    %586 = arith.addf %584, %585 : vector<8x32xf32>
    %587 = math.tanh %586 : vector<8x32xf32>
    %588 = arith.mulf %581, %587 : vector<8x32xf32>
    %589 = vector.extract_strided_slice %571 {offsets = [0, 128], sizes = [8, 128], strides = [1, 1]} : vector<8x256xf32> to vector<8x128xf32>
    %590 = vector.extract_strided_slice %589 {offsets = [0, 0], sizes = [8, 96], strides = [1, 1]} : vector<8x128xf32> to vector<8x96xf32>
    %591 = arith.negf %590 : vector<8x96xf32>
    %592 = math.exp %591 : vector<8x96xf32>
    %cst_142 = arith.constant 1.000000e+00 : f32
    %593 = vector.broadcast %cst_142 : f32 to vector<8x96xf32>
    %594 = arith.addf %593, %592 : vector<8x96xf32>
    %595 = arith.divf %593, %594 : vector<8x96xf32>
    %596 = vector.extract_strided_slice %595 {offsets = [0, 0], sizes = [8, 32], strides = [1, 1]} : vector<8x96xf32> to vector<8x32xf32>
    %597 = vector.extract_strided_slice %595 {offsets = [0, 32], sizes = [8, 32], strides = [1, 1]} : vector<8x96xf32> to vector<8x32xf32>
    %598 = vector.extract_strided_slice %595 {offsets = [0, 64], sizes = [8, 32], strides = [1, 1]} : vector<8x96xf32> to vector<8x32xf32>
    %599 = vector.extract_strided_slice %589 {offsets = [0, 96], sizes = [8, 32], strides = [1, 1]} : vector<8x128xf32> to vector<8x32xf32>
    %600 = math.tanh %599 : vector<8x32xf32>
    %601 = arith.mulf %597, %563 : vector<8x32xf32>
    %602 = arith.mulf %596, %600 : vector<8x32xf32>
    %603 = arith.addf %601, %602 : vector<8x32xf32>
    %604 = math.tanh %603 : vector<8x32xf32>
    %605 = arith.mulf %598, %604 : vector<8x32xf32>
    %606 = tpu.concatenate %588, %605 in 1 : vector<8x32xf32>, vector<8x32xf32> -> vector<8x64xf32>
    %607 = arith.truncf %606 : vector<8x64xf32> to vector<8x64xbf16>
    %c40_143 = arith.constant 40 : index
    %c0_144 = arith.constant 0 : index
    %608 = vector.load %arg10[%c40_143, %c0_144] : memref<64x256xbf16, #tpu.memory_space<vmem>>, vector<8x256xbf16>
    %609 = arith.extf %608 : vector<8x256xbf16> to vector<8x256xf32>
    %cst_145 = arith.constant dense<0.000000e+00> : vector<8x256xf32>
    %610 = tpu.matmul %607, %404, %cst_145 {dimension_numbers = #tpu.dot_dimension_numbers<[1], [0], [0], [1], [0, 0, 1, 1], [], []>} : vector<8x64xbf16>, vector<64x256xbf16>, vector<8x256xf32> -> vector<8x256xf32>
    %611 = arith.addf %609, %610 : vector<8x256xf32>
    %612 = vector.extract_strided_slice %611 {offsets = [0, 0], sizes = [8, 128], strides = [1, 1]} : vector<8x256xf32> to vector<8x128xf32>
    %613 = vector.extract_strided_slice %612 {offsets = [0, 0], sizes = [8, 96], strides = [1, 1]} : vector<8x128xf32> to vector<8x96xf32>
    %614 = arith.negf %613 : vector<8x96xf32>
    %615 = math.exp %614 : vector<8x96xf32>
    %cst_146 = arith.constant 1.000000e+00 : f32
    %616 = vector.broadcast %cst_146 : f32 to vector<8x96xf32>
    %617 = arith.addf %616, %615 : vector<8x96xf32>
    %618 = arith.divf %616, %617 : vector<8x96xf32>
    %619 = vector.extract_strided_slice %618 {offsets = [0, 0], sizes = [8, 32], strides = [1, 1]} : vector<8x96xf32> to vector<8x32xf32>
    %620 = vector.extract_strided_slice %618 {offsets = [0, 32], sizes = [8, 32], strides = [1, 1]} : vector<8x96xf32> to vector<8x32xf32>
    %621 = vector.extract_strided_slice %618 {offsets = [0, 64], sizes = [8, 32], strides = [1, 1]} : vector<8x96xf32> to vector<8x32xf32>
    %622 = vector.extract_strided_slice %612 {offsets = [0, 96], sizes = [8, 32], strides = [1, 1]} : vector<8x128xf32> to vector<8x32xf32>
    %623 = math.tanh %622 : vector<8x32xf32>
    %624 = arith.mulf %620, %586 : vector<8x32xf32>
    %625 = arith.mulf %619, %623 : vector<8x32xf32>
    %626 = arith.addf %624, %625 : vector<8x32xf32>
    %627 = math.tanh %626 : vector<8x32xf32>
    %628 = arith.mulf %621, %627 : vector<8x32xf32>
    %629 = vector.extract_strided_slice %611 {offsets = [0, 128], sizes = [8, 128], strides = [1, 1]} : vector<8x256xf32> to vector<8x128xf32>
    %630 = vector.extract_strided_slice %629 {offsets = [0, 0], sizes = [8, 96], strides = [1, 1]} : vector<8x128xf32> to vector<8x96xf32>
    %631 = arith.negf %630 : vector<8x96xf32>
    %632 = math.exp %631 : vector<8x96xf32>
    %cst_147 = arith.constant 1.000000e+00 : f32
    %633 = vector.broadcast %cst_147 : f32 to vector<8x96xf32>
    %634 = arith.addf %633, %632 : vector<8x96xf32>
    %635 = arith.divf %633, %634 : vector<8x96xf32>
    %636 = vector.extract_strided_slice %635 {offsets = [0, 0], sizes = [8, 32], strides = [1, 1]} : vector<8x96xf32> to vector<8x32xf32>
    %637 = vector.extract_strided_slice %635 {offsets = [0, 32], sizes = [8, 32], strides = [1, 1]} : vector<8x96xf32> to vector<8x32xf32>
    %638 = vector.extract_strided_slice %635 {offsets = [0, 64], sizes = [8, 32], strides = [1, 1]} : vector<8x96xf32> to vector<8x32xf32>
    %639 = vector.extract_strided_slice %629 {offsets = [0, 96], sizes = [8, 32], strides = [1, 1]} : vector<8x128xf32> to vector<8x32xf32>
    %640 = math.tanh %639 : vector<8x32xf32>
    %641 = arith.mulf %637, %603 : vector<8x32xf32>
    %642 = arith.mulf %636, %640 : vector<8x32xf32>
    %643 = arith.addf %641, %642 : vector<8x32xf32>
    %644 = math.tanh %643 : vector<8x32xf32>
    %645 = arith.mulf %638, %644 : vector<8x32xf32>
    %646 = tpu.concatenate %628, %645 in 1 : vector<8x32xf32>, vector<8x32xf32> -> vector<8x64xf32>
    %647 = arith.truncf %646 : vector<8x64xf32> to vector<8x64xbf16>
    %c48_148 = arith.constant 48 : index
    %c0_149 = arith.constant 0 : index
    %648 = vector.load %arg10[%c48_148, %c0_149] : memref<64x256xbf16, #tpu.memory_space<vmem>>, vector<8x256xbf16>
    %649 = arith.extf %648 : vector<8x256xbf16> to vector<8x256xf32>
    %cst_150 = arith.constant dense<0.000000e+00> : vector<8x256xf32>
    %650 = tpu.matmul %647, %404, %cst_150 {dimension_numbers = #tpu.dot_dimension_numbers<[1], [0], [0], [1], [0, 0, 1, 1], [], []>} : vector<8x64xbf16>, vector<64x256xbf16>, vector<8x256xf32> -> vector<8x256xf32>
    %651 = arith.addf %649, %650 : vector<8x256xf32>
    %652 = vector.extract_strided_slice %651 {offsets = [0, 0], sizes = [8, 128], strides = [1, 1]} : vector<8x256xf32> to vector<8x128xf32>
    %653 = vector.extract_strided_slice %652 {offsets = [0, 0], sizes = [8, 96], strides = [1, 1]} : vector<8x128xf32> to vector<8x96xf32>
    %654 = arith.negf %653 : vector<8x96xf32>
    %655 = math.exp %654 : vector<8x96xf32>
    %cst_151 = arith.constant 1.000000e+00 : f32
    %656 = vector.broadcast %cst_151 : f32 to vector<8x96xf32>
    %657 = arith.addf %656, %655 : vector<8x96xf32>
    %658 = arith.divf %656, %657 : vector<8x96xf32>
    %659 = vector.extract_strided_slice %658 {offsets = [0, 0], sizes = [8, 32], strides = [1, 1]} : vector<8x96xf32> to vector<8x32xf32>
    %660 = vector.extract_strided_slice %658 {offsets = [0, 32], sizes = [8, 32], strides = [1, 1]} : vector<8x96xf32> to vector<8x32xf32>
    %661 = vector.extract_strided_slice %658 {offsets = [0, 64], sizes = [8, 32], strides = [1, 1]} : vector<8x96xf32> to vector<8x32xf32>
    %662 = vector.extract_strided_slice %652 {offsets = [0, 96], sizes = [8, 32], strides = [1, 1]} : vector<8x128xf32> to vector<8x32xf32>
    %663 = math.tanh %662 : vector<8x32xf32>
    %664 = arith.mulf %660, %626 : vector<8x32xf32>
    %665 = arith.mulf %659, %663 : vector<8x32xf32>
    %666 = arith.addf %664, %665 : vector<8x32xf32>
    %667 = math.tanh %666 : vector<8x32xf32>
    %668 = arith.mulf %661, %667 : vector<8x32xf32>
    %669 = vector.extract_strided_slice %651 {offsets = [0, 128], sizes = [8, 128], strides = [1, 1]} : vector<8x256xf32> to vector<8x128xf32>
    %670 = vector.extract_strided_slice %669 {offsets = [0, 0], sizes = [8, 96], strides = [1, 1]} : vector<8x128xf32> to vector<8x96xf32>
    %671 = arith.negf %670 : vector<8x96xf32>
    %672 = math.exp %671 : vector<8x96xf32>
    %cst_152 = arith.constant 1.000000e+00 : f32
    %673 = vector.broadcast %cst_152 : f32 to vector<8x96xf32>
    %674 = arith.addf %673, %672 : vector<8x96xf32>
    %675 = arith.divf %673, %674 : vector<8x96xf32>
    %676 = vector.extract_strided_slice %675 {offsets = [0, 0], sizes = [8, 32], strides = [1, 1]} : vector<8x96xf32> to vector<8x32xf32>
    %677 = vector.extract_strided_slice %675 {offsets = [0, 32], sizes = [8, 32], strides = [1, 1]} : vector<8x96xf32> to vector<8x32xf32>
    %678 = vector.extract_strided_slice %675 {offsets = [0, 64], sizes = [8, 32], strides = [1, 1]} : vector<8x96xf32> to vector<8x32xf32>
    %679 = vector.extract_strided_slice %669 {offsets = [0, 96], sizes = [8, 32], strides = [1, 1]} : vector<8x128xf32> to vector<8x32xf32>
    %680 = math.tanh %679 : vector<8x32xf32>
    %681 = arith.mulf %677, %643 : vector<8x32xf32>
    %682 = arith.mulf %676, %680 : vector<8x32xf32>
    %683 = arith.addf %681, %682 : vector<8x32xf32>
    %684 = math.tanh %683 : vector<8x32xf32>
    %685 = arith.mulf %678, %684 : vector<8x32xf32>
    %686 = tpu.concatenate %668, %685 in 1 : vector<8x32xf32>, vector<8x32xf32> -> vector<8x64xf32>
    %687 = arith.truncf %686 : vector<8x64xf32> to vector<8x64xbf16>
    %c56_153 = arith.constant 56 : index
    %c0_154 = arith.constant 0 : index
    %688 = vector.load %arg10[%c56_153, %c0_154] : memref<64x256xbf16, #tpu.memory_space<vmem>>, vector<8x256xbf16>
    %689 = arith.extf %688 : vector<8x256xbf16> to vector<8x256xf32>
    %cst_155 = arith.constant dense<0.000000e+00> : vector<8x256xf32>
    %690 = tpu.matmul %687, %404, %cst_155 {dimension_numbers = #tpu.dot_dimension_numbers<[1], [0], [0], [1], [0, 0, 1, 1], [], []>} : vector<8x64xbf16>, vector<64x256xbf16>, vector<8x256xf32> -> vector<8x256xf32>
    %691 = arith.addf %689, %690 : vector<8x256xf32>
    %692 = vector.extract_strided_slice %691 {offsets = [0, 0], sizes = [8, 128], strides = [1, 1]} : vector<8x256xf32> to vector<8x128xf32>
    %693 = vector.extract_strided_slice %692 {offsets = [0, 0], sizes = [8, 96], strides = [1, 1]} : vector<8x128xf32> to vector<8x96xf32>
    %694 = arith.negf %693 : vector<8x96xf32>
    %695 = math.exp %694 : vector<8x96xf32>
    %cst_156 = arith.constant 1.000000e+00 : f32
    %696 = vector.broadcast %cst_156 : f32 to vector<8x96xf32>
    %697 = arith.addf %696, %695 : vector<8x96xf32>
    %698 = arith.divf %696, %697 : vector<8x96xf32>
    %699 = vector.extract_strided_slice %698 {offsets = [0, 0], sizes = [8, 32], strides = [1, 1]} : vector<8x96xf32> to vector<8x32xf32>
    %700 = vector.extract_strided_slice %698 {offsets = [0, 32], sizes = [8, 32], strides = [1, 1]} : vector<8x96xf32> to vector<8x32xf32>
    %701 = vector.extract_strided_slice %698 {offsets = [0, 64], sizes = [8, 32], strides = [1, 1]} : vector<8x96xf32> to vector<8x32xf32>
    %702 = vector.extract_strided_slice %692 {offsets = [0, 96], sizes = [8, 32], strides = [1, 1]} : vector<8x128xf32> to vector<8x32xf32>
    %703 = math.tanh %702 : vector<8x32xf32>
    %704 = arith.mulf %700, %666 : vector<8x32xf32>
    %705 = arith.mulf %699, %703 : vector<8x32xf32>
    %706 = arith.addf %704, %705 : vector<8x32xf32>
    %707 = math.tanh %706 : vector<8x32xf32>
    %708 = arith.mulf %701, %707 : vector<8x32xf32>
    %709 = vector.extract_strided_slice %691 {offsets = [0, 128], sizes = [8, 128], strides = [1, 1]} : vector<8x256xf32> to vector<8x128xf32>
    %710 = vector.extract_strided_slice %709 {offsets = [0, 0], sizes = [8, 96], strides = [1, 1]} : vector<8x128xf32> to vector<8x96xf32>
    %711 = arith.negf %710 : vector<8x96xf32>
    %712 = math.exp %711 : vector<8x96xf32>
    %cst_157 = arith.constant 1.000000e+00 : f32
    %713 = vector.broadcast %cst_157 : f32 to vector<8x96xf32>
    %714 = arith.addf %713, %712 : vector<8x96xf32>
    %715 = arith.divf %713, %714 : vector<8x96xf32>
    %716 = vector.extract_strided_slice %715 {offsets = [0, 0], sizes = [8, 32], strides = [1, 1]} : vector<8x96xf32> to vector<8x32xf32>
    %717 = vector.extract_strided_slice %715 {offsets = [0, 32], sizes = [8, 32], strides = [1, 1]} : vector<8x96xf32> to vector<8x32xf32>
    %718 = vector.extract_strided_slice %715 {offsets = [0, 64], sizes = [8, 32], strides = [1, 1]} : vector<8x96xf32> to vector<8x32xf32>
    %719 = vector.extract_strided_slice %709 {offsets = [0, 96], sizes = [8, 32], strides = [1, 1]} : vector<8x128xf32> to vector<8x32xf32>
    %720 = math.tanh %719 : vector<8x32xf32>
    %721 = arith.mulf %717, %683 : vector<8x32xf32>
    %722 = arith.mulf %716, %720 : vector<8x32xf32>
    %723 = arith.addf %721, %722 : vector<8x32xf32>
    %724 = math.tanh %723 : vector<8x32xf32>
    %725 = arith.mulf %718, %724 : vector<8x32xf32>
    %726 = tpu.concatenate %708, %725 in 1 : vector<8x32xf32>, vector<8x32xf32> -> vector<8x64xf32>
    %727 = arith.truncf %726 : vector<8x64xf32> to vector<8x64xbf16>
    %c0_158 = arith.constant 0 : index
    %c0_159 = arith.constant 0 : index
    %728 = vector.load %arg7[%c0_158, %c0_159] : memref<64x128xbf16, #tpu.memory_space<vmem>>, vector<64x128xbf16>
    %cst_160 = arith.constant dense<0.000000e+00> : vector<8x128xf32>
    %729 = tpu.matmul %727, %728, %cst_160 {dimension_numbers = #tpu.dot_dimension_numbers<[1], [0], [0], [1], [0, 0, 1, 1], [], []>} : vector<8x64xbf16>, vector<64x128xbf16>, vector<8x128xf32> -> vector<8x128xf32>
    %c0_161 = arith.constant 0 : index
    %c0_162 = arith.constant 0 : index
    %730 = vector.load %arg8[%c0_161, %c0_162] : memref<1x128xf32, #tpu.memory_space<vmem>>, vector<1x128xf32>
    %731 = vector.broadcast %730 : vector<1x128xf32> to vector<8x128xf32>
    %732 = arith.addf %729, %731 : vector<8x128xf32>
    %c0_163 = arith.constant 0 : index
    %c0_164 = arith.constant 0 : index
    %733 = vector.load %arg9[%c0_163, %c0_164] : memref<8x128xf32, #tpu.memory_space<vmem>>, vector<8x128xf32>
    tpu.vector_store %arg9[%c0_163, %c0_164], %732 {strides = array<i32>} : memref<8x128xf32, #tpu.memory_space<vmem>>, vector<8x128xf32>,
    return
  }
}

</mosaic_0001>

<llo_original>
// kernel: lstm_model_forward.1
$region0: #{lstm_model_forward.1}
  #allocation0 [shape = 'u32[]', space=smem, size = 0x4, offset = 0x4, fixed_abs, tag = 'smem constant byte address 0x4 - core index']
  #allocation1 [shape = 'u32[144,128]{1,0:T(1,128)}', space=vmem, size = 0x12000, scoped, tag = 'internal scratch']
  #allocation2 [shape = 'bf16[64,256]{1,0:T(16,128)(2,1)}', space=vmem, size = 0x8000, scoped, tag = 'scratch operand']
  #allocation3 [shape = 'bf16[64,64]{1,0:T(16,128)(2,1)}', space=vmem, size = 0x4000, scoped, tag = 'scratch operand']
  %s0 = inlined_call_operand.vmem [shape: bf16[64,32], index: 0, kind: input, shape index: {}]
  %s1 = inlined_call_operand.hbm [shape: bf16[32,256], index: 1, kind: input, shape index: {}]
  %s2 = inlined_call_operand.vmem [shape: bf16[64,256], index: 2, kind: input, shape index: {}]
  %s3 = inlined_call_operand.vmem [shape: f32[1,256], index: 3, kind: input, shape index: {}]
  %s4 = inlined_call_operand.vmem [shape: bf16[64,256], index: 4, kind: input, shape index: {}]
  %s5 = inlined_call_operand.vmem [shape: bf16[64,256], index: 5, kind: input, shape index: {}]
  %s6 = inlined_call_operand.hbm [shape: f32[1,256], index: 6, kind: input, shape index: {}]
  %s7 = inlined_call_operand.vmem [shape: bf16[64,128], index: 7, kind: input, shape index: {}]
  %s8 = inlined_call_operand.vmem [shape: f32[1,128], index: 8, kind: input, shape index: {}]
  %s9 = inlined_call_operand.vmem [shape: f32[8,128], index: 9, kind: output, shape index: {}]
  %s10 = sld [smem:[#allocation0]]
  $region54: #{lstm_model_forward.1} parent=0
    _
  %s12 = ssub.s32 1, %s10
  %s13 = scalar_select 0, %s12, %s10
  $region1: #{lstm_model_forward.1} parent=0
    #allocation4 [shape = 'u8[16384]{0}', space=vmem, size = 0x4000, scoped, tag = 'input window, operand 1, single buffered']
    #allocation5 [shape = 's32[1]{0}', space=sflag, size = 0x4, scoped, tag = 'scoped memory for lstm_model_forward.1']
    #allocation6 [shape = 'u8[1024]{0}', space=vmem, size = 0x400, scoped, tag = 'input window, operand 6, single buffered']
    #allocation7 [shape = 's32[1]{0}', space=sflag, size = 0x4, scoped, tag = 'scoped memory for lstm_model_forward.1']
    %14 = vsyncpa [#allocation5], 0
    %15 = vsyncpa [#allocation7], 0
    // Predicated region
    $region2: #{lstm_model_forward.1} parent=1 // pred_check
      _
    $region3: #{lstm_model_forward.1} parent=1 // pred_check_branch
      %17 = sbr.rel (0) target = $region5
    $region4: #{lstm_model_forward.1} parent=1 // pred_region
      _
    $region5: #{lstm_model_forward.1} parent=1 // pred_fallthru
      _
    // Predicated region
    $region6: #{lstm_model_forward.1} parent=1 // pred_check
      _
    $region7: #{lstm_model_forward.1} parent=1 // pred_check_branch
      %19 = sbr.rel (0) target = $region9
    $region8: #{lstm_model_forward.1} parent=1 // pred_region
      %s21 = ssub.s32 512, 512
      %22 = vsyncadd [#allocation5], %s21
      %s23 = sshll.u32 [#allocation4], 4
      %s24 = int_to_ptr.vmem [resolvable:$true] %s23
      %29 = dma.hbm_to_vmem [thread:$0]  %s1, 512, %s24, [#allocation5], 128, 128, 8
    $region9: #{lstm_model_forward.1} parent=1 // pred_fallthru
      _
    // Predicated region
    $region10: #{lstm_model_forward.1} parent=1 // pred_check
      _
    $region11: #{lstm_model_forward.1} parent=1 // pred_check_branch
      %31 = sbr.rel (0) target = $region13
    $region12: #{lstm_model_forward.1} parent=1 // pred_region
      _
    $region13: #{lstm_model_forward.1} parent=1 // pred_fallthru
      _
    // Predicated region
    $region14: #{lstm_model_forward.1} parent=1 // pred_check
      _
    $region15: #{lstm_model_forward.1} parent=1 // pred_check_branch
      %33 = sbr.rel (0) target = $region17
    $region16: #{lstm_model_forward.1} parent=1 // pred_region
      _
    $region17: #{lstm_model_forward.1} parent=1 // pred_fallthru
      _
    // Predicated region
    $region18: #{lstm_model_forward.1} parent=1 // pred_check
      _
    $region19: #{lstm_model_forward.1} parent=1 // pred_check_branch
      %35 = sbr.rel (0) target = $region21
    $region20: #{lstm_model_forward.1} parent=1 // pred_region
      _
    $region21: #{lstm_model_forward.1} parent=1 // pred_fallthru
      _
    // Predicated region
    $region22: #{lstm_model_forward.1} parent=1 // pred_check
      _
    $region23: #{lstm_model_forward.1} parent=1 // pred_check_branch
      %37 = sbr.rel (0) target = $region25
    $region24: #{lstm_model_forward.1} parent=1 // pred_region
      _
    $region25: #{lstm_model_forward.1} parent=1 // pred_fallthru
      _
    // Predicated region
    $region26: #{lstm_model_forward.1} parent=1 // pred_check
      _
    $region27: #{lstm_model_forward.1} parent=1 // pred_check_branch
      %39 = sbr.rel (0) target = $region29
    $region28: #{lstm_model_forward.1} parent=1 // pred_region
      %s41 = ssub.s32 32, 32
      %42 = vsyncadd [#allocation7], %s41
      %s44 = sshll.u32 [#allocation6], 4
      %s45 = int_to_ptr.vmem [resolvable:$true] %s44
      %47 = dma.hbm_to_vmem [thread:$0]  %s6, 32, %s45, [#allocation7]
    $region29: #{lstm_model_forward.1} parent=1 // pred_fallthru
      _
    // Predicated region
    $region30: #{lstm_model_forward.1} parent=1 // pred_check
      _
    $region31: #{lstm_model_forward.1} parent=1 // pred_check_branch
      %49 = sbr.rel (0) target = $region33
    $region32: #{lstm_model_forward.1} parent=1 // pred_region
      _
    $region33: #{lstm_model_forward.1} parent=1 // pred_fallthru
      _
    // Predicated region
    $region34: #{lstm_model_forward.1} parent=1 // pred_check
      _
    $region35: #{lstm_model_forward.1} parent=1 // pred_check_branch
      %51 = sbr.rel (0) target = $region37
    $region36: #{lstm_model_forward.1} parent=1 // pred_region
      _
    $region37: #{lstm_model_forward.1} parent=1 // pred_fallthru
      _
    // Predicated region
    $region38: #{lstm_model_forward.1} parent=1 // pred_check
      _
    $region39: #{lstm_model_forward.1} parent=1 // pred_check_branch
      %53 = sbr.rel (0) target = $region41
    $region40: #{lstm_model_forward.1} parent=1 // pred_region
      %54 = dma.done [#allocation5], 512
    $region41: #{lstm_model_forward.1} parent=1 // pred_fallthru
      _
    // Predicated region
    $region42: #{lstm_model_forward.1} parent=1 // pred_check
      _
    $region43: #{lstm_model_forward.1} parent=1 // pred_check_branch
      %56 = sbr.rel (0) target = $region45
    $region44: #{lstm_model_forward.1} parent=1 // pred_region
      %57 = dma.done [#allocation7], 32
    $region45: #{lstm_model_forward.1} parent=1 // pred_fallthru
      _
    %v59 = vld [vmem:[#allocation4] sm:$0xff]
    %v60 = vld [vmem:[#allocation4 + $0x8] sm:$0xff]
    %v61 = vld [vmem:[#allocation4 + $0x10] sm:$0xff]
    %v62 = vld [vmem:[#allocation4 + $0x18] sm:$0xff]
    %v63 = vld [vmem:[%s3] sm:$0x3]
    %v64 = vld [vmem:[%s0] sm:$0xf]
    %v65 = vld [vmem:[%s0 + $0x4] sm:$0xf]
    %v66 = vld [vmem:[%s0 + $0x8] sm:$0xf]
    %v67 = vld [vmem:[%s0 + $0xc] sm:$0xf]
    %v68 = vld [vmem:[%s0 + $0x10] sm:$0xf]
    %v69 = vld [vmem:[%s0 + $0x14] sm:$0xf]
    %v70 = vld [vmem:[%s0 + $0x18] sm:$0xf]
    %v71 = vld [vmem:[%s0 + $0x1c] sm:$0xf]
    %v73 = vlaneseq
    %v74 = vshrl.u32 %v73, 7
    %v75 = vsub.s32 0, %v74
    %v76 = vrot.slane %v63, %v75
    %v77 = vlaneseq
    %v78 = vshrl.u32 %v77, 7
    %v79 = vsub.s32 1, %v78
    %v80 = vrot.slane %v63, %v79
    %v91 = vunpack.c.l.b16 %v64
    %v92 = vunpack.c.l.b16 %v65
    %v93 = vunpack.c.l.b16 %v66
    %v94 = vunpack.c.l.b16 %v67
    %v95 = vunpack.c.l.b16 %v68
    %v96 = vunpack.c.l.b16 %v69
    %v97 = vunpack.c.l.b16 %v70
    %v98 = vunpack.c.l.b16 %v71
    %v99 = vpack.c.b16 %v92, %v91
    %v100 = vpack.c.b16 %v94, %v93
    %v101 = vpack.c.b16 %v96, %v95
    %v102 = vpack.c.b16 %v98, %v97
    %v107 = vunpack.c.l.b16 %v59
    %v108 = vunpack.c.h.b16 %v59
    %v109 = vunpack.c.l.b16 %v60
    %v110 = vunpack.c.h.b16 %v60
    %v111 = vunpack.c.l.b16 %v61
    %v112 = vunpack.c.h.b16 %v61
    %v113 = vunpack.c.l.b16 %v62
    %v114 = vunpack.c.h.b16 %v62
    %v115 = vpack.c.b16 %v109, %v107
    %v116 = vpack.c.b16 %v110, %v108
    %v117 = vpack.c.b16 %v113, %v111
    %v118 = vpack.c.b16 %v114, %v112
    %vm123 = vcmask 261120
    %v125 = vsel %vm123, %v99, 0
    %v128 = vsel %vm123, %v100, 0
    %v131 = vsel %vm123, %v101, 0
    %v134 = vsel %vm123, %v102, 0
    %136 = vmatprep.subr.bf16.mxu0 %v116
    %137 = vmatpush1.bf16.msra.mxu0 %v115
    %138 = vmatprep.subr.bf16.mxu0 %v118
    %139 = vmatpush1.bf16.msra.mxu0 %v117
    %140 = vmatprep.subr.bf16.mxu0 0
    %141 = vmatpush1.bf16.msra.mxu0 0
    %142 = vmatprep.subr.bf16.mxu0 0
    %143 = vmatpush1.bf16.msra.mxu0 0
    %144 = vmatprep.subr.bf16.mxu0 0
    %145 = vmatpush1.bf16.msra.mxu0 0
    %146 = vmatprep.subr.bf16.mxu0 0
    %147 = vmatpush1.bf16.msra.mxu0 0
    %148 = vmatprep.subr.bf16.mxu0 0
    %149 = vmatpush1.bf16.msra.mxu0 0
    %150 = vmatprep.subr.bf16.mxu0 0
    %151 = vmatpush1.bf16.msra.mxu0 0
    %152 = vmatprep.subr.bf16.mxu0 0
    %153 = vmatpush1.bf16.msra.mxu0 0
    %154 = vmatprep.subr.bf16.mxu0 0
    %155 = vmatpush1.bf16.msra.mxu0 0
    %156 = vmatprep.subr.bf16.mxu0 0
    %157 = vmatpush1.bf16.msra.mxu0 0
    %158 = vmatprep.subr.bf16.mxu0 0
    %159 = vmatpush1.bf16.msra.mxu0 0
    %160 = vmatprep.subr.bf16.mxu0 0
    %161 = vmatpush1.bf16.msra.mxu0 0
    %162 = vmatprep.subr.bf16.mxu0 0
    %163 = vmatpush1.bf16.msra.mxu0 0
    %164 = vmatprep.subr.bf16.mxu0 0
    %165 = vmatpush1.bf16.msra.mxu0 0
    %166 = vmatprep.subr.bf16.mxu0 0
    %167 = vmatpush1.bf16.msra.mxu0 0
    %168 = vmatprep.mubr.bf16.mxu0 0
    %169 = vmatmul.mubr.bf16.gmra.mrb[0].mxu0 %v125
    %v170 = vpop.f32.mrb[0].mxu0
    %v171 = vadd.f32 %v76, %v170
    %v172 = vpop.f32.mrb[0].mxu0
    %v173 = vadd.f32 %v80, %v172
    %v174 = vpop.f32.mrb[0].mxu0
    %v175 = vadd.f32 %v76, %v174
    %v176 = vpop.f32.mrb[0].mxu0
    %v177 = vadd.f32 %v80, %v176
    %178 = vmatprep.mubr.bf16.mxu0 0
    %179 = vmatmul.mubr.bf16.gmra.mrb[0].mxu0 %v128
    %v180 = vpop.f32.mrb[0].mxu0
    %v181 = vadd.f32 %v76, %v180
    %v182 = vpop.f32.mrb[0].mxu0
    %v183 = vadd.f32 %v80, %v182
    %v184 = vpop.f32.mrb[0].mxu0
    %v185 = vadd.f32 %v76, %v184
    %v186 = vpop.f32.mrb[0].mxu0
    %v187 = vadd.f32 %v80, %v186
    %188 = vmatprep.mubr.bf16.mxu0 0
    %189 = vmatmul.mubr.bf16.gmra.mrb[0].mxu0 %v131
    %v190 = vpop.f32.mrb[0].mxu0
    %v191 = vadd.f32 %v76, %v190
    %v192 = vpop.f32.mrb[0].mxu0
    %v193 = vadd.f32 %v80, %v192
    %v194 = vpop.f32.mrb[0].mxu0
    %v195 = vadd.f32 %v76, %v194
    %v196 = vpop.f32.mrb[0].mxu0
    %v197 = vadd.f32 %v80, %v196
    %198 = vmatprep.mubr.bf16.mxu0 0
    %199 = vmatmul.mubr.bf16.gmra.mrb[0].mxu0 %v134
    %v200 = vpop.f32.mrb[0].mxu0
    %v201 = vadd.f32 %v76, %v200
    %v202 = vpop.f32.mrb[0].mxu0
    %v203 = vadd.f32 %v80, %v202
    %v204 = vpop.f32.mrb[0].mxu0
    %v205 = vadd.f32 %v76, %v204
    %v206 = vpop.f32.mrb[0].mxu0
    %v207 = vadd.f32 %v80, %v206
    %208 = vdwg.mxu0
    %v209 = vpack.c.bf16 %v175, %v171
    %v210 = vpack.c.bf16 %v177, %v173
    %v211 = vpack.c.bf16 %v185, %v181
    %v212 = vpack.c.bf16 %v187, %v183
    %v213 = vpack.c.bf16 %v195, %v191
    %v214 = vpack.c.bf16 %v197, %v193
    %v215 = vpack.c.bf16 %v205, %v201
    %v216 = vpack.c.bf16 %v207, %v203
    %217 = vst [vmem:[#allocation2] sm:$0xff] %v209
    %218 = vst [vmem:[#allocation2 + $0x10] sm:$0xff] %v211
    %219 = vst [vmem:[#allocation2 + $0x20] sm:$0xff] %v213
    %220 = vst [vmem:[#allocation2 + $0x30] sm:$0xff] %v215
    %v222 = vrot.slane %v210, 4
    %224 = vst [vmem:[#allocation2 + $0x38] sm:$0xf0] %v222
    %225 = vst [vmem:[#allocation2 + $0x38] sm:$0xf] %v222
    %v227 = vrot.slane %v212, 4
    %229 = vst [vmem:[#allocation2 + $0x28] sm:$0xf0] %v227
    %230 = vst [vmem:[#allocation2 + $0x28] sm:$0xf] %v227
    %v232 = vrot.slane %v214, 4
    %234 = vst [vmem:[#allocation2 + $0x18] sm:$0xf0] %v232
    %235 = vst [vmem:[#allocation2 + $0x18] sm:$0xf] %v232
    %v237 = vrot.slane %v216, 4
    %239 = vst [vmem:[#allocation2 + $0x8] sm:$0xf0] %v237
    %240 = vst [vmem:[#allocation2 + $0x8] sm:$0xf] %v237
    %v241 = vld [vmem:[%s2] sm:$0xff]
    %v242 = vld [vmem:[%s2 + $0x8] sm:$0xff]
    %v243 = vld [vmem:[%s2 + $0x10] sm:$0xff]
    %v244 = vld [vmem:[%s2 + $0x18] sm:$0xff]
    %v245 = vld [vmem:[%s2 + $0x20] sm:$0xff]
    %v246 = vld [vmem:[%s2 + $0x28] sm:$0xff]
    %v247 = vld [vmem:[%s2 + $0x30] sm:$0xff]
    %v248 = vld [vmem:[%s2 + $0x38] sm:$0xff]
    %v249 = vpack.c.bf16 0.0, 0.0
    %v250 = vld [vmem:[#allocation2] sm:$0xf]
    %v251 = vld [vmem:[#allocation2 + $0x8] sm:$0xf]
    %v252 = vunpack.c.l.bf16 %v250
    %v253 = vunpack.c.l.bf16 %v251
    %v262 = vunpack.c.l.b16 %v241
    %v263 = vunpack.c.h.b16 %v241
    %v264 = vunpack.c.l.b16 %v242
    %v265 = vunpack.c.h.b16 %v242
    %v266 = vunpack.c.l.b16 %v243
    %v267 = vunpack.c.h.b16 %v243
    %v268 = vunpack.c.l.b16 %v244
    %v269 = vunpack.c.h.b16 %v244
    %v270 = vunpack.c.l.b16 %v245
    %v271 = vunpack.c.h.b16 %v245
    %v272 = vunpack.c.l.b16 %v246
    %v273 = vunpack.c.h.b16 %v246
    %v274 = vunpack.c.l.b16 %v247
    %v275 = vunpack.c.h.b16 %v247
    %v276 = vunpack.c.l.b16 %v248
    %v277 = vunpack.c.h.b16 %v248
    %v278 = vpack.c.b16 %v264, %v262
    %v279 = vpack.c.b16 %v265, %v263
    %v280 = vpack.c.b16 %v268, %v266
    %v281 = vpack.c.b16 %v269, %v267
    %v282 = vpack.c.b16 %v272, %v270
    %v283 = vpack.c.b16 %v273, %v271
    %v284 = vpack.c.b16 %v276, %v274
    %v285 = vpack.c.b16 %v277, %v275
    %vm294 = vcmask 523264
    %v296 = vsel %vm294, %v249, 0
    %298 = vmatprep.subr.bf16.mxu0 %v279
    %299 = vmatpush1.bf16.msra.mxu0 %v278
    %300 = vmatprep.subr.bf16.mxu0 %v281
    %301 = vmatpush1.bf16.msra.mxu0 %v280
    %302 = vmatprep.subr.bf16.mxu0 %v283
    %303 = vmatpush1.bf16.msra.mxu0 %v282
    %304 = vmatprep.subr.bf16.mxu0 %v285
    %305 = vmatpush1.bf16.msra.mxu0 %v284
    %306 = vmatprep.subr.bf16.mxu0 0
    %307 = vmatpush1.bf16.msra.mxu0 0
    %308 = vmatprep.subr.bf16.mxu0 0
    %309 = vmatpush1.bf16.msra.mxu0 0
    %310 = vmatprep.subr.bf16.mxu0 0
    %311 = vmatpush1.bf16.msra.mxu0 0
    %312 = vmatprep.subr.bf16.mxu0 0
    %313 = vmatpush1.bf16.msra.mxu0 0
    %314 = vmatprep.subr.bf16.mxu0 0
    %315 = vmatpush1.bf16.msra.mxu0 0
    %316 = vmatprep.subr.bf16.mxu0 0
    %317 = vmatpush1.bf16.msra.mxu0 0
    %318 = vmatprep.subr.bf16.mxu0 0
    %319 = vmatpush1.bf16.msra.mxu0 0
    %320 = vmatprep.subr.bf16.mxu0 0
    %321 = vmatpush1.bf16.msra.mxu0 0
    %322 = vmatprep.subr.bf16.mxu0 0
    %323 = vmatpush1.bf16.msra.mxu0 0
    %324 = vmatprep.subr.bf16.mxu0 0
    %325 = vmatpush1.bf16.msra.mxu0 0
    %326 = vmatprep.subr.bf16.mxu0 0
    %327 = vmatpush1.bf16.msra.mxu0 0
    %328 = vmatprep.subr.bf16.mxu0 0
    %329 = vmatpush1.bf16.msra.mxu0 0
    %330 = vmatprep.mubr.bf16.mxu0 0
    %331 = vmatmul.mubr.bf16.gmra.mrb[0].mxu0 %v296
    %v332 = vpop.f32.mrb[0].mxu0
    %v333 = vadd.f32 0.0, %v332
    %v334 = vpop.f32.mrb[0].mxu0
    %v335 = vadd.f32 0.0, %v334
    %v336 = vpop.f32.mrb[0].mxu0
    %v337 = vpop.f32.mrb[0].mxu0
    %338 = vdwg.mxu0
    %v339 = vadd.f32 %v252, %v333
    %v340 = vadd.f32 %v253, %v335
    %v341 = vxor.u32 %v339, 2147483648
    %v342 = vmul.f32 %v341, 1.442695
    %v343 = vpow.pop %v342
    %v344 = vadd.f32 %v343, 1.0
    %v345 = vrcp.pop %v344
    %v346 = vmul.f32 1.0, %v345
    %v347 = vtanh.pop %v339
    %v348 = vmul.f32 %v346, 0.0
    %350 = vrot.lane.b32.xlu0 %v347, 32
    %v351 = vpop.permute.xlu0 %350
    %v353 = vmul.f32 %v346, %v351
    %355 = vrot.lane.b32.xlu0 %v353, 32
    %v356 = vpop.permute.xlu0 %355
    %v358 = vadd.f32 %v348, %v356
    %v359 = vtanh.pop %v358
    %361 = vrot.lane.b32.xlu0 %v359, 32
    %v362 = vpop.permute.xlu0 %361
    %v364 = vmul.f32 %v346, %v362
    %v365 = vxor.u32 %v340, 2147483648
    %v366 = vmul.f32 %v365, 1.442695
    %v367 = vpow.pop %v366
    %v368 = vadd.f32 %v367, 1.0
    %v369 = vrcp.pop %v368
    %v370 = vmul.f32 1.0, %v369
    %v371 = vtanh.pop %v340
    %v372 = vmul.f32 %v370, 0.0
    %374 = vrot.lane.b32.xlu0 %v371, 32
    %v375 = vpop.permute.xlu0 %374
    %v377 = vmul.f32 %v370, %v375
    %379 = vrot.lane.b32.xlu0 %v377, 32
    %v380 = vpop.permute.xlu0 %379
    %v382 = vadd.f32 %v372, %v380
    %v383 = vtanh.pop %v382
    %385 = vrot.lane.b32.xlu0 %v383, 32
    %v386 = vpop.permute.xlu0 %385
    %v388 = vmul.f32 %v370, %v386
    %v389 = vpack.c.bf16 %v364, %v364
    %391 = vrot.lane.b32.xlu0 %v389, 64
    %v392 = vpop.permute.xlu0 %391
    %vm394 = vcmask 257024
    %395 = vst.msk [vmem:[#allocation3] sm:$0xf] %vm394, %v392
    %v396 = vpack.c.bf16 %v388, %v388
    %v398 = vrot.slane %v396, 4
    %399 = vrot.lane.b32.xlu0 %v398, 96
    %v400 = vpop.permute.xlu0 %399
    %vm402 = vcmask 523524
    %403 = vst.msk [vmem:[#allocation3 + $0x18] sm:$0xf0] %vm402, %v400
    %405 = vrot.lane.b32.xlu0 %v364, 64
    %v406 = vpop.permute.xlu0 %405
    %409 = vrot.lane.b32.xlu0 %v388, 96
    %v410 = vpop.permute.xlu0 %409
    %v412 = vsel %vm123, %v406, %v410
    %v413 = vpack.c.bf16 %v412, %v412
    %v414 = vld [vmem:[#allocation2] sm:$0xf0]
    %v415 = vld [vmem:[#allocation2 + $0x8] sm:$0xf0]
    %v418 = vrot.slane %v414, 4
    %v419 = vrot.slane %v415, 4
    %v422 = vunpack.c.l.bf16 %v418
    %v423 = vunpack.c.l.bf16 %v419
    %v425 = vsel %vm294, %v413, 0
    %427 = vmatprep.subr.bf16.mxu0 %v279
    %428 = vmatpush1.bf16.msra.mxu0 %v278
    %429 = vmatprep.subr.bf16.mxu0 %v281
    %430 = vmatpush1.bf16.msra.mxu0 %v280
    %431 = vmatprep.subr.bf16.mxu0 %v283
    %432 = vmatpush1.bf16.msra.mxu0 %v282
    %433 = vmatprep.subr.bf16.mxu0 %v285
    %434 = vmatpush1.bf16.msra.mxu0 %v284
    %435 = vmatprep.subr.bf16.mxu0 0
    %436 = vmatpush1.bf16.msra.mxu0 0
    %437 = vmatprep.subr.bf16.mxu0 0
    %438 = vmatpush1.bf16.msra.mxu0 0
    %439 = vmatprep.subr.bf16.mxu0 0
    %440 = vmatpush1.bf16.msra.mxu0 0
    %441 = vmatprep.subr.bf16.mxu0 0
    %442 = vmatpush1.bf16.msra.mxu0 0
    %443 = vmatprep.subr.bf16.mxu0 0
    %444 = vmatpush1.bf16.msra.mxu0 0
    %445 = vmatprep.subr.bf16.mxu0 0
    %446 = vmatpush1.bf16.msra.mxu0 0
    %447 = vmatprep.subr.bf16.mxu0 0
    %448 = vmatpush1.bf16.msra.mxu0 0
    %449 = vmatprep.subr.bf16.mxu0 0
    %450 = vmatpush1.bf16.msra.mxu0 0
    %451 = vmatprep.subr.bf16.mxu0 0
    %452 = vmatpush1.bf16.msra.mxu0 0
    %453 = vmatprep.subr.bf16.mxu0 0
    %454 = vmatpush1.bf16.msra.mxu0 0
    %455 = vmatprep.subr.bf16.mxu0 0
    %456 = vmatpush1.bf16.msra.mxu0 0
    %457 = vmatprep.subr.bf16.mxu0 0
    %458 = vmatpush1.bf16.msra.mxu0 0
    %459 = vmatprep.mubr.bf16.mxu0 0
    %460 = vmatmul.mubr.bf16.gmra.mrb[0].mxu0 %v425
    %v461 = vpop.f32.mrb[0].mxu0
    %v462 = vadd.f32 0.0, %v461
    %v463 = vpop.f32.mrb[0].mxu0
    %v464 = vadd.f32 0.0, %v463
    %v465 = vpop.f32.mrb[0].mxu0
    %v466 = vpop.f32.mrb[0].mxu0
    %467 = vdwg.mxu0
    %v468 = vadd.f32 %v422, %v462
    %v469 = vadd.f32 %v423, %v464
    %v470 = vxor.u32 %v468, 2147483648
    %v471 = vmul.f32 %v470, 1.442695
    %v472 = vpow.pop %v471
    %v473 = vadd.f32 %v472, 1.0
    %v474 = vrcp.pop %v473
    %v475 = vmul.f32 1.0, %v474
    %v476 = vtanh.pop %v468
    %v477 = vmul.f32 %v475, %v358
    %479 = vrot.lane.b32.xlu0 %v476, 32
    %v480 = vpop.permute.xlu0 %479
    %v482 = vmul.f32 %v475, %v480
    %484 = vrot.lane.b32.xlu0 %v482, 32
    %v485 = vpop.permute.xlu0 %484
    %v487 = vadd.f32 %v477, %v485
    %v488 = vtanh.pop %v487
    %490 = vrot.lane.b32.xlu0 %v488, 32
    %v491 = vpop.permute.xlu0 %490
    %v493 = vmul.f32 %v475, %v491
    %v494 = vxor.u32 %v469, 2147483648
    %v495 = vmul.f32 %v494, 1.442695
    %v496 = vpow.pop %v495
    %v497 = vadd.f32 %v496, 1.0
    %v498 = vrcp.pop %v497
    %v499 = vmul.f32 1.0, %v498
    %v500 = vtanh.pop %v469
    %v501 = vmul.f32 %v499, %v382
    %503 = vrot.lane.b32.xlu0 %v500, 32
    %v504 = vpop.permute.xlu0 %503
    %v506 = vmul.f32 %v499, %v504
    %508 = vrot.lane.b32.xlu0 %v506, 32
    %v509 = vpop.permute.xlu0 %508
    %v511 = vadd.f32 %v501, %v509
    %v512 = vtanh.pop %v511
    %514 = vrot.lane.b32.xlu0 %v512, 32
    %v515 = vpop.permute.xlu0 %514
    %v517 = vmul.f32 %v499, %v515
    %v518 = vpack.c.bf16 %v493, %v493
    %v520 = vrot.slane %v518, 4
    %521 = vrot.lane.b32.xlu0 %v520, 64
    %v522 = vpop.permute.xlu0 %521
    %vm524 = vcmask 261124
    %525 = vst.msk [vmem:[#allocation3] sm:$0xf0] %vm524, %v522
    %v526 = vpack.c.bf16 %v517, %v517
    %528 = vrot.lane.b32.xlu0 %v526, 96
    %v529 = vpop.permute.xlu0 %528
    %vm531 = vcmask 519424
    %532 = vst.msk [vmem:[#allocation3 + $0x18] sm:$0xf] %vm531, %v529
    %534 = vrot.lane.b32.xlu0 %v493, 64
    %v535 = vpop.permute.xlu0 %534
    %538 = vrot.lane.b32.xlu0 %v517, 96
    %v539 = vpop.permute.xlu0 %538
    %v541 = vsel %vm123, %v535, %v539
    %v542 = vpack.c.bf16 %v541, %v541
    %v543 = vld [vmem:[#allocation2 + $0x10] sm:$0xf]
    %v544 = vld [vmem:[#allocation2 + $0x18] sm:$0xf]
    %v545 = vunpack.c.l.bf16 %v543
    %v546 = vunpack.c.l.bf16 %v544
    %v548 = vsel %vm294, %v542, 0
    %550 = vmatprep.subr.bf16.mxu0 %v279
    %551 = vmatpush1.bf16.msra.mxu0 %v278
    %552 = vmatprep.subr.bf16.mxu0 %v281
    %553 = vmatpush1.bf16.msra.mxu0 %v280
    %554 = vmatprep.subr.bf16.mxu0 %v283
    %555 = vmatpush1.bf16.msra.mxu0 %v282
    %556 = vmatprep.subr.bf16.mxu0 %v285
    %557 = vmatpush1.bf16.msra.mxu0 %v284
    %558 = vmatprep.subr.bf16.mxu0 0
    %559 = vmatpush1.bf16.msra.mxu0 0
    %560 = vmatprep.subr.bf16.mxu0 0
    %561 = vmatpush1.bf16.msra.mxu0 0
    %562 = vmatprep.subr.bf16.mxu0 0
    %563 = vmatpush1.bf16.msra.mxu0 0
    %564 = vmatprep.subr.bf16.mxu0 0
    %565 = vmatpush1.bf16.msra.mxu0 0
    %566 = vmatprep.subr.bf16.mxu0 0
    %567 = vmatpush1.bf16.msra.mxu0 0
    %568 = vmatprep.subr.bf16.mxu0 0
    %569 = vmatpush1.bf16.msra.mxu0 0
    %570 = vmatprep.subr.bf16.mxu0 0
    %571 = vmatpush1.bf16.msra.mxu0 0
    %572 = vmatprep.subr.bf16.mxu0 0
    %573 = vmatpush1.bf16.msra.mxu0 0
    %574 = vmatprep.subr.bf16.mxu0 0
    %575 = vmatpush1.bf16.msra.mxu0 0
    %576 = vmatprep.subr.bf16.mxu0 0
    %577 = vmatpush1.bf16.msra.mxu0 0
    %578 = vmatprep.subr.bf16.mxu0 0
    %579 = vmatpush1.bf16.msra.mxu0 0
    %580 = vmatprep.subr.bf16.mxu0 0
    %581 = vmatpush1.bf16.msra.mxu0 0
    %582 = vmatprep.mubr.bf16.mxu0 0
    %583 = vmatmul.mubr.bf16.gmra.mrb[0].mxu0 %v548
    %v584 = vpop.f32.mrb[0].mxu0
    %v585 = vadd.f32 0.0, %v584
    %v586 = vpop.f32.mrb[0].mxu0
    %v587 = vadd.f32 0.0, %v586
    %v588 = vpop.f32.mrb[0].mxu0
    %v589 = vpop.f32.mrb[0].mxu0
    %590 = vdwg.mxu0
    %v591 = vadd.f32 %v545, %v585
    %v592 = vadd.f32 %v546, %v587
    %v593 = vxor.u32 %v591, 2147483648
    %v594 = vmul.f32 %v593, 1.442695
    %v595 = vpow.pop %v594
    %v596 = vadd.f32 %v595, 1.0
    %v597 = vrcp.pop %v596
    %v598 = vmul.f32 1.0, %v597
    %v599 = vtanh.pop %v591
    %v600 = vmul.f32 %v598, %v487
    %602 = vrot.lane.b32.xlu0 %v599, 32
    %v603 = vpop.permute.xlu0 %602
    %v605 = vmul.f32 %v598, %v603
    %607 = vrot.lane.b32.xlu0 %v605, 32
    %v608 = vpop.permute.xlu0 %607
    %v610 = vadd.f32 %v600, %v608
    %v611 = vtanh.pop %v610
    %613 = vrot.lane.b32.xlu0 %v611, 32
    %v614 = vpop.permute.xlu0 %613
    %v616 = vmul.f32 %v598, %v614
    %v617 = vxor.u32 %v592, 2147483648
    %v618 = vmul.f32 %v617, 1.442695
    %v619 = vpow.pop %v618
    %v620 = vadd.f32 %v619, 1.0
    %v621 = vrcp.pop %v620
    %v622 = vmul.f32 1.0, %v621
    %v623 = vtanh.pop %v592
    %v624 = vmul.f32 %v622, %v511
    %626 = vrot.lane.b32.xlu0 %v623, 32
    %v627 = vpop.permute.xlu0 %626
    %v629 = vmul.f32 %v622, %v627
    %631 = vrot.lane.b32.xlu0 %v629, 32
    %v632 = vpop.permute.xlu0 %631
    %v634 = vadd.f32 %v624, %v632
    %v635 = vtanh.pop %v634
    %637 = vrot.lane.b32.xlu0 %v635, 32
    %v638 = vpop.permute.xlu0 %637
    %v640 = vmul.f32 %v622, %v638
    %v641 = vpack.c.bf16 %v616, %v616
    %643 = vrot.lane.b32.xlu0 %v641, 64
    %v644 = vpop.permute.xlu0 %643
    %646 = vst.msk [vmem:[#allocation3 + $0x8] sm:$0xf] %vm394, %v644
    %v647 = vpack.c.bf16 %v640, %v640
    %v649 = vrot.slane %v647, 4
    %650 = vrot.lane.b32.xlu0 %v649, 96
    %v651 = vpop.permute.xlu0 %650
    %653 = vst.msk [vmem:[#allocation3 + $0x10] sm:$0xf0] %vm402, %v651
    %655 = vrot.lane.b32.xlu0 %v616, 64
    %v656 = vpop.permute.xlu0 %655
    %659 = vrot.lane.b32.xlu0 %v640, 96
    %v660 = vpop.permute.xlu0 %659
    %v662 = vsel %vm123, %v656, %v660
    %v663 = vpack.c.bf16 %v662, %v662
    %v664 = vld [vmem:[#allocation2 + $0x10] sm:$0xf0]
    %v665 = vld [vmem:[#allocation2 + $0x18] sm:$0xf0]
    %v668 = vrot.slane %v664, 4
    %v669 = vrot.slane %v665, 4
    %v672 = vunpack.c.l.bf16 %v668
    %v673 = vunpack.c.l.bf16 %v669
    %v675 = vsel %vm294, %v663, 0
    %677 = vmatprep.subr.bf16.mxu0 %v279
    %678 = vmatpush1.bf16.msra.mxu0 %v278
    %679 = vmatprep.subr.bf16.mxu0 %v281
    %680 = vmatpush1.bf16.msra.mxu0 %v280
    %681 = vmatprep.subr.bf16.mxu0 %v283
    %682 = vmatpush1.bf16.msra.mxu0 %v282
    %683 = vmatprep.subr.bf16.mxu0 %v285
    %684 = vmatpush1.bf16.msra.mxu0 %v284
    %685 = vmatprep.subr.bf16.mxu0 0
    %686 = vmatpush1.bf16.msra.mxu0 0
    %687 = vmatprep.subr.bf16.mxu0 0
    %688 = vmatpush1.bf16.msra.mxu0 0
    %689 = vmatprep.subr.bf16.mxu0 0
    %690 = vmatpush1.bf16.msra.mxu0 0
    %691 = vmatprep.subr.bf16.mxu0 0
    %692 = vmatpush1.bf16.msra.mxu0 0
    %693 = vmatprep.subr.bf16.mxu0 0
    %694 = vmatpush1.bf16.msra.mxu0 0
    %695 = vmatprep.subr.bf16.mxu0 0
    %696 = vmatpush1.bf16.msra.mxu0 0
    %697 = vmatprep.subr.bf16.mxu0 0
    %698 = vmatpush1.bf16.msra.mxu0 0
    %699 = vmatprep.subr.bf16.mxu0 0
    %700 = vmatpush1.bf16.msra.mxu0 0
    %701 = vmatprep.subr.bf16.mxu0 0
    %702 = vmatpush1.bf16.msra.mxu0 0
    %703 = vmatprep.subr.bf16.mxu0 0
    %704 = vmatpush1.bf16.msra.mxu0 0
    %705 = vmatprep.subr.bf16.mxu0 0
    %706 = vmatpush1.bf16.msra.mxu0 0
    %707 = vmatprep.subr.bf16.mxu0 0
    %708 = vmatpush1.bf16.msra.mxu0 0
    %709 = vmatprep.mubr.bf16.mxu0 0
    %710 = vmatmul.mubr.bf16.gmra.mrb[0].mxu0 %v675
    %v711 = vpop.f32.mrb[0].mxu0
    %v712 = vadd.f32 0.0, %v711
    %v713 = vpop.f32.mrb[0].mxu0
    %v714 = vadd.f32 0.0, %v713
    %v715 = vpop.f32.mrb[0].mxu0
    %v716 = vpop.f32.mrb[0].mxu0
    %717 = vdwg.mxu0
    %v718 = vadd.f32 %v672, %v712
    %v719 = vadd.f32 %v673, %v714
    %v720 = vxor.u32 %v718, 2147483648
    %v721 = vmul.f32 %v720, 1.442695
    %v722 = vpow.pop %v721
    %v723 = vadd.f32 %v722, 1.0
    %v724 = vrcp.pop %v723
    %v725 = vmul.f32 1.0, %v724
    %v726 = vtanh.pop %v718
    %v727 = vmul.f32 %v725, %v610
    %729 = vrot.lane.b32.xlu0 %v726, 32
    %v730 = vpop.permute.xlu0 %729
    %v732 = vmul.f32 %v725, %v730
    %734 = vrot.lane.b32.xlu0 %v732, 32
    %v735 = vpop.permute.xlu0 %734
    %v737 = vadd.f32 %v727, %v735
    %v738 = vtanh.pop %v737
    %740 = vrot.lane.b32.xlu0 %v738, 32
    %v741 = vpop.permute.xlu0 %740
    %v743 = vmul.f32 %v725, %v741
    %v744 = vxor.u32 %v719, 2147483648
    %v745 = vmul.f32 %v744, 1.442695
    %v746 = vpow.pop %v745
    %v747 = vadd.f32 %v746, 1.0
    %v748 = vrcp.pop %v747
    %v749 = vmul.f32 1.0, %v748
    %v750 = vtanh.pop %v719
    %v751 = vmul.f32 %v749, %v634
    %753 = vrot.lane.b32.xlu0 %v750, 32
    %v754 = vpop.permute.xlu0 %753
    %v756 = vmul.f32 %v749, %v754
    %758 = vrot.lane.b32.xlu0 %v756, 32
    %v759 = vpop.permute.xlu0 %758
    %v761 = vadd.f32 %v751, %v759
    %v762 = vtanh.pop %v761
    %764 = vrot.lane.b32.xlu0 %v762, 32
    %v765 = vpop.permute.xlu0 %764
    %v767 = vmul.f32 %v749, %v765
    %v768 = vpack.c.bf16 %v743, %v743
    %v770 = vrot.slane %v768, 4
    %771 = vrot.lane.b32.xlu0 %v770, 64
    %v772 = vpop.permute.xlu0 %771
    %774 = vst.msk [vmem:[#allocation3 + $0x8] sm:$0xf0] %vm524, %v772
    %v775 = vpack.c.bf16 %v767, %v767
    %777 = vrot.lane.b32.xlu0 %v775, 96
    %v778 = vpop.permute.xlu0 %777
    %780 = vst.msk [vmem:[#allocation3 + $0x10] sm:$0xf] %vm531, %v778
    %782 = vrot.lane.b32.xlu0 %v743, 64
    %v783 = vpop.permute.xlu0 %782
    %786 = vrot.lane.b32.xlu0 %v767, 96
    %v787 = vpop.permute.xlu0 %786
    %v789 = vsel %vm123, %v783, %v787
    %v790 = vpack.c.bf16 %v789, %v789
    %v791 = vld [vmem:[#allocation2 + $0x20] sm:$0xf]
    %v792 = vld [vmem:[#allocation2 + $0x28] sm:$0xf]
    %v793 = vunpack.c.l.bf16 %v791
    %v794 = vunpack.c.l.bf16 %v792
    %v796 = vsel %vm294, %v790, 0
    %798 = vmatprep.subr.bf16.mxu0 %v279
    %799 = vmatpush1.bf16.msra.mxu0 %v278
    %800 = vmatprep.subr.bf16.mxu0 %v281
    %801 = vmatpush1.bf16.msra.mxu0 %v280
    %802 = vmatprep.subr.bf16.mxu0 %v283
    %803 = vmatpush1.bf16.msra.mxu0 %v282
    %804 = vmatprep.subr.bf16.mxu0 %v285
    %805 = vmatpush1.bf16.msra.mxu0 %v284
    %806 = vmatprep.subr.bf16.mxu0 0
    %807 = vmatpush1.bf16.msra.mxu0 0
    %808 = vmatprep.subr.bf16.mxu0 0
    %809 = vmatpush1.bf16.msra.mxu0 0
    %810 = vmatprep.subr.bf16.mxu0 0
    %811 = vmatpush1.bf16.msra.mxu0 0
    %812 = vmatprep.subr.bf16.mxu0 0
    %813 = vmatpush1.bf16.msra.mxu0 0
    %814 = vmatprep.subr.bf16.mxu0 0
    %815 = vmatpush1.bf16.msra.mxu0 0
    %816 = vmatprep.subr.bf16.mxu0 0
    %817 = vmatpush1.bf16.msra.mxu0 0
    %818 = vmatprep.subr.bf16.mxu0 0
    %819 = vmatpush1.bf16.msra.mxu0 0
    %820 = vmatprep.subr.bf16.mxu0 0
    %821 = vmatpush1.bf16.msra.mxu0 0
    %822 = vmatprep.subr.bf16.mxu0 0
    %823 = vmatpush1.bf16.msra.mxu0 0
    %824 = vmatprep.subr.bf16.mxu0 0
    %825 = vmatpush1.bf16.msra.mxu0 0
    %826 = vmatprep.subr.bf16.mxu0 0
    %827 = vmatpush1.bf16.msra.mxu0 0
    %828 = vmatprep.subr.bf16.mxu0 0
    %829 = vmatpush1.bf16.msra.mxu0 0
    %830 = vmatprep.mubr.bf16.mxu0 0
    %831 = vmatmul.mubr.bf16.gmra.mrb[0].mxu0 %v796
    %v832 = vpop.f32.mrb[0].mxu0
    %v833 = vadd.f32 0.0, %v832
    %v834 = vpop.f32.mrb[0].mxu0
    %v835 = vadd.f32 0.0, %v834
    %v836 = vpop.f32.mrb[0].mxu0
    %v837 = vpop.f32.mrb[0].mxu0
    %838 = vdwg.mxu0
    %v839 = vadd.f32 %v793, %v833
    %v840 = vadd.f32 %v794, %v835
    %v841 = vxor.u32 %v839, 2147483648
    %v842 = vmul.f32 %v841, 1.442695
    %v843 = vpow.pop %v842
    %v844 = vadd.f32 %v843, 1.0
    %v845 = vrcp.pop %v844
    %v846 = vmul.f32 1.0, %v845
    %v847 = vtanh.pop %v839
    %v848 = vmul.f32 %v846, %v737
    %850 = vrot.lane.b32.xlu0 %v847, 32
    %v851 = vpop.permute.xlu0 %850
    %v853 = vmul.f32 %v846, %v851
    %855 = vrot.lane.b32.xlu0 %v853, 32
    %v856 = vpop.permute.xlu0 %855
    %v858 = vadd.f32 %v848, %v856
    %v859 = vtanh.pop %v858
    %861 = vrot.lane.b32.xlu0 %v859, 32
    %v862 = vpop.permute.xlu0 %861
    %v864 = vmul.f32 %v846, %v862
    %v865 = vxor.u32 %v840, 2147483648
    %v866 = vmul.f32 %v865, 1.442695
    %v867 = vpow.pop %v866
    %v868 = vadd.f32 %v867, 1.0
    %v869 = vrcp.pop %v868
    %v870 = vmul.f32 1.0, %v869
    %v871 = vtanh.pop %v840
    %v872 = vmul.f32 %v870, %v761
    %874 = vrot.lane.b32.xlu0 %v871, 32
    %v875 = vpop.permute.xlu0 %874
    %v877 = vmul.f32 %v870, %v875
    %879 = vrot.lane.b32.xlu0 %v877, 32
    %v880 = vpop.permute.xlu0 %879
    %v882 = vadd.f32 %v872, %v880
    %v883 = vtanh.pop %v882
    %885 = vrot.lane.b32.xlu0 %v883, 32
    %v886 = vpop.permute.xlu0 %885
    %v888 = vmul.f32 %v870, %v886
    %v889 = vpack.c.bf16 %v864, %v864
    %891 = vrot.lane.b32.xlu0 %v889, 64
    %v892 = vpop.permute.xlu0 %891
    %894 = vst.msk [vmem:[#allocation3 + $0x10] sm:$0xf] %vm394, %v892
    %v895 = vpack.c.bf16 %v888, %v888
    %v897 = vrot.slane %v895, 4
    %898 = vrot.lane.b32.xlu0 %v897, 96
    %v899 = vpop.permute.xlu0 %898
    %901 = vst.msk [vmem:[#allocation3 + $0x8] sm:$0xf0] %vm402, %v899
    %903 = vrot.lane.b32.xlu0 %v864, 64
    %v904 = vpop.permute.xlu0 %903
    %907 = vrot.lane.b32.xlu0 %v888, 96
    %v908 = vpop.permute.xlu0 %907
    %v910 = vsel %vm123, %v904, %v908
    %v911 = vpack.c.bf16 %v910, %v910
    %v912 = vld [vmem:[#allocation2 + $0x20] sm:$0xf0]
    %v913 = vld [vmem:[#allocation2 + $0x28] sm:$0xf0]
    %v916 = vrot.slane %v912, 4
    %v917 = vrot.slane %v913, 4
    %v920 = vunpack.c.l.bf16 %v916
    %v921 = vunpack.c.l.bf16 %v917
    %v923 = vsel %vm294, %v911, 0
    %925 = vmatprep.subr.bf16.mxu0 %v279
    %926 = vmatpush1.bf16.msra.mxu0 %v278
    %927 = vmatprep.subr.bf16.mxu0 %v281
    %928 = vmatpush1.bf16.msra.mxu0 %v280
    %929 = vmatprep.subr.bf16.mxu0 %v283
    %930 = vmatpush1.bf16.msra.mxu0 %v282
    %931 = vmatprep.subr.bf16.mxu0 %v285
    %932 = vmatpush1.bf16.msra.mxu0 %v284
    %933 = vmatprep.subr.bf16.mxu0 0
    %934 = vmatpush1.bf16.msra.mxu0 0
    %935 = vmatprep.subr.bf16.mxu0 0
    %936 = vmatpush1.bf16.msra.mxu0 0
    %937 = vmatprep.subr.bf16.mxu0 0
    %938 = vmatpush1.bf16.msra.mxu0 0
    %939 = vmatprep.subr.bf16.mxu0 0
    %940 = vmatpush1.bf16.msra.mxu0 0
    %941 = vmatprep.subr.bf16.mxu0 0
    %942 = vmatpush1.bf16.msra.mxu0 0
    %943 = vmatprep.subr.bf16.mxu0 0
    %944 = vmatpush1.bf16.msra.mxu0 0
    %945 = vmatprep.subr.bf16.mxu0 0
    %946 = vmatpush1.bf16.msra.mxu0 0
    %947 = vmatprep.subr.bf16.mxu0 0
    %948 = vmatpush1.bf16.msra.mxu0 0
    %949 = vmatprep.subr.bf16.mxu0 0
    %950 = vmatpush1.bf16.msra.mxu0 0
    %951 = vmatprep.subr.bf16.mxu0 0
    %952 = vmatpush1.bf16.msra.mxu0 0
    %953 = vmatprep.subr.bf16.mxu0 0
    %954 = vmatpush1.bf16.msra.mxu0 0
    %955 = vmatprep.subr.bf16.mxu0 0
    %956 = vmatpush1.bf16.msra.mxu0 0
    %957 = vmatprep.mubr.bf16.mxu0 0
    %958 = vmatmul.mubr.bf16.gmra.mrb[0].mxu0 %v923
    %v959 = vpop.f32.mrb[0].mxu0
    %v960 = vadd.f32 0.0, %v959
    %v961 = vpop.f32.mrb[0].mxu0
    %v962 = vadd.f32 0.0, %v961
    %v963 = vpop.f32.mrb[0].mxu0
    %v964 = vpop.f32.mrb[0].mxu0
    %965 = vdwg.mxu0
    %v966 = vadd.f32 %v920, %v960
    %v967 = vadd.f32 %v921, %v962
    %v968 = vxor.u32 %v966, 2147483648
    %v969 = vmul.f32 %v968, 1.442695
    %v970 = vpow.pop %v969
    %v971 = vadd.f32 %v970, 1.0
    %v972 = vrcp.pop %v971
    %v973 = vmul.f32 1.0, %v972
    %v974 = vtanh.pop %v966
    %v975 = vmul.f32 %v973, %v858
    %977 = vrot.lane.b32.xlu0 %v974, 32
    %v978 = vpop.permute.xlu0 %977
    %v980 = vmul.f32 %v973, %v978
    %982 = vrot.lane.b32.xlu0 %v980, 32
    %v983 = vpop.permute.xlu0 %982
    %v985 = vadd.f32 %v975, %v983
    %v986 = vtanh.pop %v985
    %988 = vrot.lane.b32.xlu0 %v986, 32
    %v989 = vpop.permute.xlu0 %988
    %v991 = vmul.f32 %v973, %v989
    %v992 = vxor.u32 %v967, 2147483648
    %v993 = vmul.f32 %v992, 1.442695
    %v994 = vpow.pop %v993
    %v995 = vadd.f32 %v994, 1.0
    %v996 = vrcp.pop %v995
    %v997 = vmul.f32 1.0, %v996
    %v998 = vtanh.pop %v967
    %v999 = vmul.f32 %v997, %v882
    %1001 = vrot.lane.b32.xlu0 %v998, 32
    %v1002 = vpop.permute.xlu0 %1001
    %v1004 = vmul.f32 %v997, %v1002
    %1006 = vrot.lane.b32.xlu0 %v1004, 32
    %v1007 = vpop.permute.xlu0 %1006
    %v1009 = vadd.f32 %v999, %v1007
    %v1010 = vtanh.pop %v1009
    %1012 = vrot.lane.b32.xlu0 %v1010, 32
    %v1013 = vpop.permute.xlu0 %1012
    %v1015 = vmul.f32 %v997, %v1013
    %v1016 = vpack.c.bf16 %v991, %v991
    %v1018 = vrot.slane %v1016, 4
    %1019 = vrot.lane.b32.xlu0 %v1018, 64
    %v1020 = vpop.permute.xlu0 %1019
    %1022 = vst.msk [vmem:[#allocation3 + $0x10] sm:$0xf0] %vm524, %v1020
    %v1023 = vpack.c.bf16 %v1015, %v1015
    %1025 = vrot.lane.b32.xlu0 %v1023, 96
    %v1026 = vpop.permute.xlu0 %1025
    %1028 = vst.msk [vmem:[#allocation3 + $0x8] sm:$0xf] %vm531, %v1026
    %1030 = vrot.lane.b32.xlu0 %v991, 64
    %v1031 = vpop.permute.xlu0 %1030
    %1034 = vrot.lane.b32.xlu0 %v1015, 96
    %v1035 = vpop.permute.xlu0 %1034
    %v1037 = vsel %vm123, %v1031, %v1035
    %v1038 = vpack.c.bf16 %v1037, %v1037
    %v1039 = vld [vmem:[#allocation2 + $0x30] sm:$0xf]
    %v1040 = vld [vmem:[#allocation2 + $0x38] sm:$0xf]
    %v1041 = vunpack.c.l.bf16 %v1039
    %v1042 = vunpack.c.l.bf16 %v1040
    %v1044 = vsel %vm294, %v1038, 0
    %1046 = vmatprep.subr.bf16.mxu0 %v279
    %1047 = vmatpush1.bf16.msra.mxu0 %v278
    %1048 = vmatprep.subr.bf16.mxu0 %v281
    %1049 = vmatpush1.bf16.msra.mxu0 %v280
    %1050 = vmatprep.subr.bf16.mxu0 %v283
    %1051 = vmatpush1.bf16.msra.mxu0 %v282
    %1052 = vmatprep.subr.bf16.mxu0 %v285
    %1053 = vmatpush1.bf16.msra.mxu0 %v284
    %1054 = vmatprep.subr.bf16.mxu0 0
    %1055 = vmatpush1.bf16.msra.mxu0 0
    %1056 = vmatprep.subr.bf16.mxu0 0
    %1057 = vmatpush1.bf16.msra.mxu0 0
    %1058 = vmatprep.subr.bf16.mxu0 0
    %1059 = vmatpush1.bf16.msra.mxu0 0
    %1060 = vmatprep.subr.bf16.mxu0 0
    %1061 = vmatpush1.bf16.msra.mxu0 0
    %1062 = vmatprep.subr.bf16.mxu0 0
    %1063 = vmatpush1.bf16.msra.mxu0 0
    %1064 = vmatprep.subr.bf16.mxu0 0
    %1065 = vmatpush1.bf16.msra.mxu0 0
    %1066 = vmatprep.subr.bf16.mxu0 0
    %1067 = vmatpush1.bf16.msra.mxu0 0
    %1068 = vmatprep.subr.bf16.mxu0 0
    %1069 = vmatpush1.bf16.msra.mxu0 0
    %1070 = vmatprep.subr.bf16.mxu0 0
    %1071 = vmatpush1.bf16.msra.mxu0 0
    %1072 = vmatprep.subr.bf16.mxu0 0
    %1073 = vmatpush1.bf16.msra.mxu0 0
    %1074 = vmatprep.subr.bf16.mxu0 0
    %1075 = vmatpush1.bf16.msra.mxu0 0
    %1076 = vmatprep.subr.bf16.mxu0 0
    %1077 = vmatpush1.bf16.msra.mxu0 0
    %1078 = vmatprep.mubr.bf16.mxu0 0
    %1079 = vmatmul.mubr.bf16.gmra.mrb[0].mxu0 %v1044
    %v1080 = vpop.f32.mrb[0].mxu0
    %v1081 = vadd.f32 0.0, %v1080
    %v1082 = vpop.f32.mrb[0].mxu0
    %v1083 = vadd.f32 0.0, %v1082
    %v1084 = vpop.f32.mrb[0].mxu0
    %v1085 = vpop.f32.mrb[0].mxu0
    %1086 = vdwg.mxu0
    %v1087 = vadd.f32 %v1041, %v1081
    %v1088 = vadd.f32 %v1042, %v1083
    %v1089 = vxor.u32 %v1087, 2147483648
    %v1090 = vmul.f32 %v1089, 1.442695
    %v1091 = vpow.pop %v1090
    %v1092 = vadd.f32 %v1091, 1.0
    %v1093 = vrcp.pop %v1092
    %v1094 = vmul.f32 1.0, %v1093
    %v1095 = vtanh.pop %v1087
    %v1096 = vmul.f32 %v1094, %v985
    %1098 = vrot.lane.b32.xlu0 %v1095, 32
    %v1099 = vpop.permute.xlu0 %1098
    %v1101 = vmul.f32 %v1094, %v1099
    %1103 = vrot.lane.b32.xlu0 %v1101, 32
    %v1104 = vpop.permute.xlu0 %1103
    %v1106 = vadd.f32 %v1096, %v1104
    %v1107 = vtanh.pop %v1106
    %1109 = vrot.lane.b32.xlu0 %v1107, 32
    %v1110 = vpop.permute.xlu0 %1109
    %v1112 = vmul.f32 %v1094, %v1110
    %v1113 = vxor.u32 %v1088, 2147483648
    %v1114 = vmul.f32 %v1113, 1.442695
    %v1115 = vpow.pop %v1114
    %v1116 = vadd.f32 %v1115, 1.0
    %v1117 = vrcp.pop %v1116
    %v1118 = vmul.f32 1.0, %v1117
    %v1119 = vtanh.pop %v1088
    %v1120 = vmul.f32 %v1118, %v1009
    %1122 = vrot.lane.b32.xlu0 %v1119, 32
    %v1123 = vpop.permute.xlu0 %1122
    %v1125 = vmul.f32 %v1118, %v1123
    %1127 = vrot.lane.b32.xlu0 %v1125, 32
    %v1128 = vpop.permute.xlu0 %1127
    %v1130 = vadd.f32 %v1120, %v1128
    %v1131 = vtanh.pop %v1130
    %1133 = vrot.lane.b32.xlu0 %v1131, 32
    %v1134 = vpop.permute.xlu0 %1133
    %v1136 = vmul.f32 %v1118, %v1134
    %v1137 = vpack.c.bf16 %v1112, %v1112
    %1139 = vrot.lane.b32.xlu0 %v1137, 64
    %v1140 = vpop.permute.xlu0 %1139
    %1142 = vst.msk [vmem:[#allocation3 + $0x18] sm:$0xf] %vm394, %v1140
    %v1143 = vpack.c.bf16 %v1136, %v1136
    %v1145 = vrot.slane %v1143, 4
    %1146 = vrot.lane.b32.xlu0 %v1145, 96
    %v1147 = vpop.permute.xlu0 %1146
    %1149 = vst.msk [vmem:[#allocation3] sm:$0xf0] %vm402, %v1147
    %1151 = vrot.lane.b32.xlu0 %v1112, 64
    %v1152 = vpop.permute.xlu0 %1151
    %1155 = vrot.lane.b32.xlu0 %v1136, 96
    %v1156 = vpop.permute.xlu0 %1155
    %v1158 = vsel %vm123, %v1152, %v1156
    %v1159 = vpack.c.bf16 %v1158, %v1158
    %v1160 = vld [vmem:[#allocation2 + $0x30] sm:$0xf0]
    %v1161 = vld [vmem:[#allocation2 + $0x38] sm:$0xf0]
    %v1164 = vrot.slane %v1160, 4
    %v1165 = vrot.slane %v1161, 4
    %v1168 = vunpack.c.l.bf16 %v1164
    %v1169 = vunpack.c.l.bf16 %v1165
    %v1171 = vsel %vm294, %v1159, 0
    %1173 = vmatprep.subr.bf16.mxu0 %v279
    %1174 = vmatpush1.bf16.msra.mxu0 %v278
    %1175 = vmatprep.subr.bf16.mxu0 %v281
    %1176 = vmatpush1.bf16.msra.mxu0 %v280
    %1177 = vmatprep.subr.bf16.mxu0 %v283
    %1178 = vmatpush1.bf16.msra.mxu0 %v282
    %1179 = vmatprep.subr.bf16.mxu0 %v285
    %1180 = vmatpush1.bf16.msra.mxu0 %v284
    %1181 = vmatprep.subr.bf16.mxu0 0
    %1182 = vmatpush1.bf16.msra.mxu0 0
    %1183 = vmatprep.subr.bf16.mxu0 0
    %1184 = vmatpush1.bf16.msra.mxu0 0
    %1185 = vmatprep.subr.bf16.mxu0 0
    %1186 = vmatpush1.bf16.msra.mxu0 0
    %1187 = vmatprep.subr.bf16.mxu0 0
    %1188 = vmatpush1.bf16.msra.mxu0 0
    %1189 = vmatprep.subr.bf16.mxu0 0
    %1190 = vmatpush1.bf16.msra.mxu0 0
    %1191 = vmatprep.subr.bf16.mxu0 0
    %1192 = vmatpush1.bf16.msra.mxu0 0
    %1193 = vmatprep.subr.bf16.mxu0 0
    %1194 = vmatpush1.bf16.msra.mxu0 0
    %1195 = vmatprep.subr.bf16.mxu0 0
    %1196 = vmatpush1.bf16.msra.mxu0 0
    %1197 = vmatprep.subr.bf16.mxu0 0
    %1198 = vmatpush1.bf16.msra.mxu0 0
    %1199 = vmatprep.subr.bf16.mxu0 0
    %1200 = vmatpush1.bf16.msra.mxu0 0
    %1201 = vmatprep.subr.bf16.mxu0 0
    %1202 = vmatpush1.bf16.msra.mxu0 0
    %1203 = vmatprep.subr.bf16.mxu0 0
    %1204 = vmatpush1.bf16.msra.mxu0 0
    %1205 = vmatprep.mubr.bf16.mxu0 0
    %1206 = vmatmul.mubr.bf16.gmra.mrb[0].mxu0 %v1171
    %v1207 = vpop.f32.mrb[0].mxu0
    %v1208 = vadd.f32 0.0, %v1207
    %v1209 = vpop.f32.mrb[0].mxu0
    %v1210 = vadd.f32 0.0, %v1209
    %v1211 = vpop.f32.mrb[0].mxu0
    %v1212 = vpop.f32.mrb[0].mxu0
    %1213 = vdwg.mxu0
    %v1214 = vadd.f32 %v1168, %v1208
    %v1215 = vadd.f32 %v1169, %v1210
    %v1216 = vxor.u32 %v1214, 2147483648
    %v1217 = vmul.f32 %v1216, 1.442695
    %v1218 = vpow.pop %v1217
    %v1219 = vadd.f32 %v1218, 1.0
    %v1220 = vrcp.pop %v1219
    %v1221 = vmul.f32 1.0, %v1220
    %v1222 = vtanh.pop %v1214
    %v1223 = vmul.f32 %v1221, %v1106
    %1225 = vrot.lane.b32.xlu0 %v1222, 32
    %v1226 = vpop.permute.xlu0 %1225
    %v1228 = vmul.f32 %v1221, %v1226
    %1230 = vrot.lane.b32.xlu0 %v1228, 32
    %v1231 = vpop.permute.xlu0 %1230
    %v1233 = vadd.f32 %v1223, %v1231
    %v1234 = vtanh.pop %v1233
    %1236 = vrot.lane.b32.xlu0 %v1234, 32
    %v1237 = vpop.permute.xlu0 %1236
    %v1239 = vmul.f32 %v1221, %v1237
    %v1240 = vxor.u32 %v1215, 2147483648
    %v1241 = vmul.f32 %v1240, 1.442695
    %v1242 = vpow.pop %v1241
    %v1243 = vadd.f32 %v1242, 1.0
    %v1244 = vrcp.pop %v1243
    %v1245 = vmul.f32 1.0, %v1244
    %v1246 = vtanh.pop %v1215
    %v1247 = vmul.f32 %v1245, %v1130
    %1249 = vrot.lane.b32.xlu0 %v1246, 32
    %v1250 = vpop.permute.xlu0 %1249
    %v1252 = vmul.f32 %v1245, %v1250
    %1254 = vrot.lane.b32.xlu0 %v1252, 32
    %v1255 = vpop.permute.xlu0 %1254
    %v1257 = vadd.f32 %v1247, %v1255
    %v1258 = vtanh.pop %v1257
    %1260 = vrot.lane.b32.xlu0 %v1258, 32
    %v1261 = vpop.permute.xlu0 %1260
    %v1263 = vmul.f32 %v1245, %v1261
    %v1264 = vpack.c.bf16 %v1239, %v1239
    %v1266 = vrot.slane %v1264, 4
    %1267 = vrot.lane.b32.xlu0 %v1266, 64
    %v1268 = vpop.permute.xlu0 %1267
    %1270 = vst.msk [vmem:[#allocation3 + $0x18] sm:$0xf0] %vm524, %v1268
    %v1271 = vpack.c.bf16 %v1263, %v1263
    %1273 = vrot.lane.b32.xlu0 %v1271, 96
    %v1274 = vpop.permute.xlu0 %1273
    %1276 = vst.msk [vmem:[#allocation3] sm:$0xf] %vm531, %v1274
    %v1277 = vld [vmem:[%s4] sm:$0xff]
    %v1278 = vld [vmem:[%s4 + $0x8] sm:$0xff]
    %v1279 = vld [vmem:[%s4 + $0x10] sm:$0xff]
    %v1280 = vld [vmem:[%s4 + $0x18] sm:$0xff]
    %v1281 = vld [vmem:[%s4 + $0x20] sm:$0xff]
    %v1282 = vld [vmem:[%s4 + $0x28] sm:$0xff]
    %v1283 = vld [vmem:[%s4 + $0x30] sm:$0xff]
    %v1284 = vld [vmem:[%s4 + $0x38] sm:$0xff]
    %v1285 = vld [vmem:[#allocation6] sm:$0x3]
    %v1286 = vld [vmem:[#allocation3] sm:$0xff]
    %v1287 = vld [vmem:[#allocation3 + $0x8] sm:$0xff]
    %v1288 = vld [vmem:[#allocation3 + $0x10] sm:$0xff]
    %v1289 = vld [vmem:[#allocation3 + $0x18] sm:$0xff]
    %v1291 = vlaneseq
    %v1292 = vshrl.u32 %v1291, 7
    %v1293 = vsub.s32 0, %v1292
    %v1294 = vrot.slane %v1285, %v1293
    %v1295 = vlaneseq
    %v1296 = vshrl.u32 %v1295, 7
    %v1297 = vsub.s32 1, %v1296
    %v1298 = vrot.slane %v1285, %v1297
    %v1309 = vunpack.c.l.b16 %v1277
    %v1310 = vunpack.c.h.b16 %v1277
    %v1311 = vunpack.c.l.b16 %v1278
    %v1312 = vunpack.c.h.b16 %v1278
    %v1313 = vunpack.c.l.b16 %v1279
    %v1314 = vunpack.c.h.b16 %v1279
    %v1315 = vunpack.c.l.b16 %v1280
    %v1316 = vunpack.c.h.b16 %v1280
    %v1317 = vunpack.c.l.b16 %v1281
    %v1318 = vunpack.c.h.b16 %v1281
    %v1319 = vunpack.c.l.b16 %v1282
    %v1320 = vunpack.c.h.b16 %v1282
    %v1321 = vunpack.c.l.b16 %v1283
    %v1322 = vunpack.c.h.b16 %v1283
    %v1323 = vunpack.c.l.b16 %v1284
    %v1324 = vunpack.c.h.b16 %v1284
    %v1325 = vpack.c.b16 %v1311, %v1309
    %v1326 = vpack.c.b16 %v1312, %v1310
    %v1327 = vpack.c.b16 %v1315, %v1313
    %v1328 = vpack.c.b16 %v1316, %v1314
    %v1329 = vpack.c.b16 %v1319, %v1317
    %v1330 = vpack.c.b16 %v1320, %v1318
    %v1331 = vpack.c.b16 %v1323, %v1321
    %v1332 = vpack.c.b16 %v1324, %v1322
    %v1342 = vsel %vm294, %v1286, 0
    %v1345 = vsel %vm294, %v1287, 0
    %v1348 = vsel %vm294, %v1288, 0
    %v1351 = vsel %vm294, %v1289, 0
    %1353 = vmatprep.subr.bf16.mxu0 %v1326
    %1354 = vmatpush1.bf16.msra.mxu0 %v1325
    %1355 = vmatprep.subr.bf16.mxu0 %v1328
    %1356 = vmatpush1.bf16.msra.mxu0 %v1327
    %1357 = vmatprep.subr.bf16.mxu0 %v1330
    %1358 = vmatpush1.bf16.msra.mxu0 %v1329
    %1359 = vmatprep.subr.bf16.mxu0 %v1332
    %1360 = vmatpush1.bf16.msra.mxu0 %v1331
    %1361 = vmatprep.subr.bf16.mxu0 0
    %1362 = vmatpush1.bf16.msra.mxu0 0
    %1363 = vmatprep.subr.bf16.mxu0 0
    %1364 = vmatpush1.bf16.msra.mxu0 0
    %1365 = vmatprep.subr.bf16.mxu0 0
    %1366 = vmatpush1.bf16.msra.mxu0 0
    %1367 = vmatprep.subr.bf16.mxu0 0
    %1368 = vmatpush1.bf16.msra.mxu0 0
    %1369 = vmatprep.subr.bf16.mxu0 0
    %1370 = vmatpush1.bf16.msra.mxu0 0
    %1371 = vmatprep.subr.bf16.mxu0 0
    %1372 = vmatpush1.bf16.msra.mxu0 0
    %1373 = vmatprep.subr.bf16.mxu0 0
    %1374 = vmatpush1.bf16.msra.mxu0 0
    %1375 = vmatprep.subr.bf16.mxu0 0
    %1376 = vmatpush1.bf16.msra.mxu0 0
    %1377 = vmatprep.subr.bf16.mxu0 0
    %1378 = vmatpush1.bf16.msra.mxu0 0
    %1379 = vmatprep.subr.bf16.mxu0 0
    %1380 = vmatpush1.bf16.msra.mxu0 0
    %1381 = vmatprep.subr.bf16.mxu0 0
    %1382 = vmatpush1.bf16.msra.mxu0 0
    %1383 = vmatprep.subr.bf16.mxu0 0
    %1384 = vmatpush1.bf16.msra.mxu0 0
    %1385 = vmatprep.mubr.bf16.mxu0 0
    %1386 = vmatmul.mubr.bf16.gmra.mrb[0].mxu0 %v1342
    %v1387 = vpop.f32.mrb[0].mxu0
    %v1388 = vadd.f32 %v1294, %v1387
    %v1389 = vpop.f32.mrb[0].mxu0
    %v1390 = vadd.f32 %v1298, %v1389
    %v1391 = vpop.f32.mrb[0].mxu0
    %v1392 = vadd.f32 %v1294, %v1391
    %v1393 = vpop.f32.mrb[0].mxu0
    %v1394 = vadd.f32 %v1298, %v1393
    %1395 = vmatprep.mubr.bf16.mxu0 0
    %1396 = vmatmul.mubr.bf16.gmra.mrb[0].mxu0 %v1345
    %v1397 = vpop.f32.mrb[0].mxu0
    %v1398 = vadd.f32 %v1294, %v1397
    %v1399 = vpop.f32.mrb[0].mxu0
    %v1400 = vadd.f32 %v1298, %v1399
    %v1401 = vpop.f32.mrb[0].mxu0
    %v1402 = vadd.f32 %v1294, %v1401
    %v1403 = vpop.f32.mrb[0].mxu0
    %v1404 = vadd.f32 %v1298, %v1403
    %1405 = vmatprep.mubr.bf16.mxu0 0
    %1406 = vmatmul.mubr.bf16.gmra.mrb[0].mxu0 %v1348
    %v1407 = vpop.f32.mrb[0].mxu0
    %v1408 = vadd.f32 %v1294, %v1407
    %v1409 = vpop.f32.mrb[0].mxu0
    %v1410 = vadd.f32 %v1298, %v1409
    %v1411 = vpop.f32.mrb[0].mxu0
    %v1412 = vadd.f32 %v1294, %v1411
    %v1413 = vpop.f32.mrb[0].mxu0
    %v1414 = vadd.f32 %v1298, %v1413
    %1415 = vmatprep.mubr.bf16.mxu0 0
    %1416 = vmatmul.mubr.bf16.gmra.mrb[0].mxu0 %v1351
    %v1417 = vpop.f32.mrb[0].mxu0
    %v1418 = vadd.f32 %v1294, %v1417
    %v1419 = vpop.f32.mrb[0].mxu0
    %v1420 = vadd.f32 %v1298, %v1419
    %v1421 = vpop.f32.mrb[0].mxu0
    %v1422 = vadd.f32 %v1294, %v1421
    %v1423 = vpop.f32.mrb[0].mxu0
    %v1424 = vadd.f32 %v1298, %v1423
    %1425 = vdwg.mxu0
    %v1426 = vpack.c.bf16 %v1392, %v1388
    %v1427 = vpack.c.bf16 %v1394, %v1390
    %v1428 = vpack.c.bf16 %v1402, %v1398
    %v1429 = vpack.c.bf16 %v1404, %v1400
    %v1430 = vpack.c.bf16 %v1412, %v1408
    %v1431 = vpack.c.bf16 %v1414, %v1410
    %v1432 = vpack.c.bf16 %v1422, %v1418
    %v1433 = vpack.c.bf16 %v1424, %v1420
    %1434 = vst [vmem:[#allocation2] sm:$0xff] %v1426
    %1435 = vst [vmem:[#allocation2 + $0x10] sm:$0xff] %v1428
    %1436 = vst [vmem:[#allocation2 + $0x20] sm:$0xff] %v1430
    %1437 = vst [vmem:[#allocation2 + $0x30] sm:$0xff] %v1432
    %v1439 = vrot.slane %v1427, 4
    %1441 = vst [vmem:[#allocation2 + $0x38] sm:$0xf0] %v1439
    %1442 = vst [vmem:[#allocation2 + $0x38] sm:$0xf] %v1439
    %v1444 = vrot.slane %v1429, 4
    %1446 = vst [vmem:[#allocation2 + $0x28] sm:$0xf0] %v1444
    %1447 = vst [vmem:[#allocation2 + $0x28] sm:$0xf] %v1444
    %v1449 = vrot.slane %v1431, 4
    %1451 = vst [vmem:[#allocation2 + $0x18] sm:$0xf0] %v1449
    %1452 = vst [vmem:[#allocation2 + $0x18] sm:$0xf] %v1449
    %v1454 = vrot.slane %v1433, 4
    %1456 = vst [vmem:[#allocation2 + $0x8] sm:$0xf0] %v1454
    %1457 = vst [vmem:[#allocation2 + $0x8] sm:$0xf] %v1454
    %v1458 = vld [vmem:[%s5] sm:$0xff]
    %v1459 = vld [vmem:[%s5 + $0x8] sm:$0xff]
    %v1460 = vld [vmem:[%s5 + $0x10] sm:$0xff]
    %v1461 = vld [vmem:[%s5 + $0x18] sm:$0xff]
    %v1462 = vld [vmem:[%s5 + $0x20] sm:$0xff]
    %v1463 = vld [vmem:[%s5 + $0x28] sm:$0xff]
    %v1464 = vld [vmem:[%s5 + $0x30] sm:$0xff]
    %v1465 = vld [vmem:[%s5 + $0x38] sm:$0xff]
    %v1466 = vld [vmem:[#allocation2] sm:$0xf]
    %v1467 = vld [vmem:[#allocation2 + $0x8] sm:$0xf]
    %v1468 = vunpack.c.l.bf16 %v1466
    %v1469 = vunpack.c.l.bf16 %v1467
    %v1478 = vunpack.c.l.b16 %v1458
    %v1479 = vunpack.c.h.b16 %v1458
    %v1480 = vunpack.c.l.b16 %v1459
    %v1481 = vunpack.c.h.b16 %v1459
    %v1482 = vunpack.c.l.b16 %v1460
    %v1483 = vunpack.c.h.b16 %v1460
    %v1484 = vunpack.c.l.b16 %v1461
    %v1485 = vunpack.c.h.b16 %v1461
    %v1486 = vunpack.c.l.b16 %v1462
    %v1487 = vunpack.c.h.b16 %v1462
    %v1488 = vunpack.c.l.b16 %v1463
    %v1489 = vunpack.c.h.b16 %v1463
    %v1490 = vunpack.c.l.b16 %v1464
    %v1491 = vunpack.c.h.b16 %v1464
    %v1492 = vunpack.c.l.b16 %v1465
    %v1493 = vunpack.c.h.b16 %v1465
    %v1494 = vpack.c.b16 %v1480, %v1478
    %v1495 = vpack.c.b16 %v1481, %v1479
    %v1496 = vpack.c.b16 %v1484, %v1482
    %v1497 = vpack.c.b16 %v1485, %v1483
    %v1498 = vpack.c.b16 %v1488, %v1486
    %v1499 = vpack.c.b16 %v1489, %v1487
    %v1500 = vpack.c.b16 %v1492, %v1490
    %v1501 = vpack.c.b16 %v1493, %v1491
    %1510 = vmatprep.subr.bf16.mxu0 %v1495
    %1511 = vmatpush1.bf16.msra.mxu0 %v1494
    %1512 = vmatprep.subr.bf16.mxu0 %v1497
    %1513 = vmatpush1.bf16.msra.mxu0 %v1496
    %1514 = vmatprep.subr.bf16.mxu0 %v1499
    %1515 = vmatpush1.bf16.msra.mxu0 %v1498
    %1516 = vmatprep.subr.bf16.mxu0 %v1501
    %1517 = vmatpush1.bf16.msra.mxu0 %v1500
    %1518 = vmatprep.subr.bf16.mxu0 0
    %1519 = vmatpush1.bf16.msra.mxu0 0
    %1520 = vmatprep.subr.bf16.mxu0 0
    %1521 = vmatpush1.bf16.msra.mxu0 0
    %1522 = vmatprep.subr.bf16.mxu0 0
    %1523 = vmatpush1.bf16.msra.mxu0 0
    %1524 = vmatprep.subr.bf16.mxu0 0
    %1525 = vmatpush1.bf16.msra.mxu0 0
    %1526 = vmatprep.subr.bf16.mxu0 0
    %1527 = vmatpush1.bf16.msra.mxu0 0
    %1528 = vmatprep.subr.bf16.mxu0 0
    %1529 = vmatpush1.bf16.msra.mxu0 0
    %1530 = vmatprep.subr.bf16.mxu0 0
    %1531 = vmatpush1.bf16.msra.mxu0 0
    %1532 = vmatprep.subr.bf16.mxu0 0
    %1533 = vmatpush1.bf16.msra.mxu0 0
    %1534 = vmatprep.subr.bf16.mxu0 0
    %1535 = vmatpush1.bf16.msra.mxu0 0
    %1536 = vmatprep.subr.bf16.mxu0 0
    %1537 = vmatpush1.bf16.msra.mxu0 0
    %1538 = vmatprep.subr.bf16.mxu0 0
    %1539 = vmatpush1.bf16.msra.mxu0 0
    %1540 = vmatprep.subr.bf16.mxu0 0
    %1541 = vmatpush1.bf16.msra.mxu0 0
    %1542 = vmatprep.mubr.bf16.mxu0 0
    %1543 = vmatmul.mubr.bf16.gmra.mrb[0].mxu0 %v296
    %v1544 = vpop.f32.mrb[0].mxu0
    %v1545 = vadd.f32 0.0, %v1544
    %v1546 = vpop.f32.mrb[0].mxu0
    %v1547 = vadd.f32 0.0, %v1546
    %v1548 = vpop.f32.mrb[0].mxu0
    %v1549 = vpop.f32.mrb[0].mxu0
    %1550 = vdwg.mxu0
    %v1551 = vadd.f32 %v1468, %v1545
    %v1552 = vadd.f32 %v1469, %v1547
    %v1553 = vxor.u32 %v1551, 2147483648
    %v1554 = vmul.f32 %v1553, 1.442695
    %v1555 = vpow.pop %v1554
    %v1556 = vadd.f32 %v1555, 1.0
    %v1557 = vrcp.pop %v1556
    %v1558 = vmul.f32 1.0, %v1557
    %v1559 = vtanh.pop %v1551
    %v1560 = vmul.f32 %v1558, 0.0
    %1562 = vrot.lane.b32.xlu0 %v1559, 32
    %v1563 = vpop.permute.xlu0 %1562
    %v1565 = vmul.f32 %v1558, %v1563
    %1567 = vrot.lane.b32.xlu0 %v1565, 32
    %v1568 = vpop.permute.xlu0 %1567
    %v1570 = vadd.f32 %v1560, %v1568
    %v1571 = vtanh.pop %v1570
    %1573 = vrot.lane.b32.xlu0 %v1571, 32
    %v1574 = vpop.permute.xlu0 %1573
    %v1576 = vmul.f32 %v1558, %v1574
    %v1577 = vxor.u32 %v1552, 2147483648
    %v1578 = vmul.f32 %v1577, 1.442695
    %v1579 = vpow.pop %v1578
    %v1580 = vadd.f32 %v1579, 1.0
    %v1581 = vrcp.pop %v1580
    %v1582 = vmul.f32 1.0, %v1581
    %v1583 = vtanh.pop %v1552
    %v1584 = vmul.f32 %v1582, 0.0
    %1586 = vrot.lane.b32.xlu0 %v1583, 32
    %v1587 = vpop.permute.xlu0 %1586
    %v1589 = vmul.f32 %v1582, %v1587
    %1591 = vrot.lane.b32.xlu0 %v1589, 32
    %v1592 = vpop.permute.xlu0 %1591
    %v1594 = vadd.f32 %v1584, %v1592
    %v1595 = vtanh.pop %v1594
    %1597 = vrot.lane.b32.xlu0 %v1595, 32
    %v1598 = vpop.permute.xlu0 %1597
    %v1600 = vmul.f32 %v1582, %v1598
    %1602 = vrot.lane.b32.xlu0 %v1576, 64
    %v1603 = vpop.permute.xlu0 %1602
    %1606 = vrot.lane.b32.xlu0 %v1600, 96
    %v1607 = vpop.permute.xlu0 %1606
    %v1609 = vsel %vm123, %v1603, %v1607
    %v1610 = vpack.c.bf16 %v1609, %v1609
    %v1611 = vld [vmem:[#allocation2] sm:$0xf0]
    %v1612 = vld [vmem:[#allocation2 + $0x8] sm:$0xf0]
    %v1615 = vrot.slane %v1611, 4
    %v1616 = vrot.slane %v1612, 4
    %v1619 = vunpack.c.l.bf16 %v1615
    %v1620 = vunpack.c.l.bf16 %v1616
    %v1622 = vsel %vm294, %v1610, 0
    %1624 = vmatprep.subr.bf16.mxu0 %v1495
    %1625 = vmatpush1.bf16.msra.mxu0 %v1494
    %1626 = vmatprep.subr.bf16.mxu0 %v1497
    %1627 = vmatpush1.bf16.msra.mxu0 %v1496
    %1628 = vmatprep.subr.bf16.mxu0 %v1499
    %1629 = vmatpush1.bf16.msra.mxu0 %v1498
    %1630 = vmatprep.subr.bf16.mxu0 %v1501
    %1631 = vmatpush1.bf16.msra.mxu0 %v1500
    %1632 = vmatprep.subr.bf16.mxu0 0
    %1633 = vmatpush1.bf16.msra.mxu0 0
    %1634 = vmatprep.subr.bf16.mxu0 0
    %1635 = vmatpush1.bf16.msra.mxu0 0
    %1636 = vmatprep.subr.bf16.mxu0 0
    %1637 = vmatpush1.bf16.msra.mxu0 0
    %1638 = vmatprep.subr.bf16.mxu0 0
    %1639 = vmatpush1.bf16.msra.mxu0 0
    %1640 = vmatprep.subr.bf16.mxu0 0
    %1641 = vmatpush1.bf16.msra.mxu0 0
    %1642 = vmatprep.subr.bf16.mxu0 0
    %1643 = vmatpush1.bf16.msra.mxu0 0
    %1644 = vmatprep.subr.bf16.mxu0 0
    %1645 = vmatpush1.bf16.msra.mxu0 0
    %1646 = vmatprep.subr.bf16.mxu0 0
    %1647 = vmatpush1.bf16.msra.mxu0 0
    %1648 = vmatprep.subr.bf16.mxu0 0
    %1649 = vmatpush1.bf16.msra.mxu0 0
    %1650 = vmatprep.subr.bf16.mxu0 0
    %1651 = vmatpush1.bf16.msra.mxu0 0
    %1652 = vmatprep.subr.bf16.mxu0 0
    %1653 = vmatpush1.bf16.msra.mxu0 0
    %1654 = vmatprep.subr.bf16.mxu0 0
    %1655 = vmatpush1.bf16.msra.mxu0 0
    %1656 = vmatprep.mubr.bf16.mxu0 0
    %1657 = vmatmul.mubr.bf16.gmra.mrb[0].mxu0 %v1622
    %v1658 = vpop.f32.mrb[0].mxu0
    %v1659 = vadd.f32 0.0, %v1658
    %v1660 = vpop.f32.mrb[0].mxu0
    %v1661 = vadd.f32 0.0, %v1660
    %v1662 = vpop.f32.mrb[0].mxu0
    %v1663 = vpop.f32.mrb[0].mxu0
    %1664 = vdwg.mxu0
    %v1665 = vadd.f32 %v1619, %v1659
    %v1666 = vadd.f32 %v1620, %v1661
    %v1667 = vxor.u32 %v1665, 2147483648
    %v1668 = vmul.f32 %v1667, 1.442695
    %v1669 = vpow.pop %v1668
    %v1670 = vadd.f32 %v1669, 1.0
    %v1671 = vrcp.pop %v1670
    %v1672 = vmul.f32 1.0, %v1671
    %v1673 = vtanh.pop %v1665
    %v1674 = vmul.f32 %v1672, %v1570
    %1676 = vrot.lane.b32.xlu0 %v1673, 32
    %v1677 = vpop.permute.xlu0 %1676
    %v1679 = vmul.f32 %v1672, %v1677
    %1681 = vrot.lane.b32.xlu0 %v1679, 32
    %v1682 = vpop.permute.xlu0 %1681
    %v1684 = vadd.f32 %v1674, %v1682
    %v1685 = vtanh.pop %v1684
    %1687 = vrot.lane.b32.xlu0 %v1685, 32
    %v1688 = vpop.permute.xlu0 %1687
    %v1690 = vmul.f32 %v1672, %v1688
    %v1691 = vxor.u32 %v1666, 2147483648
    %v1692 = vmul.f32 %v1691, 1.442695
    %v1693 = vpow.pop %v1692
    %v1694 = vadd.f32 %v1693, 1.0
    %v1695 = vrcp.pop %v1694
    %v1696 = vmul.f32 1.0, %v1695
    %v1697 = vtanh.pop %v1666
    %v1698 = vmul.f32 %v1696, %v1594
    %1700 = vrot.lane.b32.xlu0 %v1697, 32
    %v1701 = vpop.permute.xlu0 %1700
    %v1703 = vmul.f32 %v1696, %v1701
    %1705 = vrot.lane.b32.xlu0 %v1703, 32
    %v1706 = vpop.permute.xlu0 %1705
    %v1708 = vadd.f32 %v1698, %v1706
    %v1709 = vtanh.pop %v1708
    %1711 = vrot.lane.b32.xlu0 %v1709, 32
    %v1712 = vpop.permute.xlu0 %1711
    %v1714 = vmul.f32 %v1696, %v1712
    %1716 = vrot.lane.b32.xlu0 %v1690, 64
    %v1717 = vpop.permute.xlu0 %1716
    %1720 = vrot.lane.b32.xlu0 %v1714, 96
    %v1721 = vpop.permute.xlu0 %1720
    %v1723 = vsel %vm123, %v1717, %v1721
    %v1724 = vpack.c.bf16 %v1723, %v1723
    %v1725 = vld [vmem:[#allocation2 + $0x10] sm:$0xf]
    %v1726 = vld [vmem:[#allocation2 + $0x18] sm:$0xf]
    %v1727 = vunpack.c.l.bf16 %v1725
    %v1728 = vunpack.c.l.bf16 %v1726
    %v1730 = vsel %vm294, %v1724, 0
    %1732 = vmatprep.subr.bf16.mxu0 %v1495
    %1733 = vmatpush1.bf16.msra.mxu0 %v1494
    %1734 = vmatprep.subr.bf16.mxu0 %v1497
    %1735 = vmatpush1.bf16.msra.mxu0 %v1496
    %1736 = vmatprep.subr.bf16.mxu0 %v1499
    %1737 = vmatpush1.bf16.msra.mxu0 %v1498
    %1738 = vmatprep.subr.bf16.mxu0 %v1501
    %1739 = vmatpush1.bf16.msra.mxu0 %v1500
    %1740 = vmatprep.subr.bf16.mxu0 0
    %1741 = vmatpush1.bf16.msra.mxu0 0
    %1742 = vmatprep.subr.bf16.mxu0 0
    %1743 = vmatpush1.bf16.msra.mxu0 0
    %1744 = vmatprep.subr.bf16.mxu0 0
    %1745 = vmatpush1.bf16.msra.mxu0 0
    %1746 = vmatprep.subr.bf16.mxu0 0
    %1747 = vmatpush1.bf16.msra.mxu0 0
    %1748 = vmatprep.subr.bf16.mxu0 0
    %1749 = vmatpush1.bf16.msra.mxu0 0
    %1750 = vmatprep.subr.bf16.mxu0 0
    %1751 = vmatpush1.bf16.msra.mxu0 0
    %1752 = vmatprep.subr.bf16.mxu0 0
    %1753 = vmatpush1.bf16.msra.mxu0 0
    %1754 = vmatprep.subr.bf16.mxu0 0
    %1755 = vmatpush1.bf16.msra.mxu0 0
    %1756 = vmatprep.subr.bf16.mxu0 0
    %1757 = vmatpush1.bf16.msra.mxu0 0
    %1758 = vmatprep.subr.bf16.mxu0 0
    %1759 = vmatpush1.bf16.msra.mxu0 0
    %1760 = vmatprep.subr.bf16.mxu0 0
    %1761 = vmatpush1.bf16.msra.mxu0 0
    %1762 = vmatprep.subr.bf16.mxu0 0
    %1763 = vmatpush1.bf16.msra.mxu0 0
    %1764 = vmatprep.mubr.bf16.mxu0 0
    %1765 = vmatmul.mubr.bf16.gmra.mrb[0].mxu0 %v1730
    %v1766 = vpop.f32.mrb[0].mxu0
    %v1767 = vadd.f32 0.0, %v1766
    %v1768 = vpop.f32.mrb[0].mxu0
    %v1769 = vadd.f32 0.0, %v1768
    %v1770 = vpop.f32.mrb[0].mxu0
    %v1771 = vpop.f32.mrb[0].mxu0
    %1772 = vdwg.mxu0
    %v1773 = vadd.f32 %v1727, %v1767
    %v1774 = vadd.f32 %v1728, %v1769
    %v1775 = vxor.u32 %v1773, 2147483648
    %v1776 = vmul.f32 %v1775, 1.442695
    %v1777 = vpow.pop %v1776
    %v1778 = vadd.f32 %v1777, 1.0
    %v1779 = vrcp.pop %v1778
    %v1780 = vmul.f32 1.0, %v1779
    %v1781 = vtanh.pop %v1773
    %v1782 = vmul.f32 %v1780, %v1684
    %1784 = vrot.lane.b32.xlu0 %v1781, 32
    %v1785 = vpop.permute.xlu0 %1784
    %v1787 = vmul.f32 %v1780, %v1785
    %1789 = vrot.lane.b32.xlu0 %v1787, 32
    %v1790 = vpop.permute.xlu0 %1789
    %v1792 = vadd.f32 %v1782, %v1790
    %v1793 = vtanh.pop %v1792
    %1795 = vrot.lane.b32.xlu0 %v1793, 32
    %v1796 = vpop.permute.xlu0 %1795
    %v1798 = vmul.f32 %v1780, %v1796
    %v1799 = vxor.u32 %v1774, 2147483648
    %v1800 = vmul.f32 %v1799, 1.442695
    %v1801 = vpow.pop %v1800
    %v1802 = vadd.f32 %v1801, 1.0
    %v1803 = vrcp.pop %v1802
    %v1804 = vmul.f32 1.0, %v1803
    %v1805 = vtanh.pop %v1774
    %v1806 = vmul.f32 %v1804, %v1708
    %1808 = vrot.lane.b32.xlu0 %v1805, 32
    %v1809 = vpop.permute.xlu0 %1808
    %v1811 = vmul.f32 %v1804, %v1809
    %1813 = vrot.lane.b32.xlu0 %v1811, 32
    %v1814 = vpop.permute.xlu0 %1813
    %v1816 = vadd.f32 %v1806, %v1814
    %v1817 = vtanh.pop %v1816
    %1819 = vrot.lane.b32.xlu0 %v1817, 32
    %v1820 = vpop.permute.xlu0 %1819
    %v1822 = vmul.f32 %v1804, %v1820
    %1824 = vrot.lane.b32.xlu0 %v1798, 64
    %v1825 = vpop.permute.xlu0 %1824
    %1828 = vrot.lane.b32.xlu0 %v1822, 96
    %v1829 = vpop.permute.xlu0 %1828
    %v1831 = vsel %vm123, %v1825, %v1829
    %v1832 = vpack.c.bf16 %v1831, %v1831
    %v1833 = vld [vmem:[#allocation2 + $0x10] sm:$0xf0]
    %v1834 = vld [vmem:[#allocation2 + $0x18] sm:$0xf0]
    %v1837 = vrot.slane %v1833, 4
    %v1838 = vrot.slane %v1834, 4
    %v1841 = vunpack.c.l.bf16 %v1837
    %v1842 = vunpack.c.l.bf16 %v1838
    %v1844 = vsel %vm294, %v1832, 0
    %1846 = vmatprep.subr.bf16.mxu0 %v1495
    %1847 = vmatpush1.bf16.msra.mxu0 %v1494
    %1848 = vmatprep.subr.bf16.mxu0 %v1497
    %1849 = vmatpush1.bf16.msra.mxu0 %v1496
    %1850 = vmatprep.subr.bf16.mxu0 %v1499
    %1851 = vmatpush1.bf16.msra.mxu0 %v1498
    %1852 = vmatprep.subr.bf16.mxu0 %v1501
    %1853 = vmatpush1.bf16.msra.mxu0 %v1500
    %1854 = vmatprep.subr.bf16.mxu0 0
    %1855 = vmatpush1.bf16.msra.mxu0 0
    %1856 = vmatprep.subr.bf16.mxu0 0
    %1857 = vmatpush1.bf16.msra.mxu0 0
    %1858 = vmatprep.subr.bf16.mxu0 0
    %1859 = vmatpush1.bf16.msra.mxu0 0
    %1860 = vmatprep.subr.bf16.mxu0 0
    %1861 = vmatpush1.bf16.msra.mxu0 0
    %1862 = vmatprep.subr.bf16.mxu0 0
    %1863 = vmatpush1.bf16.msra.mxu0 0
    %1864 = vmatprep.subr.bf16.mxu0 0
    %1865 = vmatpush1.bf16.msra.mxu0 0
    %1866 = vmatprep.subr.bf16.mxu0 0
    %1867 = vmatpush1.bf16.msra.mxu0 0
    %1868 = vmatprep.subr.bf16.mxu0 0
    %1869 = vmatpush1.bf16.msra.mxu0 0
    %1870 = vmatprep.subr.bf16.mxu0 0
    %1871 = vmatpush1.bf16.msra.mxu0 0
    %1872 = vmatprep.subr.bf16.mxu0 0
    %1873 = vmatpush1.bf16.msra.mxu0 0
    %1874 = vmatprep.subr.bf16.mxu0 0
    %1875 = vmatpush1.bf16.msra.mxu0 0
    %1876 = vmatprep.subr.bf16.mxu0 0
    %1877 = vmatpush1.bf16.msra.mxu0 0
    %1878 = vmatprep.mubr.bf16.mxu0 0
    %1879 = vmatmul.mubr.bf16.gmra.mrb[0].mxu0 %v1844
    %v1880 = vpop.f32.mrb[0].mxu0
    %v1881 = vadd.f32 0.0, %v1880
    %v1882 = vpop.f32.mrb[0].mxu0
    %v1883 = vadd.f32 0.0, %v1882
    %v1884 = vpop.f32.mrb[0].mxu0
    %v1885 = vpop.f32.mrb[0].mxu0
    %1886 = vdwg.mxu0
    %v1887 = vadd.f32 %v1841, %v1881
    %v1888 = vadd.f32 %v1842, %v1883
    %v1889 = vxor.u32 %v1887, 2147483648
    %v1890 = vmul.f32 %v1889, 1.442695
    %v1891 = vpow.pop %v1890
    %v1892 = vadd.f32 %v1891, 1.0
    %v1893 = vrcp.pop %v1892
    %v1894 = vmul.f32 1.0, %v1893
    %v1895 = vtanh.pop %v1887
    %v1896 = vmul.f32 %v1894, %v1792
    %1898 = vrot.lane.b32.xlu0 %v1895, 32
    %v1899 = vpop.permute.xlu0 %1898
    %v1901 = vmul.f32 %v1894, %v1899
    %1903 = vrot.lane.b32.xlu0 %v1901, 32
    %v1904 = vpop.permute.xlu0 %1903
    %v1906 = vadd.f32 %v1896, %v1904
    %v1907 = vtanh.pop %v1906
    %1909 = vrot.lane.b32.xlu0 %v1907, 32
    %v1910 = vpop.permute.xlu0 %1909
    %v1912 = vmul.f32 %v1894, %v1910
    %v1913 = vxor.u32 %v1888, 2147483648
    %v1914 = vmul.f32 %v1913, 1.442695
    %v1915 = vpow.pop %v1914
    %v1916 = vadd.f32 %v1915, 1.0
    %v1917 = vrcp.pop %v1916
    %v1918 = vmul.f32 1.0, %v1917
    %v1919 = vtanh.pop %v1888
    %v1920 = vmul.f32 %v1918, %v1816
    %1922 = vrot.lane.b32.xlu0 %v1919, 32
    %v1923 = vpop.permute.xlu0 %1922
    %v1925 = vmul.f32 %v1918, %v1923
    %1927 = vrot.lane.b32.xlu0 %v1925, 32
    %v1928 = vpop.permute.xlu0 %1927
    %v1930 = vadd.f32 %v1920, %v1928
    %v1931 = vtanh.pop %v1930
    %1933 = vrot.lane.b32.xlu0 %v1931, 32
    %v1934 = vpop.permute.xlu0 %1933
    %v1936 = vmul.f32 %v1918, %v1934
    %1938 = vrot.lane.b32.xlu0 %v1912, 64
    %v1939 = vpop.permute.xlu0 %1938
    %1942 = vrot.lane.b32.xlu0 %v1936, 96
    %v1943 = vpop.permute.xlu0 %1942
    %v1945 = vsel %vm123, %v1939, %v1943
    %v1946 = vpack.c.bf16 %v1945, %v1945
    %v1947 = vld [vmem:[#allocation2 + $0x20] sm:$0xf]
    %v1948 = vld [vmem:[#allocation2 + $0x28] sm:$0xf]
    %v1949 = vunpack.c.l.bf16 %v1947
    %v1950 = vunpack.c.l.bf16 %v1948
    %v1952 = vsel %vm294, %v1946, 0
    %1954 = vmatprep.subr.bf16.mxu0 %v1495
    %1955 = vmatpush1.bf16.msra.mxu0 %v1494
    %1956 = vmatprep.subr.bf16.mxu0 %v1497
    %1957 = vmatpush1.bf16.msra.mxu0 %v1496
    %1958 = vmatprep.subr.bf16.mxu0 %v1499
    %1959 = vmatpush1.bf16.msra.mxu0 %v1498
    %1960 = vmatprep.subr.bf16.mxu0 %v1501
    %1961 = vmatpush1.bf16.msra.mxu0 %v1500
    %1962 = vmatprep.subr.bf16.mxu0 0
    %1963 = vmatpush1.bf16.msra.mxu0 0
    %1964 = vmatprep.subr.bf16.mxu0 0
    %1965 = vmatpush1.bf16.msra.mxu0 0
    %1966 = vmatprep.subr.bf16.mxu0 0
    %1967 = vmatpush1.bf16.msra.mxu0 0
    %1968 = vmatprep.subr.bf16.mxu0 0
    %1969 = vmatpush1.bf16.msra.mxu0 0
    %1970 = vmatprep.subr.bf16.mxu0 0
    %1971 = vmatpush1.bf16.msra.mxu0 0
    %1972 = vmatprep.subr.bf16.mxu0 0
    %1973 = vmatpush1.bf16.msra.mxu0 0
    %1974 = vmatprep.subr.bf16.mxu0 0
    %1975 = vmatpush1.bf16.msra.mxu0 0
    %1976 = vmatprep.subr.bf16.mxu0 0
    %1977 = vmatpush1.bf16.msra.mxu0 0
    %1978 = vmatprep.subr.bf16.mxu0 0
    %1979 = vmatpush1.bf16.msra.mxu0 0
    %1980 = vmatprep.subr.bf16.mxu0 0
    %1981 = vmatpush1.bf16.msra.mxu0 0
    %1982 = vmatprep.subr.bf16.mxu0 0
    %1983 = vmatpush1.bf16.msra.mxu0 0
    %1984 = vmatprep.subr.bf16.mxu0 0
    %1985 = vmatpush1.bf16.msra.mxu0 0
    %1986 = vmatprep.mubr.bf16.mxu0 0
    %1987 = vmatmul.mubr.bf16.gmra.mrb[0].mxu0 %v1952
    %v1988 = vpop.f32.mrb[0].mxu0
    %v1989 = vadd.f32 0.0, %v1988
    %v1990 = vpop.f32.mrb[0].mxu0
    %v1991 = vadd.f32 0.0, %v1990
    %v1992 = vpop.f32.mrb[0].mxu0
    %v1993 = vpop.f32.mrb[0].mxu0
    %1994 = vdwg.mxu0
    %v1995 = vadd.f32 %v1949, %v1989
    %v1996 = vadd.f32 %v1950, %v1991
    %v1997 = vxor.u32 %v1995, 2147483648
    %v1998 = vmul.f32 %v1997, 1.442695
    %v1999 = vpow.pop %v1998
    %v2000 = vadd.f32 %v1999, 1.0
    %v2001 = vrcp.pop %v2000
    %v2002 = vmul.f32 1.0, %v2001
    %v2003 = vtanh.pop %v1995
    %v2004 = vmul.f32 %v2002, %v1906
    %2006 = vrot.lane.b32.xlu0 %v2003, 32
    %v2007 = vpop.permute.xlu0 %2006
    %v2009 = vmul.f32 %v2002, %v2007
    %2011 = vrot.lane.b32.xlu0 %v2009, 32
    %v2012 = vpop.permute.xlu0 %2011
    %v2014 = vadd.f32 %v2004, %v2012
    %v2015 = vtanh.pop %v2014
    %2017 = vrot.lane.b32.xlu0 %v2015, 32
    %v2018 = vpop.permute.xlu0 %2017
    %v2020 = vmul.f32 %v2002, %v2018
    %v2021 = vxor.u32 %v1996, 2147483648
    %v2022 = vmul.f32 %v2021, 1.442695
    %v2023 = vpow.pop %v2022
    %v2024 = vadd.f32 %v2023, 1.0
    %v2025 = vrcp.pop %v2024
    %v2026 = vmul.f32 1.0, %v2025
    %v2027 = vtanh.pop %v1996
    %v2028 = vmul.f32 %v2026, %v1930
    %2030 = vrot.lane.b32.xlu0 %v2027, 32
    %v2031 = vpop.permute.xlu0 %2030
    %v2033 = vmul.f32 %v2026, %v2031
    %2035 = vrot.lane.b32.xlu0 %v2033, 32
    %v2036 = vpop.permute.xlu0 %2035
    %v2038 = vadd.f32 %v2028, %v2036
    %v2039 = vtanh.pop %v2038
    %2041 = vrot.lane.b32.xlu0 %v2039, 32
    %v2042 = vpop.permute.xlu0 %2041
    %v2044 = vmul.f32 %v2026, %v2042
    %2046 = vrot.lane.b32.xlu0 %v2020, 64
    %v2047 = vpop.permute.xlu0 %2046
    %2050 = vrot.lane.b32.xlu0 %v2044, 96
    %v2051 = vpop.permute.xlu0 %2050
    %v2053 = vsel %vm123, %v2047, %v2051
    %v2054 = vpack.c.bf16 %v2053, %v2053
    %v2055 = vld [vmem:[#allocation2 + $0x20] sm:$0xf0]
    %v2056 = vld [vmem:[#allocation2 + $0x28] sm:$0xf0]
    %v2059 = vrot.slane %v2055, 4
    %v2060 = vrot.slane %v2056, 4
    %v2063 = vunpack.c.l.bf16 %v2059
    %v2064 = vunpack.c.l.bf16 %v2060
    %v2066 = vsel %vm294, %v2054, 0
    %2068 = vmatprep.subr.bf16.mxu0 %v1495
    %2069 = vmatpush1.bf16.msra.mxu0 %v1494
    %2070 = vmatprep.subr.bf16.mxu0 %v1497
    %2071 = vmatpush1.bf16.msra.mxu0 %v1496
    %2072 = vmatprep.subr.bf16.mxu0 %v1499
    %2073 = vmatpush1.bf16.msra.mxu0 %v1498
    %2074 = vmatprep.subr.bf16.mxu0 %v1501
    %2075 = vmatpush1.bf16.msra.mxu0 %v1500
    %2076 = vmatprep.subr.bf16.mxu0 0
    %2077 = vmatpush1.bf16.msra.mxu0 0
    %2078 = vmatprep.subr.bf16.mxu0 0
    %2079 = vmatpush1.bf16.msra.mxu0 0
    %2080 = vmatprep.subr.bf16.mxu0 0
    %2081 = vmatpush1.bf16.msra.mxu0 0
    %2082 = vmatprep.subr.bf16.mxu0 0
    %2083 = vmatpush1.bf16.msra.mxu0 0
    %2084 = vmatprep.subr.bf16.mxu0 0
    %2085 = vmatpush1.bf16.msra.mxu0 0
    %2086 = vmatprep.subr.bf16.mxu0 0
    %2087 = vmatpush1.bf16.msra.mxu0 0
    %2088 = vmatprep.subr.bf16.mxu0 0
    %2089 = vmatpush1.bf16.msra.mxu0 0
    %2090 = vmatprep.subr.bf16.mxu0 0
    %2091 = vmatpush1.bf16.msra.mxu0 0
    %2092 = vmatprep.subr.bf16.mxu0 0
    %2093 = vmatpush1.bf16.msra.mxu0 0
    %2094 = vmatprep.subr.bf16.mxu0 0
    %2095 = vmatpush1.bf16.msra.mxu0 0
    %2096 = vmatprep.subr.bf16.mxu0 0
    %2097 = vmatpush1.bf16.msra.mxu0 0
    %2098 = vmatprep.subr.bf16.mxu0 0
    %2099 = vmatpush1.bf16.msra.mxu0 0
    %2100 = vmatprep.mubr.bf16.mxu0 0
    %2101 = vmatmul.mubr.bf16.gmra.mrb[0].mxu0 %v2066
    %v2102 = vpop.f32.mrb[0].mxu0
    %v2103 = vadd.f32 0.0, %v2102
    %v2104 = vpop.f32.mrb[0].mxu0
    %v2105 = vadd.f32 0.0, %v2104
    %v2106 = vpop.f32.mrb[0].mxu0
    %v2107 = vpop.f32.mrb[0].mxu0
    %2108 = vdwg.mxu0
    %v2109 = vadd.f32 %v2063, %v2103
    %v2110 = vadd.f32 %v2064, %v2105
    %v2111 = vxor.u32 %v2109, 2147483648
    %v2112 = vmul.f32 %v2111, 1.442695
    %v2113 = vpow.pop %v2112
    %v2114 = vadd.f32 %v2113, 1.0
    %v2115 = vrcp.pop %v2114
    %v2116 = vmul.f32 1.0, %v2115
    %v2117 = vtanh.pop %v2109
    %v2118 = vmul.f32 %v2116, %v2014
    %2120 = vrot.lane.b32.xlu0 %v2117, 32
    %v2121 = vpop.permute.xlu0 %2120
    %v2123 = vmul.f32 %v2116, %v2121
    %2125 = vrot.lane.b32.xlu0 %v2123, 32
    %v2126 = vpop.permute.xlu0 %2125
    %v2128 = vadd.f32 %v2118, %v2126
    %v2129 = vtanh.pop %v2128
    %2131 = vrot.lane.b32.xlu0 %v2129, 32
    %v2132 = vpop.permute.xlu0 %2131
    %v2134 = vmul.f32 %v2116, %v2132
    %v2135 = vxor.u32 %v2110, 2147483648
    %v2136 = vmul.f32 %v2135, 1.442695
    %v2137 = vpow.pop %v2136
    %v2138 = vadd.f32 %v2137, 1.0
    %v2139 = vrcp.pop %v2138
    %v2140 = vmul.f32 1.0, %v2139
    %v2141 = vtanh.pop %v2110
    %v2142 = vmul.f32 %v2140, %v2038
    %2144 = vrot.lane.b32.xlu0 %v2141, 32
    %v2145 = vpop.permute.xlu0 %2144
    %v2147 = vmul.f32 %v2140, %v2145
    %2149 = vrot.lane.b32.xlu0 %v2147, 32
    %v2150 = vpop.permute.xlu0 %2149
    %v2152 = vadd.f32 %v2142, %v2150
    %v2153 = vtanh.pop %v2152
    %2155 = vrot.lane.b32.xlu0 %v2153, 32
    %v2156 = vpop.permute.xlu0 %2155
    %v2158 = vmul.f32 %v2140, %v2156
    %2160 = vrot.lane.b32.xlu0 %v2134, 64
    %v2161 = vpop.permute.xlu0 %2160
    %2164 = vrot.lane.b32.xlu0 %v2158, 96
    %v2165 = vpop.permute.xlu0 %2164
    %v2167 = vsel %vm123, %v2161, %v2165
    %v2168 = vpack.c.bf16 %v2167, %v2167
    %v2169 = vld [vmem:[#allocation2 + $0x30] sm:$0xf]
    %v2170 = vld [vmem:[#allocation2 + $0x38] sm:$0xf]
    %v2171 = vunpack.c.l.bf16 %v2169
    %v2172 = vunpack.c.l.bf16 %v2170
    %v2174 = vsel %vm294, %v2168, 0
    %2176 = vmatprep.subr.bf16.mxu0 %v1495
    %2177 = vmatpush1.bf16.msra.mxu0 %v1494
    %2178 = vmatprep.subr.bf16.mxu0 %v1497
    %2179 = vmatpush1.bf16.msra.mxu0 %v1496
    %2180 = vmatprep.subr.bf16.mxu0 %v1499
    %2181 = vmatpush1.bf16.msra.mxu0 %v1498
    %2182 = vmatprep.subr.bf16.mxu0 %v1501
    %2183 = vmatpush1.bf16.msra.mxu0 %v1500
    %2184 = vmatprep.subr.bf16.mxu0 0
    %2185 = vmatpush1.bf16.msra.mxu0 0
    %2186 = vmatprep.subr.bf16.mxu0 0
    %2187 = vmatpush1.bf16.msra.mxu0 0
    %2188 = vmatprep.subr.bf16.mxu0 0
    %2189 = vmatpush1.bf16.msra.mxu0 0
    %2190 = vmatprep.subr.bf16.mxu0 0
    %2191 = vmatpush1.bf16.msra.mxu0 0
    %2192 = vmatprep.subr.bf16.mxu0 0
    %2193 = vmatpush1.bf16.msra.mxu0 0
    %2194 = vmatprep.subr.bf16.mxu0 0
    %2195 = vmatpush1.bf16.msra.mxu0 0
    %2196 = vmatprep.subr.bf16.mxu0 0
    %2197 = vmatpush1.bf16.msra.mxu0 0
    %2198 = vmatprep.subr.bf16.mxu0 0
    %2199 = vmatpush1.bf16.msra.mxu0 0
    %2200 = vmatprep.subr.bf16.mxu0 0
    %2201 = vmatpush1.bf16.msra.mxu0 0
    %2202 = vmatprep.subr.bf16.mxu0 0
    %2203 = vmatpush1.bf16.msra.mxu0 0
    %2204 = vmatprep.subr.bf16.mxu0 0
    %2205 = vmatpush1.bf16.msra.mxu0 0
    %2206 = vmatprep.subr.bf16.mxu0 0
    %2207 = vmatpush1.bf16.msra.mxu0 0
    %2208 = vmatprep.mubr.bf16.mxu0 0
    %2209 = vmatmul.mubr.bf16.gmra.mrb[0].mxu0 %v2174
    %v2210 = vpop.f32.mrb[0].mxu0
    %v2211 = vadd.f32 0.0, %v2210
    %v2212 = vpop.f32.mrb[0].mxu0
    %v2213 = vadd.f32 0.0, %v2212
    %v2214 = vpop.f32.mrb[0].mxu0
    %v2215 = vpop.f32.mrb[0].mxu0
    %2216 = vdwg.mxu0
    %v2217 = vadd.f32 %v2171, %v2211
    %v2218 = vadd.f32 %v2172, %v2213
    %v2219 = vxor.u32 %v2217, 2147483648
    %v2220 = vmul.f32 %v2219, 1.442695
    %v2221 = vpow.pop %v2220
    %v2222 = vadd.f32 %v2221, 1.0
    %v2223 = vrcp.pop %v2222
    %v2224 = vmul.f32 1.0, %v2223
    %v2225 = vtanh.pop %v2217
    %v2226 = vmul.f32 %v2224, %v2128
    %2228 = vrot.lane.b32.xlu0 %v2225, 32
    %v2229 = vpop.permute.xlu0 %2228
    %v2231 = vmul.f32 %v2224, %v2229
    %2233 = vrot.lane.b32.xlu0 %v2231, 32
    %v2234 = vpop.permute.xlu0 %2233
    %v2236 = vadd.f32 %v2226, %v2234
    %v2237 = vtanh.pop %v2236
    %2239 = vrot.lane.b32.xlu0 %v2237, 32
    %v2240 = vpop.permute.xlu0 %2239
    %v2242 = vmul.f32 %v2224, %v2240
    %v2243 = vxor.u32 %v2218, 2147483648
    %v2244 = vmul.f32 %v2243, 1.442695
    %v2245 = vpow.pop %v2244
    %v2246 = vadd.f32 %v2245, 1.0
    %v2247 = vrcp.pop %v2246
    %v2248 = vmul.f32 1.0, %v2247
    %v2249 = vtanh.pop %v2218
    %v2250 = vmul.f32 %v2248, %v2152
    %2252 = vrot.lane.b32.xlu0 %v2249, 32
    %v2253 = vpop.permute.xlu0 %2252
    %v2255 = vmul.f32 %v2248, %v2253
    %2257 = vrot.lane.b32.xlu0 %v2255, 32
    %v2258 = vpop.permute.xlu0 %2257
    %v2260 = vadd.f32 %v2250, %v2258
    %v2261 = vtanh.pop %v2260
    %2263 = vrot.lane.b32.xlu0 %v2261, 32
    %v2264 = vpop.permute.xlu0 %2263
    %v2266 = vmul.f32 %v2248, %v2264
    %2268 = vrot.lane.b32.xlu0 %v2242, 64
    %v2269 = vpop.permute.xlu0 %2268
    %2272 = vrot.lane.b32.xlu0 %v2266, 96
    %v2273 = vpop.permute.xlu0 %2272
    %v2275 = vsel %vm123, %v2269, %v2273
    %v2276 = vpack.c.bf16 %v2275, %v2275
    %v2277 = vld [vmem:[#allocation2 + $0x30] sm:$0xf0]
    %v2278 = vld [vmem:[#allocation2 + $0x38] sm:$0xf0]
    %v2281 = vrot.slane %v2277, 4
    %v2282 = vrot.slane %v2278, 4
    %v2285 = vunpack.c.l.bf16 %v2281
    %v2286 = vunpack.c.l.bf16 %v2282
    %v2288 = vsel %vm294, %v2276, 0
    %2290 = vmatprep.subr.bf16.mxu0 %v1495
    %2291 = vmatpush1.bf16.msra.mxu0 %v1494
    %2292 = vmatprep.subr.bf16.mxu0 %v1497
    %2293 = vmatpush1.bf16.msra.mxu0 %v1496
    %2294 = vmatprep.subr.bf16.mxu0 %v1499
    %2295 = vmatpush1.bf16.msra.mxu0 %v1498
    %2296 = vmatprep.subr.bf16.mxu0 %v1501
    %2297 = vmatpush1.bf16.msra.mxu0 %v1500
    %2298 = vmatprep.subr.bf16.mxu0 0
    %2299 = vmatpush1.bf16.msra.mxu0 0
    %2300 = vmatprep.subr.bf16.mxu0 0
    %2301 = vmatpush1.bf16.msra.mxu0 0
    %2302 = vmatprep.subr.bf16.mxu0 0
    %2303 = vmatpush1.bf16.msra.mxu0 0
    %2304 = vmatprep.subr.bf16.mxu0 0
    %2305 = vmatpush1.bf16.msra.mxu0 0
    %2306 = vmatprep.subr.bf16.mxu0 0
    %2307 = vmatpush1.bf16.msra.mxu0 0
    %2308 = vmatprep.subr.bf16.mxu0 0
    %2309 = vmatpush1.bf16.msra.mxu0 0
    %2310 = vmatprep.subr.bf16.mxu0 0
    %2311 = vmatpush1.bf16.msra.mxu0 0
    %2312 = vmatprep.subr.bf16.mxu0 0
    %2313 = vmatpush1.bf16.msra.mxu0 0
    %2314 = vmatprep.subr.bf16.mxu0 0
    %2315 = vmatpush1.bf16.msra.mxu0 0
    %2316 = vmatprep.subr.bf16.mxu0 0
    %2317 = vmatpush1.bf16.msra.mxu0 0
    %2318 = vmatprep.subr.bf16.mxu0 0
    %2319 = vmatpush1.bf16.msra.mxu0 0
    %2320 = vmatprep.subr.bf16.mxu0 0
    %2321 = vmatpush1.bf16.msra.mxu0 0
    %2322 = vmatprep.mubr.bf16.mxu0 0
    %2323 = vmatmul.mubr.bf16.gmra.mrb[0].mxu0 %v2288
    %v2324 = vpop.f32.mrb[0].mxu0
    %v2325 = vadd.f32 0.0, %v2324
    %v2326 = vpop.f32.mrb[0].mxu0
    %v2327 = vadd.f32 0.0, %v2326
    %v2328 = vpop.f32.mrb[0].mxu0
    %v2329 = vpop.f32.mrb[0].mxu0
    %2330 = vdwg.mxu0
    %v2331 = vadd.f32 %v2285, %v2325
    %v2332 = vadd.f32 %v2286, %v2327
    %v2333 = vxor.u32 %v2331, 2147483648
    %v2334 = vmul.f32 %v2333, 1.442695
    %v2335 = vpow.pop %v2334
    %v2336 = vadd.f32 %v2335, 1.0
    %v2337 = vrcp.pop %v2336
    %v2338 = vmul.f32 1.0, %v2337
    %v2339 = vtanh.pop %v2331
    %v2340 = vmul.f32 %v2338, %v2236
    %2342 = vrot.lane.b32.xlu0 %v2339, 32
    %v2343 = vpop.permute.xlu0 %2342
    %v2345 = vmul.f32 %v2338, %v2343
    %2347 = vrot.lane.b32.xlu0 %v2345, 32
    %v2348 = vpop.permute.xlu0 %2347
    %v2350 = vadd.f32 %v2340, %v2348
    %v2351 = vtanh.pop %v2350
    %2353 = vrot.lane.b32.xlu0 %v2351, 32
    %v2354 = vpop.permute.xlu0 %2353
    %v2356 = vmul.f32 %v2338, %v2354
    %v2357 = vxor.u32 %v2332, 2147483648
    %v2358 = vmul.f32 %v2357, 1.442695
    %v2359 = vpow.pop %v2358
    %v2360 = vadd.f32 %v2359, 1.0
    %v2361 = vrcp.pop %v2360
    %v2362 = vmul.f32 1.0, %v2361
    %v2363 = vtanh.pop %v2332
    %v2364 = vmul.f32 %v2362, %v2260
    %2366 = vrot.lane.b32.xlu0 %v2363, 32
    %v2367 = vpop.permute.xlu0 %2366
    %v2369 = vmul.f32 %v2362, %v2367
    %2371 = vrot.lane.b32.xlu0 %v2369, 32
    %v2372 = vpop.permute.xlu0 %2371
    %v2374 = vadd.f32 %v2364, %v2372
    %v2375 = vtanh.pop %v2374
    %2377 = vrot.lane.b32.xlu0 %v2375, 32
    %v2378 = vpop.permute.xlu0 %2377
    %v2380 = vmul.f32 %v2362, %v2378
    %2382 = vrot.lane.b32.xlu0 %v2356, 64
    %v2383 = vpop.permute.xlu0 %2382
    %2386 = vrot.lane.b32.xlu0 %v2380, 96
    %v2387 = vpop.permute.xlu0 %2386
    %v2389 = vsel %vm123, %v2383, %v2387
    %v2390 = vpack.c.bf16 %v2389, %v2389
    %v2391 = vld [vmem:[%s7] sm:$0xf]
    %v2392 = vld [vmem:[%s7 + $0x4] sm:$0xf]
    %v2393 = vld [vmem:[%s7 + $0x8] sm:$0xf]
    %v2394 = vld [vmem:[%s7 + $0xc] sm:$0xf]
    %v2395 = vld [vmem:[%s7 + $0x10] sm:$0xf]
    %v2396 = vld [vmem:[%s7 + $0x14] sm:$0xf]
    %v2397 = vld [vmem:[%s7 + $0x18] sm:$0xf]
    %v2398 = vld [vmem:[%s7 + $0x1c] sm:$0xf]
    %v2399 = vld [vmem:[%s8] sm:$0x1]
    %v2401 = vlaneseq
    %v2402 = vshrl.u32 %v2401, 7
    %v2403 = vsub.s32 0, %v2402
    %v2404 = vrot.slane %v2399, %v2403
    %v2414 = vunpack.c.l.b16 %v2391
    %v2415 = vunpack.c.l.b16 %v2392
    %v2416 = vunpack.c.l.b16 %v2393
    %v2417 = vunpack.c.l.b16 %v2394
    %v2418 = vunpack.c.l.b16 %v2395
    %v2419 = vunpack.c.l.b16 %v2396
    %v2420 = vunpack.c.l.b16 %v2397
    %v2421 = vunpack.c.l.b16 %v2398
    %v2422 = vpack.c.b16 %v2415, %v2414
    %v2423 = vpack.c.b16 %v2417, %v2416
    %v2424 = vpack.c.b16 %v2419, %v2418
    %v2425 = vpack.c.b16 %v2421, %v2420
    %v2431 = vsel %vm294, %v2390, 0
    %2433 = vmatprep.subr.bf16.mxu0 0
    %2434 = vmatpush1.bf16.msra.mxu0 %v2422
    %2435 = vmatprep.subr.bf16.mxu0 0
    %2436 = vmatpush1.bf16.msra.mxu0 %v2423
    %2437 = vmatprep.subr.bf16.mxu0 0
    %2438 = vmatpush1.bf16.msra.mxu0 %v2424
    %2439 = vmatprep.subr.bf16.mxu0 0
    %2440 = vmatpush1.bf16.msra.mxu0 %v2425
    %2441 = vmatprep.subr.bf16.mxu0 0
    %2442 = vmatpush1.bf16.msra.mxu0 0
    %2443 = vmatprep.subr.bf16.mxu0 0
    %2444 = vmatpush1.bf16.msra.mxu0 0
    %2445 = vmatprep.subr.bf16.mxu0 0
    %2446 = vmatpush1.bf16.msra.mxu0 0
    %2447 = vmatprep.subr.bf16.mxu0 0
    %2448 = vmatpush1.bf16.msra.mxu0 0
    %2449 = vmatprep.subr.bf16.mxu0 0
    %2450 = vmatpush1.bf16.msra.mxu0 0
    %2451 = vmatprep.subr.bf16.mxu0 0
    %2452 = vmatpush1.bf16.msra.mxu0 0
    %2453 = vmatprep.subr.bf16.mxu0 0
    %2454 = vmatpush1.bf16.msra.mxu0 0
    %2455 = vmatprep.subr.bf16.mxu0 0
    %2456 = vmatpush1.bf16.msra.mxu0 0
    %2457 = vmatprep.subr.bf16.mxu0 0
    %2458 = vmatpush1.bf16.msra.mxu0 0
    %2459 = vmatprep.subr.bf16.mxu0 0
    %2460 = vmatpush1.bf16.msra.mxu0 0
    %2461 = vmatprep.subr.bf16.mxu0 0
    %2462 = vmatpush1.bf16.msra.mxu0 0
    %2463 = vmatprep.subr.bf16.mxu0 0
    %2464 = vmatpush1.bf16.msra.mxu0 0
    %2465 = vmatprep.mubr.bf16.mxu0 0
    %2466 = vmatmul.mubr.bf16.gmra.mrb[0].mxu0 %v2431
    %v2467 = vpop.f32.mrb[0].mxu0
    %v2468 = vadd.f32 %v2404, %v2467
    %v2469 = vpop.f32.mrb[0].mxu0
    %v2470 = vpop.f32.mrb[0].mxu0
    %v2471 = vpop.f32.mrb[0].mxu0
    %2472 = vdwg.mxu0
    %2473 = vst [vmem:[%s9] sm:$0xff] %v2468
    // Predicated region
    $region46: #{lstm_model_forward.1} parent=1 // pred_check
      _
    $region47: #{lstm_model_forward.1} parent=1 // pred_check_branch
      %2475 = sbr.rel (0) target = $region49
    $region48: #{lstm_model_forward.1} parent=1 // pred_region
      _
    $region49: #{lstm_model_forward.1} parent=1 // pred_fallthru
      _
    // Predicated region
    $region50: #{lstm_model_forward.1} parent=1 // pred_check
      _
    $region51: #{lstm_model_forward.1} parent=1 // pred_check_branch
      %2477 = sbr.rel (0) target = $region53
    $region52: #{lstm_model_forward.1} parent=1 // pred_region
      _
    $region53: #{lstm_model_forward.1} parent=1 // pred_fallthru
      _
    %2478 = vsyncpa [#allocation5], 1
    %2479 = vsyncpa [#allocation7], 1

</llo_original>
